<compile_context>
chip_gen: v7x
topology: tpu7x:2x2x1
jax: 0.10.0
libtpu: 0.0.40
codegen_flags: <defaults>
</compile_context>

<pallas_src>
import jax
import jax.numpy as jnp
from jax.experimental import pallas as pl
from jax.experimental.pallas import tpu as pltpu

_VMEM_LIMIT = 48 * 1024 * 1024   # <= ~48 MiB: headroom on v7x (64 MiB), fine on v5e/v6e


# ------------------------------ Pallas kernels ------------------------------

def _conv_relu_pool_kernel(cols_ref, w_ref, b_ref, o_ref):
    """Fused conv (im2col GEMM) + 2x2/stride-2 max-pool + bias + ReLU.

    cols_ref: (4, B, Q, K) bf16  p-axis = the 4 members of each pool window,
                                 Q = Hp*Wp pooled positions, K = k*k*Cin.
    w_ref   : (K, C)      bf16
    b_ref   : (1, C)      f32
    o_ref   : (B, Q, C)   bf16   pooled activation, written once.
    """
    P, B, Q, K = cols_ref.shape
    C = w_ref.shape[1]
    # Broadcast the tiny weight once (outside the loop) so each GEMM is a
    # canonical batched matmul (same pattern as the batched attention einsum).
    wb = jnp.broadcast_to(w_ref[...], (B, K, C))
    m = None
    for p in range(P):                                    # P == 4, static
        y = jnp.einsum('bqk,bkc->bqc', cols_ref[p], wb,
                       preferred_element_type=jnp.float32)
        m = y if m is None else jnp.maximum(m, y)
    # bias/ReLU commute with the pool max (bias identical across the window).
    o_ref[...] = jnp.maximum(m + b_ref[...], 0.0).astype(o_ref.dtype)


def _fc3_kernel(x_ref, w1_ref, b1_ref, w2_ref, b2_ref, w3_ref, b3_ref, o_ref):
    """fc1 + ReLU + fc2 + ReLU + fc3 fused; intermediates never touch HBM."""
    h = jnp.dot(x_ref[...], w1_ref[...], preferred_element_type=jnp.float32)
    h = jnp.maximum(h + b1_ref[...], 0.0).astype(w2_ref.dtype)
    h = jnp.dot(h, w2_ref[...], preferred_element_type=jnp.float32)
    h = jnp.maximum(h + b2_ref[...], 0.0).astype(w3_ref.dtype)
    h = jnp.dot(h, w3_ref[...], preferred_element_type=jnp.float32)
    o_ref[...] = (h + b3_ref[...]).astype(o_ref.dtype)


# ------------------------------ kernel wrappers ------------------------------

def conv_relu_pool(cols, w, b, block_n):
    """cols: (4, N, Q, K) bf16; w: (K, C) bf16; b: (1, C) f32 -> (N, Q, C) bf16."""
    P, N, Q, K = cols.shape
    C = w.shape[1]
    assert N % block_n == 0
    return pl.pallas_call(
        _conv_relu_pool_kernel,
        out_shape=jax.ShapeDtypeStruct((N, Q, C), jnp.bfloat16),
        grid=(N // block_n,),
        in_specs=[
            pl.BlockSpec((P, block_n, Q, K), lambda i: (0, i, 0, 0)),
            pl.BlockSpec((K, C), lambda i: (0, 0)),
            pl.BlockSpec((1, C), lambda i: (0, 0)),
        ],
        out_specs=pl.BlockSpec((block_n, Q, C), lambda i: (i, 0, 0)),
        compiler_params=pltpu.CompilerParams(
            dimension_semantics=("parallel",),
            vmem_limit_bytes=_VMEM_LIMIT),
    )(cols, w, b)


def fc3_fused(x, kp, block_m):
    """Fused 3-layer MLP head on the whole (padded) batch."""
    M, F = x.shape
    d1 = kp['fc1_w'].shape[1]
    d2 = kp['fc2_w'].shape[1]
    d3 = kp['fc3_w'].shape[1]
    assert M % block_m == 0
    return pl.pallas_call(
        _fc3_kernel,
        out_shape=jax.ShapeDtypeStruct((M, d3), jnp.float32),
        grid=(M // block_m,),
        in_specs=[
            pl.BlockSpec((block_m, F), lambda i: (i, 0)),
            pl.BlockSpec((F, d1), lambda i: (0, 0)),
            pl.BlockSpec((1, d1), lambda i: (0, 0)),
            pl.BlockSpec((d1, d2), lambda i: (0, 0)),
            pl.BlockSpec((1, d2), lambda i: (0, 0)),
            pl.BlockSpec((d2, d3), lambda i: (0, 0)),
            pl.BlockSpec((1, d3), lambda i: (0, 0)),
        ],
        out_specs=pl.BlockSpec((block_m, d3), lambda i: (i, 0)),
        compiler_params=pltpu.CompilerParams(
            dimension_semantics=("parallel",),
            vmem_limit_bytes=_VMEM_LIMIT),
    )(x, kp['fc1_w'], kp['fc1_b'], kp['fc2_w'], kp['fc2_b'],
      kp['fc3_w'], kp['fc3_b'])


# -------------------------------- XLA glue ----------------------------------

def _im2col_pool(x, k):
    """Patches for a valid conv, pre-grouped for a fused 2x2/s2 max-pool.

    x: (N, H, W, C) -> cols: (4, N, Hp*Wp, k*k*C).  The leading axis enumerates
    the four conv-output positions pooled together, so the kernel reduces over
    it with a plain vreg-wise jnp.maximum (no in-kernel reshapes / strided
    slicing).  K-axis order is (kh, kw, cin).
    """
    N, H, W, C = x.shape
    Ho, Wo = H - k + 1, W - k + 1
    Hp, Wp = Ho // 2, Wo // 2
    assert Hp >= 1 and Wp >= 1
    pat = jnp.concatenate(
        [x[:, dh:dh + Ho, dw:dw + Wo, :] for dh in range(k) for dw in range(k)],
        axis=-1)                                          # (N, Ho, Wo, k*k*C)
    parts = [pat[:, pi:2 * Hp:2, pj:2 * Wp:2, :]          # (N, Hp, Wp, k*k*C)
             for pi in range(2) for pj in range(2)]
    cols = jnp.stack(parts, axis=0)                       # (4, N, Hp, Wp, K)
    return cols.reshape(4, N, Hp * Wp, k * k * C), Hp, Wp


def _pick_batch_block(n, target=64):
    """Big enough to amortize per-step overhead, but keep grid length >= 2 so
    v7x's two TensorCores both get work."""
    if n <= 1:
        return 1
    return int(min(target, (n + 1) // 2))


def prepare_params(p):
    """Convert nn.Module-style parameters into kernel-ready layouts (done once)."""
    def conv_w(w):   # (Cout, Cin, k, k) -> (k*k*Cin, Cout), K order = (kh, kw, cin)
        cout, cin, k, _ = w.shape
        return w.transpose(2, 3, 1, 0).reshape(k * k * cin, cout).astype(jnp.bfloat16)

    def pad2(w, rows, cols):
        out = jnp.zeros((rows, cols), jnp.bfloat16)
        return out.at[:w.shape[0], :w.shape[1]].set(w.astype(jnp.bfloat16))

    def padb(b, n):
        out = jnp.zeros((1, n), jnp.float32)
        return out.at[0, :b.shape[0]].set(b.astype(jnp.float32))

    c2 = p['conv2_w'].shape[0]                  # 16
    flat, d1 = p['fc1_w'].shape                 # (400, 120)
    s = int(round((flat // c2) ** 0.5))         # 5 (square pooled map)
    # Fold PyTorch's NCHW flatten order (c, h, w) into fc1's rows -> (h, w, c),
    # which is the order the conv2 kernel's output flattens in.
    fc1 = p['fc1_w'].reshape(c2, s, s, d1).transpose(1, 2, 0, 3).reshape(flat, d1)

    D1, D2 = 128, 128                           # pad fc hidden dims to full lanes
    d3 = p['fc3_w'].shape[1]
    return {
        'conv1_w': conv_w(p['conv1_w']),
        'conv1_b': p['conv1_b'].reshape(1, -1).astype(jnp.float32),
        'conv2_w': conv_w(p['conv2_w']),
        'conv2_b': p['conv2_b'].reshape(1, -1).astype(jnp.float32),
        'fc1_w': pad2(fc1, flat, D1),
        'fc1_b': padb(p['fc1_b'], D1),
        'fc2_w': pad2(p['fc2_w'], D1, D2),
        'fc2_b': padb(p['fc2_b'], D2),
        'fc3_w': pad2(p['fc3_w'], D2, d3),
        'fc3_b': padb(p['fc3_b'], d3),
    }


def cnn_forward(x, kp, batch_block=64):
    N = x.shape[0]
    bn = _pick_batch_block(N, batch_block)
    Np = ((N + bn - 1) // bn) * bn
    if Np != N:
        x = jnp.pad(x, ((0, Np - N), (0, 0), (0, 0), (0, 0)))
    # One NCHW -> NHWC transpose; channels-last + bf16 through the conv stack.
    h = x.transpose(0, 2, 3, 1).astype(jnp.bfloat16)

    # conv1 + ReLU + pool (one fused, batch-blocked pallas_call)
    cols1, Hp1, Wp1 = _im2col_pool(h, 5)
    a1 = conv_relu_pool(cols1, kp['conv1_w'], kp['conv1_b'], bn)   # (Np, Hp1*Wp1, 6)
    c1 = kp['conv1_w'].shape[1]
    h1 = a1.reshape(Np, Hp1, Wp1, c1)

    # conv2 + ReLU + pool
    cols2, Hp2, Wp2 = _im2col_pool(h1, 5)
    a2 = conv_relu_pool(cols2, kp['conv2_w'], kp['conv2_b'], bn)   # (Np, Hp2*Wp2, 16)
    c2 = kp['conv2_w'].shape[1]

    # Flatten in (h, w, c) order: the PyTorch (c, h, w) permutation is already
    # folded into fc1's weight rows, so no activation transpose is needed.
    flat = a2.reshape(Np, Hp2 * Wp2 * c2)
    block_m = Np if Np <= 512 else bn
    out = fc3_fused(flat, kp, block_m)
    return out[:N]


# ------------------------- pure-JAX f32 reference ----------------------------

def _reference_forward(x, p):
    def conv(h, w, b):
        y = jax.lax.conv_general_dilated(
            h, w, window_strides=(1, 1), padding='VALID',
            dimension_numbers=('NCHW', 'OIHW', 'NCHW'))
        return jnp.maximum(y + b[None, :, None, None], 0.0)

    def pool(h):
        return jax.lax.reduce_window(h, -jnp.inf, jax.lax.max,
                                     (1, 1, 2, 2), (1, 1, 2, 2), 'VALID')

    h = pool(conv(x, p['conv1_w'], p['conv1_b']))
    h = pool(conv(h, p['conv2_w'], p['conv2_b']))
    h = h.reshape(h.shape[0], -1)                          # NCHW flatten order
    h = jnp.maximum(h @ p['fc1_w'] + p['fc1_b'], 0.0)
    h = jnp.maximum(h @ p['fc2_w'] + p['fc2_b'], 0.0)
    return h @ p['fc3_w'] + p['fc3_b']


# ----------------------------- parameter creation ----------------------------

def _uniform(key, shape, fan_in):
    bound = 1.0 / float(fan_in) ** 0.5
    return jax.random.uniform(key, shape, jnp.float32, -bound, bound)


def init_params(key, image_size):
    cin, h, w = image_size
    c1, c2, k = 6, 16, 5
    h1, w1 = (h - k + 1) // 2, (w - k + 1) // 2
    h2, w2 = (h1 - k + 1) // 2, (w1 - k + 1) // 2
    # NOTE: matches the original PyTorch quirk (conv2_size[0] used twice) — square inputs only.
    flat = c2 * h2 * h2
    ks = jax.random.split(key, 10)
    return {
        "conv1_w": _uniform(ks[0], (c1, cin, k, k), cin * k * k),
        "conv1_b": _uniform(ks[1], (c1,), cin * k * k),
        "conv2_w": _uniform(ks[2], (c2, c1, k, k), c1 * k * k),
        "conv2_b": _uniform(ks[3], (c2,), c1 * k * k),
        # FC weights stored as (in, out), rows in PyTorch (c, h, w) order.
        "fc1_w": _uniform(ks[4], (flat, 120), flat),
        "fc1_b": _uniform(ks[5], (120,), flat),
        "fc2_w": _uniform(ks[6], (120, 84), 120),
        "fc2_b": _uniform(ks[7], (84,), 120),
        "fc3_w": _uniform(ks[8], (84, 10), 84),
        "fc3_b": _uniform(ks[9], (10,), 84),
    }


# ----------------------------------- main ------------------------------------

if __name__ == "__main__":
    image_size = (3, 32, 32)   # (C, H, W); 32x32 keeps the pooling sizes integral
    batch = 2

    key = jax.random.PRNGKey(0)
    k_param, k_x = jax.random.split(key)
    params = init_params(k_param, image_size)
    x = jax.random.normal(k_x, (batch,) + image_size, dtype=jnp.float32)

    kparams = prepare_params(params)
    out = jax.jit(cnn_forward)(x, kparams)
    out = jax.block_until_ready(out)
    assert out.shape == (batch, 10), out.shape

    # Loose check against a pure-JAX f32 reference (kernel runs in bf16 on the
    # MXU, so allow ~1e-2-scale deviation).
    ref = _reference_forward(x, params)
    err = float(jnp.max(jnp.abs(out - ref)))
    assert err < 0.1, f"max abs error vs reference: {err}"

    print("KERNEL_OK")
</pallas_src>

<mosaic_0001>
module attributes {stable_mosaic.version = 11 : i64} {
  func.func @_conv_relu_pool_kernel(%arg0: i32, %arg1: memref<4x1x196x75xbf16, #tpu.memory_space<vmem>>, %arg2: memref<75x6xbf16, #tpu.memory_space<vmem>>, %arg3: memref<1x6xf32, #tpu.memory_space<vmem>>, %arg4: memref<1x196x6xbf16, #tpu.memory_space<vmem>>) attributes {dimension_semantics = [#tpu.dimension_semantics<parallel>], iteration_bounds = array<i64: 2>, scalar_prefetch = 0 : i64, scratch_operands = 0 : i64, tpu.core_type = #tpu.core_type<tc>, window_params = [{transform_indices = @transform_0, window_bounds = array<i64: 4, 1, 196, 75>}, {pipeline_mode = #tpu.pipeline_mode<synchronous>, transform_indices = @transform_1, window_bounds = array<i64: 75, 6>}, {pipeline_mode = #tpu.pipeline_mode<synchronous>, transform_indices = @transform_2, window_bounds = array<i64: 1, 6>}, {transform_indices = @transform_3, window_bounds = array<i64: 1, 196, 6>}]} {
    %c0 = arith.constant 0 : index
    %c0_0 = arith.constant 0 : index
    %0 = vector.load %arg2[%c0, %c0_0] : memref<75x6xbf16, #tpu.memory_space<vmem>>, vector<75x6xbf16>
    %1 = vector.shape_cast %0 : vector<75x6xbf16> to vector<1x75x6xbf16>
    %c0_1 = arith.constant 0 : index
    %c0_2 = arith.constant 0 : index
    %c0_3 = arith.constant 0 : index
    %c0_4 = arith.constant 0 : index
    %2 = vector.load %arg1[%c0_1, %c0_2, %c0_3, %c0_4] : memref<4x1x196x75xbf16, #tpu.memory_space<vmem>>, vector<1x1x196x75xbf16>
    %3 = vector.shape_cast %2 : vector<1x1x196x75xbf16> to vector<1x196x75xbf16>
    "tpu.trace_start"() <{level = 10 : i32, message = "bqk,bkc->bqc"}> : () -> ()
    %cst = arith.constant dense<0.000000e+00> : vector<1x196x6xf32>
    %4 = tpu.matmul %3, %1, %cst {dimension_numbers = #tpu.dot_dimension_numbers<[2], [1], [1], [2], [0, 0, 0, 1, 1, 2], [0], [0]>} : vector<1x196x75xbf16>, vector<1x75x6xbf16>, vector<1x196x6xf32> -> vector<1x196x6xf32>
    "tpu.trace_stop"() : () -> ()
    %c1 = arith.constant 1 : index
    %c0_5 = arith.constant 0 : index
    %c0_6 = arith.constant 0 : index
    %c0_7 = arith.constant 0 : index
    %5 = vector.load %arg1[%c1, %c0_5, %c0_6, %c0_7] : memref<4x1x196x75xbf16, #tpu.memory_space<vmem>>, vector<1x1x196x75xbf16>
    %6 = vector.shape_cast %5 : vector<1x1x196x75xbf16> to vector<1x196x75xbf16>
    "tpu.trace_start"() <{level = 10 : i32, message = "bqk,bkc->bqc"}> : () -> ()
    %cst_8 = arith.constant dense<0.000000e+00> : vector<1x196x6xf32>
    %7 = tpu.matmul %6, %1, %cst_8 {dimension_numbers = #tpu.dot_dimension_numbers<[2], [1], [1], [2], [0, 0, 0, 1, 1, 2], [0], [0]>} : vector<1x196x75xbf16>, vector<1x75x6xbf16>, vector<1x196x6xf32> -> vector<1x196x6xf32>
    "tpu.trace_stop"() : () -> ()
    %8 = arith.maximumf %4, %7 : vector<1x196x6xf32>
    %c2 = arith.constant 2 : index
    %c0_9 = arith.constant 0 : index
    %c0_10 = arith.constant 0 : index
    %c0_11 = arith.constant 0 : index
    %9 = vector.load %arg1[%c2, %c0_9, %c0_10, %c0_11] : memref<4x1x196x75xbf16, #tpu.memory_space<vmem>>, vector<1x1x196x75xbf16>
    %10 = vector.shape_cast %9 : vector<1x1x196x75xbf16> to vector<1x196x75xbf16>
    "tpu.trace_start"() <{level = 10 : i32, message = "bqk,bkc->bqc"}> : () -> ()
    %cst_12 = arith.constant dense<0.000000e+00> : vector<1x196x6xf32>
    %11 = tpu.matmul %10, %1, %cst_12 {dimension_numbers = #tpu.dot_dimension_numbers<[2], [1], [1], [2], [0, 0, 0, 1, 1, 2], [0], [0]>} : vector<1x196x75xbf16>, vector<1x75x6xbf16>, vector<1x196x6xf32> -> vector<1x196x6xf32>
    "tpu.trace_stop"() : () -> ()
    %12 = arith.maximumf %8, %11 : vector<1x196x6xf32>
    %c3 = arith.constant 3 : index
    %c0_13 = arith.constant 0 : index
    %c0_14 = arith.constant 0 : index
    %c0_15 = arith.constant 0 : index
    %13 = vector.load %arg1[%c3, %c0_13, %c0_14, %c0_15] : memref<4x1x196x75xbf16, #tpu.memory_space<vmem>>, vector<1x1x196x75xbf16>
    %14 = vector.shape_cast %13 : vector<1x1x196x75xbf16> to vector<1x196x75xbf16>
    "tpu.trace_start"() <{level = 10 : i32, message = "bqk,bkc->bqc"}> : () -> ()
    %cst_16 = arith.constant dense<0.000000e+00> : vector<1x196x6xf32>
    %15 = tpu.matmul %14, %1, %cst_16 {dimension_numbers = #tpu.dot_dimension_numbers<[2], [1], [1], [2], [0, 0, 0, 1, 1, 2], [0], [0]>} : vector<1x196x75xbf16>, vector<1x75x6xbf16>, vector<1x196x6xf32> -> vector<1x196x6xf32>
    "tpu.trace_stop"() : () -> ()
    %16 = arith.maximumf %12, %15 : vector<1x196x6xf32>
    %c0_17 = arith.constant 0 : index
    %c0_18 = arith.constant 0 : index
    %17 = vector.load %arg3[%c0_17, %c0_18] : memref<1x6xf32, #tpu.memory_space<vmem>>, vector<1x6xf32>
    %18 = vector.shape_cast %17 : vector<1x6xf32> to vector<1x1x6xf32>
    %19 = vector.broadcast %18 : vector<1x1x6xf32> to vector<1x196x6xf32>
    %20 = arith.addf %16, %19 : vector<1x196x6xf32>
    %cst_19 = arith.constant 0.000000e+00 : f32
    %21 = vector.broadcast %cst_19 : f32 to vector<1x196x6xf32>
    %22 = arith.maximumf %20, %21 : vector<1x196x6xf32>
    %23 = arith.truncf %22 : vector<1x196x6xf32> to vector<1x196x6xbf16>
    %c0_20 = arith.constant 0 : index
    %c0_21 = arith.constant 0 : index
    %c0_22 = arith.constant 0 : index
    %24 = vector.load %arg4[%c0_20, %c0_21, %c0_22] : memref<1x196x6xbf16, #tpu.memory_space<vmem>>, vector<1x196x6xbf16>
    tpu.vector_store %arg4[%c0_20, %c0_21, %c0_22], %23 {strides = array<i32>} : memref<1x196x6xbf16, #tpu.memory_space<vmem>>, vector<1x196x6xbf16>,
    return
  }
  func.func @transform_0(%arg0: i32) -> (i32, i32, i32, i32) {
    %c0_i32 = arith.constant 0 : i32
    %c0_i32_0 = arith.constant 0 : i32
    %c0_i32_1 = arith.constant 0 : i32
    %c0_i32_2 = arith.constant 0 : i32
    return %c0_i32, %arg0, %c0_i32_0, %c0_i32_1 : i32, i32, i32, i32
  }
  func.func @transform_1(%arg0: i32) -> (i32, i32) {
    %c0_i32 = arith.constant 0 : i32
    %c0_i32_0 = arith.constant 0 : i32
    %c0_i32_1 = arith.constant 0 : i32
    return %c0_i32, %c0_i32_0 : i32, i32
  }
  func.func @transform_2(%arg0: i32) -> (i32, i32) {
    %c0_i32 = arith.constant 0 : i32
    %c0_i32_0 = arith.constant 0 : i32
    %c0_i32_1 = arith.constant 0 : i32
    return %c0_i32, %c0_i32_0 : i32, i32
  }
  func.func @transform_3(%arg0: i32) -> (i32, i32, i32) {
    %c0_i32 = arith.constant 0 : i32
    %c0_i32_0 = arith.constant 0 : i32
    %c0_i32_1 = arith.constant 0 : i32
    return %arg0, %c0_i32, %c0_i32_0 : i32, i32, i32
  }
}

module attributes {stable_mosaic.version = 11 : i64} {
  func.func @_conv_relu_pool_kernel(%arg0: i32, %arg1: memref<4x1x25x150xbf16, #tpu.memory_space<vmem>>, %arg2: memref<150x16xbf16, #tpu.memory_space<vmem>>, %arg3: memref<1x16xf32, #tpu.memory_space<vmem>>, %arg4: memref<1x25x16xbf16, #tpu.memory_space<vmem>>) attributes {dimension_semantics = [#tpu.dimension_semantics<parallel>], iteration_bounds = array<i64: 2>, scalar_prefetch = 0 : i64, scratch_operands = 0 : i64, tpu.core_type = #tpu.core_type<tc>, window_params = [{transform_indices = @transform_0, window_bounds = array<i64: 4, 1, 25, 150>}, {pipeline_mode = #tpu.pipeline_mode<synchronous>, transform_indices = @transform_1, window_bounds = array<i64: 150, 16>}, {pipeline_mode = #tpu.pipeline_mode<synchronous>, transform_indices = @transform_2, window_bounds = array<i64: 1, 16>}, {transform_indices = @transform_3, window_bounds = array<i64: 1, 25, 16>}]} {
    %c0 = arith.constant 0 : index
    %c0_0 = arith.constant 0 : index
    %0 = vector.load %arg2[%c0, %c0_0] : memref<150x16xbf16, #tpu.memory_space<vmem>>, vector<150x16xbf16>
    %1 = vector.shape_cast %0 : vector<150x16xbf16> to vector<1x150x16xbf16>
    %c0_1 = arith.constant 0 : index
    %c0_2 = arith.constant 0 : index
    %c0_3 = arith.constant 0 : index
    %c0_4 = arith.constant 0 : index
    %2 = vector.load %arg1[%c0_1, %c0_2, %c0_3, %c0_4] : memref<4x1x25x150xbf16, #tpu.memory_space<vmem>>, vector<1x1x25x150xbf16>
    %3 = vector.shape_cast %2 : vector<1x1x25x150xbf16> to vector<1x25x150xbf16>
    "tpu.trace_start"() <{level = 10 : i32, message = "bqk,bkc->bqc"}> : () -> ()
    %cst = arith.constant dense<0.000000e+00> : vector<1x25x16xf32>
    %4 = tpu.matmul %3, %1, %cst {dimension_numbers = #tpu.dot_dimension_numbers<[2], [1], [1], [2], [0, 0, 0, 1, 1, 2], [0], [0]>} : vector<1x25x150xbf16>, vector<1x150x16xbf16>, vector<1x25x16xf32> -> vector<1x25x16xf32>
    "tpu.trace_stop"() : () -> ()
    %c1 = arith.constant 1 : index
    %c0_5 = arith.constant 0 : index
    %c0_6 = arith.constant 0 : index
    %c0_7 = arith.constant 0 : index
    %5 = vector.load %arg1[%c1, %c0_5, %c0_6, %c0_7] : memref<4x1x25x150xbf16, #tpu.memory_space<vmem>>, vector<1x1x25x150xbf16>
    %6 = vector.shape_cast %5 : vector<1x1x25x150xbf16> to vector<1x25x150xbf16>
    "tpu.trace_start"() <{level = 10 : i32, message = "bqk,bkc->bqc"}> : () -> ()
    %cst_8 = arith.constant dense<0.000000e+00> : vector<1x25x16xf32>
    %7 = tpu.matmul %6, %1, %cst_8 {dimension_numbers = #tpu.dot_dimension_numbers<[2], [1], [1], [2], [0, 0, 0, 1, 1, 2], [0], [0]>} : vector<1x25x150xbf16>, vector<1x150x16xbf16>, vector<1x25x16xf32> -> vector<1x25x16xf32>
    "tpu.trace_stop"() : () -> ()
    %8 = arith.maximumf %4, %7 : vector<1x25x16xf32>
    %c2 = arith.constant 2 : index
    %c0_9 = arith.constant 0 : index
    %c0_10 = arith.constant 0 : index
    %c0_11 = arith.constant 0 : index
    %9 = vector.load %arg1[%c2, %c0_9, %c0_10, %c0_11] : memref<4x1x25x150xbf16, #tpu.memory_space<vmem>>, vector<1x1x25x150xbf16>
    %10 = vector.shape_cast %9 : vector<1x1x25x150xbf16> to vector<1x25x150xbf16>
    "tpu.trace_start"() <{level = 10 : i32, message = "bqk,bkc->bqc"}> : () -> ()
    %cst_12 = arith.constant dense<0.000000e+00> : vector<1x25x16xf32>
    %11 = tpu.matmul %10, %1, %cst_12 {dimension_numbers = #tpu.dot_dimension_numbers<[2], [1], [1], [2], [0, 0, 0, 1, 1, 2], [0], [0]>} : vector<1x25x150xbf16>, vector<1x150x16xbf16>, vector<1x25x16xf32> -> vector<1x25x16xf32>
    "tpu.trace_stop"() : () -> ()
    %12 = arith.maximumf %8, %11 : vector<1x25x16xf32>
    %c3 = arith.constant 3 : index
    %c0_13 = arith.constant 0 : index
    %c0_14 = arith.constant 0 : index
    %c0_15 = arith.constant 0 : index
    %13 = vector.load %arg1[%c3, %c0_13, %c0_14, %c0_15] : memref<4x1x25x150xbf16, #tpu.memory_space<vmem>>, vector<1x1x25x150xbf16>
    %14 = vector.shape_cast %13 : vector<1x1x25x150xbf16> to vector<1x25x150xbf16>
    "tpu.trace_start"() <{level = 10 : i32, message = "bqk,bkc->bqc"}> : () -> ()
    %cst_16 = arith.constant dense<0.000000e+00> : vector<1x25x16xf32>
    %15 = tpu.matmul %14, %1, %cst_16 {dimension_numbers = #tpu.dot_dimension_numbers<[2], [1], [1], [2], [0, 0, 0, 1, 1, 2], [0], [0]>} : vector<1x25x150xbf16>, vector<1x150x16xbf16>, vector<1x25x16xf32> -> vector<1x25x16xf32>
    "tpu.trace_stop"() : () -> ()
    %16 = arith.maximumf %12, %15 : vector<1x25x16xf32>
    %c0_17 = arith.constant 0 : index
    %c0_18 = arith.constant 0 : index
    %17 = vector.load %arg3[%c0_17, %c0_18] : memref<1x16xf32, #tpu.memory_space<vmem>>, vector<1x16xf32>
    %18 = vector.shape_cast %17 : vector<1x16xf32> to vector<1x1x16xf32>
    %19 = vector.broadcast %18 : vector<1x1x16xf32> to vector<1x25x16xf32>
    %20 = arith.addf %16, %19 : vector<1x25x16xf32>
    %cst_19 = arith.constant 0.000000e+00 : f32
    %21 = vector.broadcast %cst_19 : f32 to vector<1x25x16xf32>
    %22 = arith.maximumf %20, %21 : vector<1x25x16xf32>
    %23 = arith.truncf %22 : vector<1x25x16xf32> to vector<1x25x16xbf16>
    %c0_20 = arith.constant 0 : index
    %c0_21 = arith.constant 0 : index
    %c0_22 = arith.constant 0 : index
    %24 = vector.load %arg4[%c0_20, %c0_21, %c0_22] : memref<1x25x16xbf16, #tpu.memory_space<vmem>>, vector<1x25x16xbf16>
    tpu.vector_store %arg4[%c0_20, %c0_21, %c0_22], %23 {strides = array<i32>} : memref<1x25x16xbf16, #tpu.memory_space<vmem>>, vector<1x25x16xbf16>,
    return
  }
  func.func @transform_0(%arg0: i32) -> (i32, i32, i32, i32) {
    %c0_i32 = arith.constant 0 : i32
    %c0_i32_0 = arith.constant 0 : i32
    %c0_i32_1 = arith.constant 0 : i32
    %c0_i32_2 = arith.constant 0 : i32
    return %c0_i32, %arg0, %c0_i32_0, %c0_i32_1 : i32, i32, i32, i32
  }
  func.func @transform_1(%arg0: i32) -> (i32, i32) {
    %c0_i32 = arith.constant 0 : i32
    %c0_i32_0 = arith.constant 0 : i32
    %c0_i32_1 = arith.constant 0 : i32
    return %c0_i32, %c0_i32_0 : i32, i32
  }
  func.func @transform_2(%arg0: i32) -> (i32, i32) {
    %c0_i32 = arith.constant 0 : i32
    %c0_i32_0 = arith.constant 0 : i32
    %c0_i32_1 = arith.constant 0 : i32
    return %c0_i32, %c0_i32_0 : i32, i32
  }
  func.func @transform_3(%arg0: i32) -> (i32, i32, i32) {
    %c0_i32 = arith.constant 0 : i32
    %c0_i32_0 = arith.constant 0 : i32
    %c0_i32_1 = arith.constant 0 : i32
    return %arg0, %c0_i32, %c0_i32_0 : i32, i32, i32
  }
}

module attributes {stable_mosaic.version = 11 : i64} {
  func.func @_fc3_kernel(%arg0: i32, %arg1: memref<2x400xbf16, #tpu.memory_space<vmem>>, %arg2: memref<400x128xbf16, #tpu.memory_space<vmem>>, %arg3: memref<1x128xf32, #tpu.memory_space<vmem>>, %arg4: memref<128x128xbf16, #tpu.memory_space<vmem>>, %arg5: memref<1x128xf32, #tpu.memory_space<vmem>>, %arg6: memref<128x10xbf16, #tpu.memory_space<vmem>>, %arg7: memref<1x10xf32, #tpu.memory_space<vmem>>, %arg8: memref<2x10xf32, #tpu.memory_space<vmem>>) attributes {dimension_semantics = [#tpu.dimension_semantics<parallel>], iteration_bounds = array<i64: 1>, scalar_prefetch = 0 : i64, scratch_operands = 0 : i64, tpu.core_type = #tpu.core_type<tc>, window_params = [{transform_indices = @transform_0, window_bounds = array<i64: 2, 400>}, {pipeline_mode = #tpu.pipeline_mode<synchronous>, transform_indices = @transform_1, window_bounds = array<i64: 400, 128>}, {pipeline_mode = #tpu.pipeline_mode<synchronous>, transform_indices = @transform_2, window_bounds = array<i64: 1, 128>}, {pipeline_mode = #tpu.pipeline_mode<synchronous>, transform_indices = @transform_3, window_bounds = array<i64: 128, 128>}, {pipeline_mode = #tpu.pipeline_mode<synchronous>, transform_indices = @transform_4, window_bounds = array<i64: 1, 128>}, {pipeline_mode = #tpu.pipeline_mode<synchronous>, transform_indices = @transform_5, window_bounds = array<i64: 128, 10>}, {pipeline_mode = #tpu.pipeline_mode<synchronous>, transform_indices = @transform_6, window_bounds = array<i64: 1, 10>}, {transform_indices = @transform_7, window_bounds = array<i64: 2, 10>}]} {
    %c0 = arith.constant 0 : index
    %c0_0 = arith.constant 0 : index
    %0 = vector.load %arg1[%c0, %c0_0] : memref<2x400xbf16, #tpu.memory_space<vmem>>, vector<2x400xbf16>
    %c0_1 = arith.constant 0 : index
    %c0_2 = arith.constant 0 : index
    %1 = vector.load %arg2[%c0_1, %c0_2] : memref<400x128xbf16, #tpu.memory_space<vmem>>, vector<400x128xbf16>
    %cst = arith.constant dense<0.000000e+00> : vector<2x128xf32>
    %2 = tpu.matmul %0, %1, %cst {dimension_numbers = #tpu.dot_dimension_numbers<[1], [0], [0], [1], [0, 0, 1, 1], [], []>} : vector<2x400xbf16>, vector<400x128xbf16>, vector<2x128xf32> -> vector<2x128xf32>
    %c0_3 = arith.constant 0 : index
    %c0_4 = arith.constant 0 : index
    %3 = vector.load %arg3[%c0_3, %c0_4] : memref<1x128xf32, #tpu.memory_space<vmem>>, vector<1x128xf32>
    %4 = vector.broadcast %3 : vector<1x128xf32> to vector<2x128xf32>
    %5 = arith.addf %2, %4 : vector<2x128xf32>
    %cst_5 = arith.constant 0.000000e+00 : f32
    %6 = vector.broadcast %cst_5 : f32 to vector<2x128xf32>
    %7 = arith.maximumf %5, %6 : vector<2x128xf32>
    %8 = arith.truncf %7 : vector<2x128xf32> to vector<2x128xbf16>
    %c0_6 = arith.constant 0 : index
    %c0_7 = arith.constant 0 : index
    %9 = vector.load %arg4[%c0_6, %c0_7] : memref<128x128xbf16, #tpu.memory_space<vmem>>, vector<128x128xbf16>
    %cst_8 = arith.constant dense<0.000000e+00> : vector<2x128xf32>
    %10 = tpu.matmul %8, %9, %cst_8 {dimension_numbers = #tpu.dot_dimension_numbers<[1], [0], [0], [1], [0, 0, 1, 1], [], []>} : vector<2x128xbf16>, vector<128x128xbf16>, vector<2x128xf32> -> vector<2x128xf32>
    %c0_9 = arith.constant 0 : index
    %c0_10 = arith.constant 0 : index
    %11 = vector.load %arg5[%c0_9, %c0_10] : memref<1x128xf32, #tpu.memory_space<vmem>>, vector<1x128xf32>
    %12 = vector.broadcast %11 : vector<1x128xf32> to vector<2x128xf32>
    %13 = arith.addf %10, %12 : vector<2x128xf32>
    %cst_11 = arith.constant 0.000000e+00 : f32
    %14 = vector.broadcast %cst_11 : f32 to vector<2x128xf32>
    %15 = arith.maximumf %13, %14 : vector<2x128xf32>
    %16 = arith.truncf %15 : vector<2x128xf32> to vector<2x128xbf16>
    %c0_12 = arith.constant 0 : index
    %c0_13 = arith.constant 0 : index
    %17 = vector.load %arg6[%c0_12, %c0_13] : memref<128x10xbf16, #tpu.memory_space<vmem>>, vector<128x10xbf16>
    %cst_14 = arith.constant dense<0.000000e+00> : vector<2x10xf32>
    %18 = tpu.matmul %16, %17, %cst_14 {dimension_numbers = #tpu.dot_dimension_numbers<[1], [0], [0], [1], [0, 0, 1, 1], [], []>} : vector<2x128xbf16>, vector<128x10xbf16>, vector<2x10xf32> -> vector<2x10xf32>
    %c0_15 = arith.constant 0 : index
    %c0_16 = arith.constant 0 : index
    %19 = vector.load %arg7[%c0_15, %c0_16] : memref<1x10xf32, #tpu.memory_space<vmem>>, vector<1x10xf32>
    %20 = vector.broadcast %19 : vector<1x10xf32> to vector<2x10xf32>
    %21 = arith.addf %18, %20 : vector<2x10xf32>
    %c0_17 = arith.constant 0 : index
    %c0_18 = arith.constant 0 : index
    %22 = vector.load %arg8[%c0_17, %c0_18] : memref<2x10xf32, #tpu.memory_space<vmem>>, vector<2x10xf32>
    tpu.vector_store %arg8[%c0_17, %c0_18], %21 {strides = array<i32>} : memref<2x10xf32, #tpu.memory_space<vmem>>, vector<2x10xf32>,
    return
  }
  func.func @transform_0(%arg0: i32) -> (i32, i32) {
    %c0_i32 = arith.constant 0 : i32
    %c0_i32_0 = arith.constant 0 : i32
    return %arg0, %c0_i32 : i32, i32
  }
  func.func @transform_1(%arg0: i32) -> (i32, i32) {
    %c0_i32 = arith.constant 0 : i32
    %c0_i32_0 = arith.constant 0 : i32
    %c0_i32_1 = arith.constant 0 : i32
    return %c0_i32, %c0_i32_0 : i32, i32
  }
  func.func @transform_2(%arg0: i32) -> (i32, i32) {
    %c0_i32 = arith.constant 0 : i32
    %c0_i32_0 = arith.constant 0 : i32
    %c0_i32_1 = arith.constant 0 : i32
    return %c0_i32, %c0_i32_0 : i32, i32
  }
  func.func @transform_3(%arg0: i32) -> (i32, i32) {
    %c0_i32 = arith.constant 0 : i32
    %c0_i32_0 = arith.constant 0 : i32
    %c0_i32_1 = arith.constant 0 : i32
    return %c0_i32, %c0_i32_0 : i32, i32
  }
  func.func @transform_4(%arg0: i32) -> (i32, i32) {
    %c0_i32 = arith.constant 0 : i32
    %c0_i32_0 = arith.constant 0 : i32
    %c0_i32_1 = arith.constant 0 : i32
    return %c0_i32, %c0_i32_0 : i32, i32
  }
  func.func @transform_5(%arg0: i32) -> (i32, i32) {
    %c0_i32 = arith.constant 0 : i32
    %c0_i32_0 = arith.constant 0 : i32
    %c0_i32_1 = arith.constant 0 : i32
    return %c0_i32, %c0_i32_0 : i32, i32
  }
  func.func @transform_6(%arg0: i32) -> (i32, i32) {
    %c0_i32 = arith.constant 0 : i32
    %c0_i32_0 = arith.constant 0 : i32
    %c0_i32_1 = arith.constant 0 : i32
    return %c0_i32, %c0_i32_0 : i32, i32
  }
  func.func @transform_7(%arg0: i32) -> (i32, i32) {
    %c0_i32 = arith.constant 0 : i32
    %c0_i32_0 = arith.constant 0 : i32
    return %arg0, %c0_i32 : i32, i32
  }
}

</mosaic_0001>

<llo_original>
// kernel: cnn_forward.3
$region0: #{cnn_forward.3}
  #allocation0 [shape = 'u32[]', space=smem, size = 0x4, offset = 0x4, fixed_abs, tag = 'smem constant byte address 0x4 - core index']
  #allocation1 [shape = 'u32[144,128]{1,0:T(1,128)}', space=vmem, size = 0x12000, scoped, tag = 'internal scratch']
  %s0 = inlined_call_operand.vmem [shape: bf16[4,2,196,75], index: 0, kind: input, shape index: {}]
  %s1 = inlined_call_operand.vmem [shape: bf16[75,6], index: 1, kind: input, shape index: {}]
  %s2 = inlined_call_operand.vmem [shape: f32[1,6], index: 2, kind: input, shape index: {}]
  %s3 = inlined_call_operand.vmem [shape: bf16[2,196,6], index: 3, kind: output, shape index: {}]
  %s4 = sld [smem:[#allocation0]]
  $region86: #{cnn_forward.3} parent=0
    _
  %s6 = ssub.s32 1, %s4
  %s7 = scalar_select 0, %s6, %s4
  $region1: #{cnn_forward.3} parent=0
    #allocation2 [shape = 'u8[409600]{0}', space=vmem, size = 0x64000, scoped, tag = 'input window, operand 0']
    loop: start=0, step=1, limit=4
    $region2: #{cnn_forward.3} parent=1 // loop_pre_header
      _
    $region3: #{cnn_forward.3} parent=1 // loop_header
      %s9 = sphi 0, %s13
      %p10 = scmp.ge.s32.totalorder %s9, 4
      %s19 = sphi 0, %s21
      %s22 = sphi 0, %s19
      %s23 = sphi 0, %s22
      %s39 = sphi 0, %s23
      %s43 = sphi 0, %s43
      %s45 = sphi 0, %s43
      %s46 = sphi 0, %s45
      %s60 = sphi 0, %s46
      %s64 = sphi 0, %s64
      %s66 = sphi 0, %s64
      %s67 = sphi 0, %s66
      %s81 = sphi 0, %s67
      %s87 = sphi 0, %s89
      %s90 = sphi 0, %s87
      %s91 = sphi 0, %s90
      %s107 = sphi 0, %s91
    $region4: #{cnn_forward.3} parent=1 // loop_header_branch
      %12 = sbr.rel (%p10) target = $region8
    $region5: #{cnn_forward.3} parent=1 // loop_body
      %s14 = ssub.s32 %s9, 1
      %s15 = ssub.s32 %s9, 2
      %s16 = sadd.s32 %s9, 1
      %s17 = ssub.s32 %s9, %s16
      %p18 = scmp.eq.s32.totalorder %s17, 0
      %s20 = sadd.s32 %s19, 1
      %s21 = scalar_select %p18, %s19, %s20
      %p24 = pneg %p18
      %p25 = scmp.eq.s32.totalorder %s9, 1
      %p26 = por %p24, %p25
      %p27 = scmp.ne.s32.totalorder %s19, %s22
      %p28 = scmp.eq.s32.totalorder %s9, 0
      %p29 = por %p27, %p28
      %p30 = scmp.ne.s32.totalorder %s19, %s22
      %p31 = scmp.eq.s32.totalorder %s14, 1
      %p32 = por %p30, %p31
      %p33 = scmp.ne.s32.totalorder %s22, %s23
      %p34 = scmp.eq.s32.totalorder %s14, 0
      %p35 = por %p33, %p34
      %p36 = scmp.ne.s32.totalorder %s22, %s23
      %p37 = scmp.eq.s32.totalorder %s15, 1
      %p38 = por %p36, %p37
      %p40 = scmp.ne.s32.totalorder %s23, %s39
      %p41 = scmp.eq.s32.totalorder %s15, 0
      %p42 = por %p40, %p41
      %s44 = sadd.s32 %s43, 1
      %p47 = scmp.eq.s32.totalorder %s9, 1
      %p48 = scmp.ne.s32.totalorder %s43, %s45
      %p49 = scmp.eq.s32.totalorder %s9, 0
      %p50 = por %p48, %p49
      %p51 = scmp.ne.s32.totalorder %s43, %s45
      %p52 = scmp.eq.s32.totalorder %s14, 1
      %p53 = por %p51, %p52
      %p54 = scmp.ne.s32.totalorder %s45, %s46
      %p55 = scmp.eq.s32.totalorder %s14, 0
      %p56 = por %p54, %p55
      %p57 = scmp.ne.s32.totalorder %s45, %s46
      %p58 = scmp.eq.s32.totalorder %s15, 1
      %p59 = por %p57, %p58
      %p61 = scmp.ne.s32.totalorder %s46, %s60
      %p62 = scmp.eq.s32.totalorder %s15, 0
      %p63 = por %p61, %p62
      %s65 = sadd.s32 %s64, 1
      %p68 = scmp.eq.s32.totalorder %s9, 1
      %p69 = scmp.ne.s32.totalorder %s64, %s66
      %p70 = scmp.eq.s32.totalorder %s9, 0
      %p71 = por %p69, %p70
      %p72 = scmp.ne.s32.totalorder %s64, %s66
      %p73 = scmp.eq.s32.totalorder %s14, 1
      %p74 = por %p72, %p73
      %p75 = scmp.ne.s32.totalorder %s66, %s67
      %p76 = scmp.eq.s32.totalorder %s14, 0
      %p77 = por %p75, %p76
      %p78 = scmp.ne.s32.totalorder %s66, %s67
      %p79 = scmp.eq.s32.totalorder %s15, 1
      %p80 = por %p78, %p79
      %p82 = scmp.ne.s32.totalorder %s67, %s81
      %p83 = scmp.eq.s32.totalorder %s15, 0
      %p84 = por %p82, %p83
      %s85 = ssub.s32 %s9, %s16
      %p86 = scmp.eq.s32.totalorder %s85, 0
      %s88 = sadd.s32 %s87, 1
      %s89 = scalar_select %p86, %s87, %s88
      %p92 = pneg %p86
      %p93 = scmp.eq.s32.totalorder %s9, 1
      %p94 = por %p92, %p93
      %p95 = scmp.ne.s32.totalorder %s87, %s90
      %p96 = scmp.eq.s32.totalorder %s9, 0
      %p97 = por %p95, %p96
      %p98 = scmp.ne.s32.totalorder %s87, %s90
      %p99 = scmp.eq.s32.totalorder %s14, 1
      %p100 = por %p98, %p99
      %p101 = scmp.ne.s32.totalorder %s90, %s91
      %p102 = scmp.eq.s32.totalorder %s14, 0
      %p103 = por %p101, %p102
      %p104 = scmp.ne.s32.totalorder %s90, %s91
      %p105 = scmp.eq.s32.totalorder %s15, 1
      %p106 = por %p104, %p105
      %p108 = scmp.ne.s32.totalorder %s91, %s107
      %p109 = scmp.eq.s32.totalorder %s15, 0
      %p110 = por %p108, %p109
      %p111 = scmp.le.s32.totalorder 1, %s9
      %p112 = scmp.lt.s32.totalorder %s9, 3
      %p113 = pnand %p111, %p112
      %p114 = pneg %p113
      // Predicated region
      $region9: #{cnn_forward.3} parent=5 // pred_check
        _
      $region10: #{cnn_forward.3} parent=5 // pred_check_branch
        %116 = sbr.rel (%p113) target = $region12
      $region11: #{cnn_forward.3} parent=5 // pred_region
        %s117 = ssub.s32 %s9, 1
        // Predicated region
        $region13: #{cnn_forward.3} parent=11 // pred_check
          %p118 = pneg %p56
        $region14: #{cnn_forward.3} parent=11 // pred_check_branch
          %120 = sbr.rel (%p118) target = $region16
        $region15: #{cnn_forward.3} parent=11 // pred_region
          _
        $region16: #{cnn_forward.3} parent=11 // pred_fallthru
          _
        // Predicated region
        $region17: #{cnn_forward.3} parent=11 // pred_check
          %p121 = pneg %p77
        $region18: #{cnn_forward.3} parent=11 // pred_check_branch
          %123 = sbr.rel (%p121) target = $region20
        $region19: #{cnn_forward.3} parent=11 // pred_region
          _
        $region20: #{cnn_forward.3} parent=11 // pred_fallthru
          _
      $region12: #{cnn_forward.3} parent=5 // pred_fallthru
        _
      %p124 = scmp.lt.s32.totalorder %s9, 2
      // Predicated region
      $region21: #{cnn_forward.3} parent=5 // pred_check
        %p125 = pneg %p124
      $region22: #{cnn_forward.3} parent=5 // pred_check_branch
        %127 = sbr.rel (%p125) target = $region24
      $region23: #{cnn_forward.3} parent=5 // pred_region
        // Predicated region
        $region25: #{cnn_forward.3} parent=23 // pred_check
          %p128 = pneg %p29
        $region26: #{cnn_forward.3} parent=23 // pred_check_branch
          %130 = sbr.rel (%p128) target = $region28
        $region27: #{cnn_forward.3} parent=23 // pred_region
          %s131 = sand.u32 %s19, 1
          %s132 = sand.u32 %s19, 1
          %s133 = smul.addr %s132, 400
          %s134 = scalar_lea.vmem [#allocation2], %s133
          %s135 = smul.addr %s9, 25
          %s136 = smul.addr %s135, 4
          %s137 = scalar_lea.vmem %s0, %s136
          // Predicated region
          $region29: #{cnn_forward.3} parent=27 // pred_check
            _
          $region30: #{cnn_forward.3} parent=27 // pred_check_branch
            %139 = sbr.rel (0) target = $region32
          $region31: #{cnn_forward.3} parent=27 // pred_region
            // Predicated region
            $region33: #{cnn_forward.3} parent=31 // pred_check
              _
            $region34: #{cnn_forward.3} parent=31 // pred_check_branch
              %141 = sbr.rel target = $region36
            $region35: #{cnn_forward.3} parent=31 // pred_region
              // Predicated region
              $region48: #{cnn_forward.3} parent=35 // pred_check
                _
              $region49: #{cnn_forward.3} parent=35 // pred_check_branch
                %354 = sbr.rel (0) target = $region51
              $region50: #{cnn_forward.3} parent=35 // pred_region
                loop: start=0, step=1, limit=1
                $region52: #{cnn_forward.3} parent=50 // loop_pre_header
                  _
                $region53: #{cnn_forward.3} parent=50 // loop_header
                  %s356 = sphi 0, %s360
                  %p357 = scmp.ge.s32.totalorder %s356, 1
                  %s361 = sphi %s137, %s137
                  %s362 = sphi %s134, %s134
                $region54: #{cnn_forward.3} parent=50 // loop_header_branch
                  %359 = sbr.rel (%p357) target = $region58
                $region55: #{cnn_forward.3} parent=50 // loop_body
                  _
                $region56: #{cnn_forward.3} parent=50 // loop_footer
                  %s360 = sadd.s32 1, %s356
                $region57: #{cnn_forward.3} parent=50 // loop_footer_branch
                  %355 = sbr.rel target = $region53
                $region58: #{cnn_forward.3} parent=50 // loop_exit
                  _
                loop: start=0, step=1, limit=1
                $region59: #{cnn_forward.3} parent=50 // loop_pre_header
                  _
                $region60: #{cnn_forward.3} parent=50 // loop_header
                  %s365 = sphi 0, %s369
                  %p366 = scmp.ge.s32.totalorder %s365, 1
                  %s370 = sphi %s137, %s137
                  %s371 = sphi %s134, %s134
                $region61: #{cnn_forward.3} parent=50 // loop_header_branch
                  %368 = sbr.rel (%p366) target = $region65
                $region62: #{cnn_forward.3} parent=50 // loop_body
                  %v372 = vld [vmem:[%s370] sm:$0xf]
                  %373 = vst [vmem:[%s371] sm:$0xf] %v372
                  %v374 = vld [vmem:[%s370 + $0x4] sm:$0xf]
                  %375 = vst [vmem:[%s371 + $0x4] sm:$0xf] %v374
                  %v376 = vld [vmem:[%s370 + $0x8] sm:$0xf]
                  %377 = vst [vmem:[%s371 + $0x8] sm:$0xf] %v376
                  %v378 = vld [vmem:[%s370 + $0xc] sm:$0xf]
                  %379 = vst [vmem:[%s371 + $0xc] sm:$0xf] %v378
                  %v380 = vld [vmem:[%s370 + $0x10] sm:$0xf]
                  %381 = vst [vmem:[%s371 + $0x10] sm:$0xf] %v380
                  %v382 = vld [vmem:[%s370 + $0x14] sm:$0xf]
                  %383 = vst [vmem:[%s371 + $0x14] sm:$0xf] %v382
                  %v384 = vld [vmem:[%s370 + $0x18] sm:$0xf]
                  %385 = vst [vmem:[%s371 + $0x18] sm:$0xf] %v384
                  %v386 = vld [vmem:[%s370 + $0x1c] sm:$0xf]
                  %387 = vst [vmem:[%s371 + $0x1c] sm:$0xf] %v386
                  %v388 = vld [vmem:[%s370 + $0x20] sm:$0xf]
                  %389 = vst [vmem:[%s371 + $0x20] sm:$0xf] %v388
                  %v390 = vld [vmem:[%s370 + $0x24] sm:$0xf]
                  %391 = vst [vmem:[%s371 + $0x24] sm:$0xf] %v390
                  %v392 = vld [vmem:[%s370 + $0x28] sm:$0xf]
                  %393 = vst [vmem:[%s371 + $0x28] sm:$0xf] %v392
                  %v394 = vld [vmem:[%s370 + $0x2c] sm:$0xf]
                  %395 = vst [vmem:[%s371 + $0x2c] sm:$0xf] %v394
                  %v396 = vld [vmem:[%s370 + $0x30] sm:$0xf]
                  %397 = vst [vmem:[%s371 + $0x30] sm:$0xf] %v396
                  %v398 = vld [vmem:[%s370 + $0x34] sm:$0xf]
                  %399 = vst [vmem:[%s371 + $0x34] sm:$0xf] %v398
                  %v400 = vld [vmem:[%s370 + $0x38] sm:$0xf]
                  %401 = vst [vmem:[%s371 + $0x38] sm:$0xf] %v400
                  %v402 = vld [vmem:[%s370 + $0x3c] sm:$0xf]
                  %403 = vst [vmem:[%s371 + $0x3c] sm:$0xf] %v402
                  %v404 = vld [vmem:[%s370 + $0x40] sm:$0xf]
                  %405 = vst [vmem:[%s371 + $0x40] sm:$0xf] %v404
                  %v406 = vld [vmem:[%s370 + $0x44] sm:$0xf]
                  %407 = vst [vmem:[%s371 + $0x44] sm:$0xf] %v406
                  %v408 = vld [vmem:[%s370 + $0x48] sm:$0xf]
                  %409 = vst [vmem:[%s371 + $0x48] sm:$0xf] %v408
                  %v410 = vld [vmem:[%s370 + $0x4c] sm:$0xf]
                  %411 = vst [vmem:[%s371 + $0x4c] sm:$0xf] %v410
                  %v412 = vld [vmem:[%s370 + $0x50] sm:$0xf]
                  %413 = vst [vmem:[%s371 + $0x50] sm:$0xf] %v412
                  %v414 = vld [vmem:[%s370 + $0x54] sm:$0xf]
                  %415 = vst [vmem:[%s371 + $0x54] sm:$0xf] %v414
                  %v416 = vld [vmem:[%s370 + $0x58] sm:$0xf]
                  %417 = vst [vmem:[%s371 + $0x58] sm:$0xf] %v416
                  %v418 = vld [vmem:[%s370 + $0x5c] sm:$0xf]
                  %419 = vst [vmem:[%s371 + $0x5c] sm:$0xf] %v418
                  %v420 = vld [vmem:[%s370 + $0x60] sm:$0xf]
                  %421 = vst [vmem:[%s371 + $0x60] sm:$0xf] %v420
                  %v422 = vld [vmem:[%s370 + $0xc8] sm:$0xf]
                  %423 = vst [vmem:[%s371 + $0x64] sm:$0xf] %v422
                  %v424 = vld [vmem:[%s370 + $0xcc] sm:$0xf]
                  %425 = vst [vmem:[%s371 + $0x68] sm:$0xf] %v424
                  %v426 = vld [vmem:[%s370 + $0xd0] sm:$0xf]
                  %427 = vst [vmem:[%s371 + $0x6c] sm:$0xf] %v426
                  %v428 = vld [vmem:[%s370 + $0xd4] sm:$0xf]
                  %429 = vst [vmem:[%s371 + $0x70] sm:$0xf] %v428
                  %v430 = vld [vmem:[%s370 + $0xd8] sm:$0xf]
                  %431 = vst [vmem:[%s371 + $0x74] sm:$0xf] %v430
                  %v432 = vld [vmem:[%s370 + $0xdc] sm:$0xf]
                  %433 = vst [vmem:[%s371 + $0x78] sm:$0xf] %v432
                  %v434 = vld [vmem:[%s370 + $0xe0] sm:$0xf]
                  %435 = vst [vmem:[%s371 + $0x7c] sm:$0xf] %v434
                  %v436 = vld [vmem:[%s370 + $0xe4] sm:$0xf]
                  %437 = vst [vmem:[%s371 + $0x80] sm:$0xf] %v436
                  %v438 = vld [vmem:[%s370 + $0xe8] sm:$0xf]
                  %439 = vst [vmem:[%s371 + $0x84] sm:$0xf] %v438
                  %v440 = vld [vmem:[%s370 + $0xec] sm:$0xf]
                  %441 = vst [vmem:[%s371 + $0x88] sm:$0xf] %v440
                  %v442 = vld [vmem:[%s370 + $0xf0] sm:$0xf]
                  %443 = vst [vmem:[%s371 + $0x8c] sm:$0xf] %v442
                  %v444 = vld [vmem:[%s370 + $0xf4] sm:$0xf]
                  %445 = vst [vmem:[%s371 + $0x90] sm:$0xf] %v444
                  %v446 = vld [vmem:[%s370 + $0xf8] sm:$0xf]
                  %447 = vst [vmem:[%s371 + $0x94] sm:$0xf] %v446
                  %v448 = vld [vmem:[%s370 + $0xfc] sm:$0xf]
                  %449 = vst [vmem:[%s371 + $0x98] sm:$0xf] %v448
                  %v450 = vld [vmem:[%s370 + $0x100] sm:$0xf]
                  %451 = vst [vmem:[%s371 + $0x9c] sm:$0xf] %v450
                  %v452 = vld [vmem:[%s370 + $0x104] sm:$0xf]
                  %453 = vst [vmem:[%s371 + $0xa0] sm:$0xf] %v452
                  %v454 = vld [vmem:[%s370 + $0x108] sm:$0xf]
                  %455 = vst [vmem:[%s371 + $0xa4] sm:$0xf] %v454
                  %v456 = vld [vmem:[%s370 + $0x10c] sm:$0xf]
                  %457 = vst [vmem:[%s371 + $0xa8] sm:$0xf] %v456
                  %v458 = vld [vmem:[%s370 + $0x110] sm:$0xf]
                  %459 = vst [vmem:[%s371 + $0xac] sm:$0xf] %v458
                  %v460 = vld [vmem:[%s370 + $0x114] sm:$0xf]
                  %461 = vst [vmem:[%s371 + $0xb0] sm:$0xf] %v460
                  %v462 = vld [vmem:[%s370 + $0x118] sm:$0xf]
                  %463 = vst [vmem:[%s371 + $0xb4] sm:$0xf] %v462
                  %v464 = vld [vmem:[%s370 + $0x11c] sm:$0xf]
                  %465 = vst [vmem:[%s371 + $0xb8] sm:$0xf] %v464
                  %v466 = vld [vmem:[%s370 + $0x120] sm:$0xf]
                  %467 = vst [vmem:[%s371 + $0xbc] sm:$0xf] %v466
                  %v468 = vld [vmem:[%s370 + $0x124] sm:$0xf]
                  %469 = vst [vmem:[%s371 + $0xc0] sm:$0xf] %v468
                  %v470 = vld [vmem:[%s370 + $0x128] sm:$0xf]
                  %471 = vst [vmem:[%s371 + $0xc4] sm:$0xf] %v470
                  %v472 = vld [vmem:[%s370 + $0x190] sm:$0xf]
                  %473 = vst [vmem:[%s371 + $0xc8] sm:$0xf] %v472
                  %v474 = vld [vmem:[%s370 + $0x194] sm:$0xf]
                  %475 = vst [vmem:[%s371 + $0xcc] sm:$0xf] %v474
                  %v476 = vld [vmem:[%s370 + $0x198] sm:$0xf]
                  %477 = vst [vmem:[%s371 + $0xd0] sm:$0xf] %v476
                  %v478 = vld [vmem:[%s370 + $0x19c] sm:$0xf]
                  %479 = vst [vmem:[%s371 + $0xd4] sm:$0xf] %v478
                  %v480 = vld [vmem:[%s370 + $0x1a0] sm:$0xf]
                  %481 = vst [vmem:[%s371 + $0xd8] sm:$0xf] %v480
                  %v482 = vld [vmem:[%s370 + $0x1a4] sm:$0xf]
                  %483 = vst [vmem:[%s371 + $0xdc] sm:$0xf] %v482
                  %v484 = vld [vmem:[%s370 + $0x1a8] sm:$0xf]
                  %485 = vst [vmem:[%s371 + $0xe0] sm:$0xf] %v484
                  %v486 = vld [vmem:[%s370 + $0x1ac] sm:$0xf]
                  %487 = vst [vmem:[%s371 + $0xe4] sm:$0xf] %v486
                  %v488 = vld [vmem:[%s370 + $0x1b0] sm:$0xf]
                  %489 = vst [vmem:[%s371 + $0xe8] sm:$0xf] %v488
                  %v490 = vld [vmem:[%s370 + $0x1b4] sm:$0xf]
                  %491 = vst [vmem:[%s371 + $0xec] sm:$0xf] %v490
                  %v492 = vld [vmem:[%s370 + $0x1b8] sm:$0xf]
                  %493 = vst [vmem:[%s371 + $0xf0] sm:$0xf] %v492
                  %v494 = vld [vmem:[%s370 + $0x1bc] sm:$0xf]
                  %495 = vst [vmem:[%s371 + $0xf4] sm:$0xf] %v494
                  %v496 = vld [vmem:[%s370 + $0x1c0] sm:$0xf]
                  %497 = vst [vmem:[%s371 + $0xf8] sm:$0xf] %v496
                  %v498 = vld [vmem:[%s370 + $0x1c4] sm:$0xf]
                  %499 = vst [vmem:[%s371 + $0xfc] sm:$0xf] %v498
                  %v500 = vld [vmem:[%s370 + $0x1c8] sm:$0xf]
                  %501 = vst [vmem:[%s371 + $0x100] sm:$0xf] %v500
                  %v502 = vld [vmem:[%s370 + $0x1cc] sm:$0xf]
                  %503 = vst [vmem:[%s371 + $0x104] sm:$0xf] %v502
                  %v504 = vld [vmem:[%s370 + $0x1d0] sm:$0xf]
                  %505 = vst [vmem:[%s371 + $0x108] sm:$0xf] %v504
                  %v506 = vld [vmem:[%s370 + $0x1d4] sm:$0xf]
                  %507 = vst [vmem:[%s371 + $0x10c] sm:$0xf] %v506
                  %v508 = vld [vmem:[%s370 + $0x1d8] sm:$0xf]
                  %509 = vst [vmem:[%s371 + $0x110] sm:$0xf] %v508
                  %v510 = vld [vmem:[%s370 + $0x1dc] sm:$0xf]
                  %511 = vst [vmem:[%s371 + $0x114] sm:$0xf] %v510
                  %v512 = vld [vmem:[%s370 + $0x1e0] sm:$0xf]
                  %513 = vst [vmem:[%s371 + $0x118] sm:$0xf] %v512
                  %v514 = vld [vmem:[%s370 + $0x1e4] sm:$0xf]
                  %515 = vst [vmem:[%s371 + $0x11c] sm:$0xf] %v514
                  %v516 = vld [vmem:[%s370 + $0x1e8] sm:$0xf]
                  %517 = vst [vmem:[%s371 + $0x120] sm:$0xf] %v516
                  %v518 = vld [vmem:[%s370 + $0x1ec] sm:$0xf]
                  %519 = vst [vmem:[%s371 + $0x124] sm:$0xf] %v518
                  %v520 = vld [vmem:[%s370 + $0x1f0] sm:$0xf]
                  %521 = vst [vmem:[%s371 + $0x128] sm:$0xf] %v520
                  %v522 = vld [vmem:[%s370 + $0x258] sm:$0xf]
                  %523 = vst [vmem:[%s371 + $0x12c] sm:$0xf] %v522
                  %v524 = vld [vmem:[%s370 + $0x25c] sm:$0xf]
                  %525 = vst [vmem:[%s371 + $0x130] sm:$0xf] %v524
                  %v526 = vld [vmem:[%s370 + $0x260] sm:$0xf]
                  %527 = vst [vmem:[%s371 + $0x134] sm:$0xf] %v526
                  %v528 = vld [vmem:[%s370 + $0x264] sm:$0xf]
                  %529 = vst [vmem:[%s371 + $0x138] sm:$0xf] %v528
                  %v530 = vld [vmem:[%s370 + $0x268] sm:$0xf]
                  %531 = vst [vmem:[%s371 + $0x13c] sm:$0xf] %v530
                  %v532 = vld [vmem:[%s370 + $0x26c] sm:$0xf]
                  %533 = vst [vmem:[%s371 + $0x140] sm:$0xf] %v532
                  %v534 = vld [vmem:[%s370 + $0x270] sm:$0xf]
                  %535 = vst [vmem:[%s371 + $0x144] sm:$0xf] %v534
                  %v536 = vld [vmem:[%s370 + $0x274] sm:$0xf]
                  %537 = vst [vmem:[%s371 + $0x148] sm:$0xf] %v536
                  %v538 = vld [vmem:[%s370 + $0x278] sm:$0xf]
                  %539 = vst [vmem:[%s371 + $0x14c] sm:$0xf] %v538
                  %v540 = vld [vmem:[%s370 + $0x27c] sm:$0xf]
                  %541 = vst [vmem:[%s371 + $0x150] sm:$0xf] %v540
                  %v542 = vld [vmem:[%s370 + $0x280] sm:$0xf]
                  %543 = vst [vmem:[%s371 + $0x154] sm:$0xf] %v542
                  %v544 = vld [vmem:[%s370 + $0x284] sm:$0xf]
                  %545 = vst [vmem:[%s371 + $0x158] sm:$0xf] %v544
                  %v546 = vld [vmem:[%s370 + $0x288] sm:$0xf]
                  %547 = vst [vmem:[%s371 + $0x15c] sm:$0xf] %v546
                  %v548 = vld [vmem:[%s370 + $0x28c] sm:$0xf]
                  %549 = vst [vmem:[%s371 + $0x160] sm:$0xf] %v548
                  %v550 = vld [vmem:[%s370 + $0x290] sm:$0xf]
                  %551 = vst [vmem:[%s371 + $0x164] sm:$0xf] %v550
                  %v552 = vld [vmem:[%s370 + $0x294] sm:$0xf]
                  %553 = vst [vmem:[%s371 + $0x168] sm:$0xf] %v552
                  %v554 = vld [vmem:[%s370 + $0x298] sm:$0xf]
                  %555 = vst [vmem:[%s371 + $0x16c] sm:$0xf] %v554
                  %v556 = vld [vmem:[%s370 + $0x29c] sm:$0xf]
                  %557 = vst [vmem:[%s371 + $0x170] sm:$0xf] %v556
                  %v558 = vld [vmem:[%s370 + $0x2a0] sm:$0xf]
                  %559 = vst [vmem:[%s371 + $0x174] sm:$0xf] %v558
                  %v560 = vld [vmem:[%s370 + $0x2a4] sm:$0xf]
                  %561 = vst [vmem:[%s371 + $0x178] sm:$0xf] %v560
                  %v562 = vld [vmem:[%s370 + $0x2a8] sm:$0xf]
                  %563 = vst [vmem:[%s371 + $0x17c] sm:$0xf] %v562
                  %v564 = vld [vmem:[%s370 + $0x2ac] sm:$0xf]
                  %565 = vst [vmem:[%s371 + $0x180] sm:$0xf] %v564
                  %v566 = vld [vmem:[%s370 + $0x2b0] sm:$0xf]
                  %567 = vst [vmem:[%s371 + $0x184] sm:$0xf] %v566
                  %v568 = vld [vmem:[%s370 + $0x2b4] sm:$0xf]
                  %569 = vst [vmem:[%s371 + $0x188] sm:$0xf] %v568
                  %v570 = vld [vmem:[%s370 + $0x2b8] sm:$0xf]
                  %571 = vst [vmem:[%s371 + $0x18c] sm:$0xf] %v570
                $region63: #{cnn_forward.3} parent=50 // loop_footer
                  %s369 = sadd.s32 1, %s365
                $region64: #{cnn_forward.3} parent=50 // loop_footer_branch
                  %364 = sbr.rel target = $region60
                $region65: #{cnn_forward.3} parent=50 // loop_exit
                  _
              $region51: #{cnn_forward.3} parent=35 // pred_fallthru
                _
            $region36: #{cnn_forward.3} parent=31 // pred_fallthru
              _
            // Predicated region
            $region37: #{cnn_forward.3} parent=31 // pred_check
              _
            $region38: #{cnn_forward.3} parent=31 // pred_check_branch
              %143 = sbr.rel (0) target = $region40
            $region39: #{cnn_forward.3} parent=31 // pred_region
              loop: start=0, step=1, limit=1
              $region41: #{cnn_forward.3} parent=39 // loop_pre_header
                _
              $region42: #{cnn_forward.3} parent=39 // loop_header
                %s146 = sphi 0, %s150
                %p147 = scmp.ge.s32.totalorder %s146, 1
                %s151 = sphi %s137, %s137
                %s152 = sphi %s134, %s134
              $region43: #{cnn_forward.3} parent=39 // loop_header_branch
                %149 = sbr.rel (%p147) target = $region47
              $region44: #{cnn_forward.3} parent=39 // loop_body
                %v153 = vld [vmem:[%s151] sm:$0xf]
                %154 = vst [vmem:[%s152] sm:$0xf] %v153
                %v155 = vld [vmem:[%s151 + $0x4] sm:$0xf]
                %156 = vst [vmem:[%s152 + $0x4] sm:$0xf] %v155
                %v157 = vld [vmem:[%s151 + $0x8] sm:$0xf]
                %158 = vst [vmem:[%s152 + $0x8] sm:$0xf] %v157
                %v159 = vld [vmem:[%s151 + $0xc] sm:$0xf]
                %160 = vst [vmem:[%s152 + $0xc] sm:$0xf] %v159
                %v161 = vld [vmem:[%s151 + $0x10] sm:$0xf]
                %162 = vst [vmem:[%s152 + $0x10] sm:$0xf] %v161
                %v163 = vld [vmem:[%s151 + $0x14] sm:$0xf]
                %164 = vst [vmem:[%s152 + $0x14] sm:$0xf] %v163
                %v165 = vld [vmem:[%s151 + $0x18] sm:$0xf]
                %166 = vst [vmem:[%s152 + $0x18] sm:$0xf] %v165
                %v167 = vld [vmem:[%s151 + $0x1c] sm:$0xf]
                %168 = vst [vmem:[%s152 + $0x1c] sm:$0xf] %v167
                %v169 = vld [vmem:[%s151 + $0x20] sm:$0xf]
                %170 = vst [vmem:[%s152 + $0x20] sm:$0xf] %v169
                %v171 = vld [vmem:[%s151 + $0x24] sm:$0xf]
                %172 = vst [vmem:[%s152 + $0x24] sm:$0xf] %v171
                %v173 = vld [vmem:[%s151 + $0x28] sm:$0xf]
                %174 = vst [vmem:[%s152 + $0x28] sm:$0xf] %v173
                %v175 = vld [vmem:[%s151 + $0x2c] sm:$0xf]
                %176 = vst [vmem:[%s152 + $0x2c] sm:$0xf] %v175
                %v177 = vld [vmem:[%s151 + $0x30] sm:$0xf]
                %178 = vst [vmem:[%s152 + $0x30] sm:$0xf] %v177
                %v179 = vld [vmem:[%s151 + $0x34] sm:$0xf]
                %180 = vst [vmem:[%s152 + $0x34] sm:$0xf] %v179
                %v181 = vld [vmem:[%s151 + $0x38] sm:$0xf]
                %182 = vst [vmem:[%s152 + $0x38] sm:$0xf] %v181
                %v183 = vld [vmem:[%s151 + $0x3c] sm:$0xf]
                %184 = vst [vmem:[%s152 + $0x3c] sm:$0xf] %v183
                %v185 = vld [vmem:[%s151 + $0x40] sm:$0xf]
                %186 = vst [vmem:[%s152 + $0x40] sm:$0xf] %v185
                %v187 = vld [vmem:[%s151 + $0x44] sm:$0xf]
                %188 = vst [vmem:[%s152 + $0x44] sm:$0xf] %v187
                %v189 = vld [vmem:[%s151 + $0x48] sm:$0xf]
                %190 = vst [vmem:[%s152 + $0x48] sm:$0xf] %v189
                %v191 = vld [vmem:[%s151 + $0x4c] sm:$0xf]
                %192 = vst [vmem:[%s152 + $0x4c] sm:$0xf] %v191
                %v193 = vld [vmem:[%s151 + $0x50] sm:$0xf]
                %194 = vst [vmem:[%s152 + $0x50] sm:$0xf] %v193
                %v195 = vld [vmem:[%s151 + $0x54] sm:$0xf]
                %196 = vst [vmem:[%s152 + $0x54] sm:$0xf] %v195
                %v197 = vld [vmem:[%s151 + $0x58] sm:$0xf]
                %198 = vst [vmem:[%s152 + $0x58] sm:$0xf] %v197
                %v199 = vld [vmem:[%s151 + $0x5c] sm:$0xf]
                %200 = vst [vmem:[%s152 + $0x5c] sm:$0xf] %v199
                %v201 = vld [vmem:[%s151 + $0x60] sm:$0xf]
                %202 = vst [vmem:[%s152 + $0x60] sm:$0xf] %v201
                %v203 = vld [vmem:[%s151 + $0xc8] sm:$0xf]
                %204 = vst [vmem:[%s152 + $0x64] sm:$0xf] %v203
                %v205 = vld [vmem:[%s151 + $0xcc] sm:$0xf]
                %206 = vst [vmem:[%s152 + $0x68] sm:$0xf] %v205
                %v207 = vld [vmem:[%s151 + $0xd0] sm:$0xf]
                %208 = vst [vmem:[%s152 + $0x6c] sm:$0xf] %v207
                %v209 = vld [vmem:[%s151 + $0xd4] sm:$0xf]
                %210 = vst [vmem:[%s152 + $0x70] sm:$0xf] %v209
                %v211 = vld [vmem:[%s151 + $0xd8] sm:$0xf]
                %212 = vst [vmem:[%s152 + $0x74] sm:$0xf] %v211
                %v213 = vld [vmem:[%s151 + $0xdc] sm:$0xf]
                %214 = vst [vmem:[%s152 + $0x78] sm:$0xf] %v213
                %v215 = vld [vmem:[%s151 + $0xe0] sm:$0xf]
                %216 = vst [vmem:[%s152 + $0x7c] sm:$0xf] %v215
                %v217 = vld [vmem:[%s151 + $0xe4] sm:$0xf]
                %218 = vst [vmem:[%s152 + $0x80] sm:$0xf] %v217
                %v219 = vld [vmem:[%s151 + $0xe8] sm:$0xf]
                %220 = vst [vmem:[%s152 + $0x84] sm:$0xf] %v219
                %v221 = vld [vmem:[%s151 + $0xec] sm:$0xf]
                %222 = vst [vmem:[%s152 + $0x88] sm:$0xf] %v221
                %v223 = vld [vmem:[%s151 + $0xf0] sm:$0xf]
                %224 = vst [vmem:[%s152 + $0x8c] sm:$0xf] %v223
                %v225 = vld [vmem:[%s151 + $0xf4] sm:$0xf]
                %226 = vst [vmem:[%s152 + $0x90] sm:$0xf] %v225
                %v227 = vld [vmem:[%s151 + $0xf8] sm:$0xf]
                %228 = vst [vmem:[%s152 + $0x94] sm:$0xf] %v227
                %v229 = vld [vmem:[%s151 + $0xfc] sm:$0xf]
                %230 = vst [vmem:[%s152 + $0x98] sm:$0xf] %v229
                %v231 = vld [vmem:[%s151 + $0x100] sm:$0xf]
                %232 = vst [vmem:[%s152 + $0x9c] sm:$0xf] %v231
                %v233 = vld [vmem:[%s151 + $0x104] sm:$0xf]
                %234 = vst [vmem:[%s152 + $0xa0] sm:$0xf] %v233
                %v235 = vld [vmem:[%s151 + $0x108] sm:$0xf]
                %236 = vst [vmem:[%s152 + $0xa4] sm:$0xf] %v235
                %v237 = vld [vmem:[%s151 + $0x10c] sm:$0xf]
                %238 = vst [vmem:[%s152 + $0xa8] sm:$0xf] %v237
                %v239 = vld [vmem:[%s151 + $0x110] sm:$0xf]
                %240 = vst [vmem:[%s152 + $0xac] sm:$0xf] %v239
                %v241 = vld [vmem:[%s151 + $0x114] sm:$0xf]
                %242 = vst [vmem:[%s152 + $0xb0] sm:$0xf] %v241
                %v243 = vld [vmem:[%s151 + $0x118] sm:$0xf]
                %244 = vst [vmem:[%s152 + $0xb4] sm:$0xf] %v243
                %v245 = vld [vmem:[%s151 + $0x11c] sm:$0xf]
                %246 = vst [vmem:[%s152 + $0xb8] sm:$0xf] %v245
                %v247 = vld [vmem:[%s151 + $0x120] sm:$0xf]
                %248 = vst [vmem:[%s152 + $0xbc] sm:$0xf] %v247
                %v249 = vld [vmem:[%s151 + $0x124] sm:$0xf]
                %250 = vst [vmem:[%s152 + $0xc0] sm:$0xf] %v249
                %v251 = vld [vmem:[%s151 + $0x128] sm:$0xf]
                %252 = vst [vmem:[%s152 + $0xc4] sm:$0xf] %v251
                %v253 = vld [vmem:[%s151 + $0x190] sm:$0xf]
                %254 = vst [vmem:[%s152 + $0xc8] sm:$0xf] %v253
                %v255 = vld [vmem:[%s151 + $0x194] sm:$0xf]
                %256 = vst [vmem:[%s152 + $0xcc] sm:$0xf] %v255
                %v257 = vld [vmem:[%s151 + $0x198] sm:$0xf]
                %258 = vst [vmem:[%s152 + $0xd0] sm:$0xf] %v257
                %v259 = vld [vmem:[%s151 + $0x19c] sm:$0xf]
                %260 = vst [vmem:[%s152 + $0xd4] sm:$0xf] %v259
                %v261 = vld [vmem:[%s151 + $0x1a0] sm:$0xf]
                %262 = vst [vmem:[%s152 + $0xd8] sm:$0xf] %v261
                %v263 = vld [vmem:[%s151 + $0x1a4] sm:$0xf]
                %264 = vst [vmem:[%s152 + $0xdc] sm:$0xf] %v263
                %v265 = vld [vmem:[%s151 + $0x1a8] sm:$0xf]
                %266 = vst [vmem:[%s152 + $0xe0] sm:$0xf] %v265
                %v267 = vld [vmem:[%s151 + $0x1ac] sm:$0xf]
                %268 = vst [vmem:[%s152 + $0xe4] sm:$0xf] %v267
                %v269 = vld [vmem:[%s151 + $0x1b0] sm:$0xf]
                %270 = vst [vmem:[%s152 + $0xe8] sm:$0xf] %v269
                %v271 = vld [vmem:[%s151 + $0x1b4] sm:$0xf]
                %272 = vst [vmem:[%s152 + $0xec] sm:$0xf] %v271
                %v273 = vld [vmem:[%s151 + $0x1b8] sm:$0xf]
                %274 = vst [vmem:[%s152 + $0xf0] sm:$0xf] %v273
                %v275 = vld [vmem:[%s151 + $0x1bc] sm:$0xf]
                %276 = vst [vmem:[%s152 + $0xf4] sm:$0xf] %v275
                %v277 = vld [vmem:[%s151 + $0x1c0] sm:$0xf]
                %278 = vst [vmem:[%s152 + $0xf8] sm:$0xf] %v277
                %v279 = vld [vmem:[%s151 + $0x1c4] sm:$0xf]
                %280 = vst [vmem:[%s152 + $0xfc] sm:$0xf] %v279
                %v281 = vld [vmem:[%s151 + $0x1c8] sm:$0xf]
                %282 = vst [vmem:[%s152 + $0x100] sm:$0xf] %v281
                %v283 = vld [vmem:[%s151 + $0x1cc] sm:$0xf]
                %284 = vst [vmem:[%s152 + $0x104] sm:$0xf] %v283
                %v285 = vld [vmem:[%s151 + $0x1d0] sm:$0xf]
                %286 = vst [vmem:[%s152 + $0x108] sm:$0xf] %v285
                %v287 = vld [vmem:[%s151 + $0x1d4] sm:$0xf]
                %288 = vst [vmem:[%s152 + $0x10c] sm:$0xf] %v287
                %v289 = vld [vmem:[%s151 + $0x1d8] sm:$0xf]
                %290 = vst [vmem:[%s152 + $0x110] sm:$0xf] %v289
                %v291 = vld [vmem:[%s151 + $0x1dc] sm:$0xf]
                %292 = vst [vmem:[%s152 + $0x114] sm:$0xf] %v291
                %v293 = vld [vmem:[%s151 + $0x1e0] sm:$0xf]
                %294 = vst [vmem:[%s152 + $0x118] sm:$0xf] %v293
                %v295 = vld [vmem:[%s151 + $0x1e4] sm:$0xf]
                %296 = vst [vmem:[%s152 + $0x11c] sm:$0xf] %v295
                %v297 = vld [vmem:[%s151 + $0x1e8] sm:$0xf]
                %298 = vst [vmem:[%s152 + $0x120] sm:$0xf] %v297
                %v299 = vld [vmem:[%s151 + $0x1ec] sm:$0xf]
                %300 = vst [vmem:[%s152 + $0x124] sm:$0xf] %v299
                %v301 = vld [vmem:[%s151 + $0x1f0] sm:$0xf]
                %302 = vst [vmem:[%s152 + $0x128] sm:$0xf] %v301
                %v303 = vld [vmem:[%s151 + $0x258] sm:$0xf]
                %304 = vst [vmem:[%s152 + $0x12c] sm:$0xf] %v303
                %v305 = vld [vmem:[%s151 + $0x25c] sm:$0xf]
                %306 = vst [vmem:[%s152 + $0x130] sm:$0xf] %v305
                %v307 = vld [vmem:[%s151 + $0x260] sm:$0xf]
                %308 = vst [vmem:[%s152 + $0x134] sm:$0xf] %v307
                %v309 = vld [vmem:[%s151 + $0x264] sm:$0xf]
                %310 = vst [vmem:[%s152 + $0x138] sm:$0xf] %v309
                %v311 = vld [vmem:[%s151 + $0x268] sm:$0xf]
                %312 = vst [vmem:[%s152 + $0x13c] sm:$0xf] %v311
                %v313 = vld [vmem:[%s151 + $0x26c] sm:$0xf]
                %314 = vst [vmem:[%s152 + $0x140] sm:$0xf] %v313
                %v315 = vld [vmem:[%s151 + $0x270] sm:$0xf]
                %316 = vst [vmem:[%s152 + $0x144] sm:$0xf] %v315
                %v317 = vld [vmem:[%s151 + $0x274] sm:$0xf]
                %318 = vst [vmem:[%s152 + $0x148] sm:$0xf] %v317
                %v319 = vld [vmem:[%s151 + $0x278] sm:$0xf]
                %320 = vst [vmem:[%s152 + $0x14c] sm:$0xf] %v319
                %v321 = vld [vmem:[%s151 + $0x27c] sm:$0xf]
                %322 = vst [vmem:[%s152 + $0x150] sm:$0xf] %v321
                %v323 = vld [vmem:[%s151 + $0x280] sm:$0xf]
                %324 = vst [vmem:[%s152 + $0x154] sm:$0xf] %v323
                %v325 = vld [vmem:[%s151 + $0x284] sm:$0xf]
                %326 = vst [vmem:[%s152 + $0x158] sm:$0xf] %v325
                %v327 = vld [vmem:[%s151 + $0x288] sm:$0xf]
                %328 = vst [vmem:[%s152 + $0x15c] sm:$0xf] %v327
                %v329 = vld [vmem:[%s151 + $0x28c] sm:$0xf]
                %330 = vst [vmem:[%s152 + $0x160] sm:$0xf] %v329
                %v331 = vld [vmem:[%s151 + $0x290] sm:$0xf]
                %332 = vst [vmem:[%s152 + $0x164] sm:$0xf] %v331
                %v333 = vld [vmem:[%s151 + $0x294] sm:$0xf]
                %334 = vst [vmem:[%s152 + $0x168] sm:$0xf] %v333
                %v335 = vld [vmem:[%s151 + $0x298] sm:$0xf]
                %336 = vst [vmem:[%s152 + $0x16c] sm:$0xf] %v335
                %v337 = vld [vmem:[%s151 + $0x29c] sm:$0xf]
                %338 = vst [vmem:[%s152 + $0x170] sm:$0xf] %v337
                %v339 = vld [vmem:[%s151 + $0x2a0] sm:$0xf]
                %340 = vst [vmem:[%s152 + $0x174] sm:$0xf] %v339
                %v341 = vld [vmem:[%s151 + $0x2a4] sm:$0xf]
                %342 = vst [vmem:[%s152 + $0x178] sm:$0xf] %v341
                %v343 = vld [vmem:[%s151 + $0x2a8] sm:$0xf]
                %344 = vst [vmem:[%s152 + $0x17c] sm:$0xf] %v343
                %v345 = vld [vmem:[%s151 + $0x2ac] sm:$0xf]
                %346 = vst [vmem:[%s152 + $0x180] sm:$0xf] %v345
                %v347 = vld [vmem:[%s151 + $0x2b0] sm:$0xf]
                %348 = vst [vmem:[%s152 + $0x184] sm:$0xf] %v347
                %v349 = vld [vmem:[%s151 + $0x2b4] sm:$0xf]
                %350 = vst [vmem:[%s152 + $0x188] sm:$0xf] %v349
                %v351 = vld [vmem:[%s151 + $0x2b8] sm:$0xf]
                %352 = vst [vmem:[%s152 + $0x18c] sm:$0xf] %v351
              $region45: #{cnn_forward.3} parent=39 // loop_footer
                %s150 = sadd.s32 1, %s146
              $region46: #{cnn_forward.3} parent=39 // loop_footer_branch
                %145 = sbr.rel target = $region42
              $region47: #{cnn_forward.3} parent=39 // loop_exit
                _
            $region40: #{cnn_forward.3} parent=31 // pred_fallthru
              _
          $region32: #{cnn_forward.3} parent=27 // pred_fallthru
            _
          %572 = vnop
        $region28: #{cnn_forward.3} parent=23 // pred_fallthru
          _
      $region24: #{cnn_forward.3} parent=5 // pred_fallthru
        _
      %p573 = scmp.le.s32.totalorder 1, %s9
      %p574 = scmp.lt.s32.totalorder %s9, 3
      %p575 = pnand %p573, %p574
      %p576 = pneg %p575
      // Predicated region
      $region66: #{cnn_forward.3} parent=5 // pred_check
        _
      $region67: #{cnn_forward.3} parent=5 // pred_check_branch
        %578 = sbr.rel (%p575) target = $region69
      $region68: #{cnn_forward.3} parent=5 // pred_region
        %s579 = ssub.s32 %s9, 1
        %s580 = sand.u32 %s22, 1
        %s581 = sand.u32 %s22, 1
        %s582 = smul.addr %s581, 400
        %s583 = scalar_lea.vmem [#allocation2], %s582
        // Predicated region
        $region70: #{cnn_forward.3} parent=68 // pred_check
          %p584 = pneg %p35
        $region71: #{cnn_forward.3} parent=68 // pred_check_branch
          %586 = sbr.rel (%p584) target = $region73
        $region72: #{cnn_forward.3} parent=68 // pred_region
          _
        $region73: #{cnn_forward.3} parent=68 // pred_fallthru
          _
        %s587 = sand.u32 %s22, 1
        %s588 = sand.u32 %s22, 1
        %s589 = smul.addr %s588, 400
        %s590 = scalar_lea.vmem [#allocation2], %s589
        %p591 = pneg %p35
        %p592 = pneg %p32
        %p593 = pneg %p56
        %p594 = pneg %p53
        %p595 = pneg %p77
        %p596 = pneg %p74
        %p597 = pneg %p103
        %p598 = pneg %p100
        %p599 = scmp.lt.s32.totalorder %s14, 1
        %s600 = scalar_select %p599, %s14, 1
        %s601 = smul.addr %s600, 25
        %s602 = smul.addr %s601, 4
        %s603 = scalar_lea.vmem %s3, %s602
        %p604 = scmp.lt.s32.totalorder %s14, 1
        %s605 = scalar_select %p604, %s14, 1
        %s606 = smul.addr %s605, 25
        %s607 = smul.addr %s606, 4
        %s608 = scalar_lea.vmem %s3, %s607
        %v610 = vld [vmem:[%s1] sm:$0xf]
        %v611 = vld [vmem:[%s1 + $0x4] sm:$0xf]
        %v612 = vld [vmem:[%s1 + $0x8] sm:$0xf]
        %v613 = vld [vmem:[%s1 + $0xc] sm:$0xf]
        %v614 = vld [vmem:[%s1 + $0x10] sm:$0xf]
        %v615 = vld [vmem:[%s1 + $0x14] sm:$0xf]
        %v616 = vld [vmem:[%s1 + $0x18] sm:$0xf]
        %v617 = vld [vmem:[%s1 + $0x1c] sm:$0xf]
        %v618 = vld [vmem:[%s1 + $0x20] sm:$0xf]
        %v619 = vld [vmem:[%s1 + $0x24] sm:$0x3]
        %v620 = vld [vmem:[%s583] sm:$0xf]
        %v621 = vld [vmem:[%s583 + $0x4] sm:$0xf]
        %v622 = vld [vmem:[%s583 + $0x8] sm:$0xf]
        %v623 = vld [vmem:[%s583 + $0xc] sm:$0xf]
        %v624 = vld [vmem:[%s583 + $0x10] sm:$0xf]
        %v625 = vld [vmem:[%s583 + $0x14] sm:$0xf]
        %v626 = vld [vmem:[%s583 + $0x18] sm:$0xf]
        %v627 = vld [vmem:[%s583 + $0x1c] sm:$0xf]
        %v628 = vld [vmem:[%s583 + $0x20] sm:$0xf]
        %v629 = vld [vmem:[%s583 + $0x24] sm:$0xf]
        %v630 = vld [vmem:[%s583 + $0x28] sm:$0xf]
        %v631 = vld [vmem:[%s583 + $0x2c] sm:$0xf]
        %v632 = vld [vmem:[%s583 + $0x30] sm:$0xf]
        %v633 = vld [vmem:[%s583 + $0x34] sm:$0xf]
        %v634 = vld [vmem:[%s583 + $0x38] sm:$0xf]
        %v635 = vld [vmem:[%s583 + $0x3c] sm:$0xf]
        %v636 = vld [vmem:[%s583 + $0x40] sm:$0xf]
        %v637 = vld [vmem:[%s583 + $0x44] sm:$0xf]
        %v638 = vld [vmem:[%s583 + $0x48] sm:$0xf]
        %v639 = vld [vmem:[%s583 + $0x4c] sm:$0xf]
        %v640 = vld [vmem:[%s583 + $0x50] sm:$0xf]
        %v641 = vld [vmem:[%s583 + $0x54] sm:$0xf]
        %v642 = vld [vmem:[%s583 + $0x58] sm:$0xf]
        %v643 = vld [vmem:[%s583 + $0x5c] sm:$0xf]
        %v644 = vld [vmem:[%s583 + $0x60] sm:$0x3]
        %v670 = vunpack.c.l.b16 %v620
        %v671 = vunpack.c.l.b16 %v621
        %v672 = vunpack.c.l.b16 %v622
        %v673 = vunpack.c.l.b16 %v623
        %v674 = vunpack.c.l.b16 %v624
        %v675 = vunpack.c.l.b16 %v625
        %v676 = vunpack.c.l.b16 %v626
        %v677 = vunpack.c.l.b16 %v627
        %v678 = vunpack.c.l.b16 %v628
        %v679 = vunpack.c.l.b16 %v629
        %v680 = vunpack.c.l.b16 %v630
        %v681 = vunpack.c.l.b16 %v631
        %v682 = vunpack.c.l.b16 %v632
        %v683 = vunpack.c.l.b16 %v633
        %v684 = vunpack.c.l.b16 %v634
        %v685 = vunpack.c.l.b16 %v635
        %v686 = vunpack.c.l.b16 %v636
        %v687 = vunpack.c.l.b16 %v637
        %v688 = vunpack.c.l.b16 %v638
        %v689 = vunpack.c.l.b16 %v639
        %v690 = vunpack.c.l.b16 %v640
        %v691 = vunpack.c.l.b16 %v641
        %v692 = vunpack.c.l.b16 %v642
        %v693 = vunpack.c.l.b16 %v643
        %v694 = vunpack.c.l.b16 %v644
        %v695 = vpack.c.b16 %v671, %v670
        %v696 = vpack.c.b16 %v673, %v672
        %v697 = vpack.c.b16 %v675, %v674
        %v698 = vpack.c.b16 %v677, %v676
        %v699 = vpack.c.b16 %v679, %v678
        %v700 = vpack.c.b16 %v681, %v680
        %v701 = vpack.c.b16 %v683, %v682
        %v702 = vpack.c.b16 %v685, %v684
        %v703 = vpack.c.b16 %v687, %v686
        %v704 = vpack.c.b16 %v689, %v688
        %v705 = vpack.c.b16 %v691, %v690
        %v706 = vpack.c.b16 %v693, %v692
        %v707 = vpack.c.b16 %v694, %v694
        %v718 = vunpack.c.l.b16 %v610
        %v719 = vunpack.c.l.b16 %v611
        %v720 = vunpack.c.l.b16 %v612
        %v721 = vunpack.c.l.b16 %v613
        %v722 = vunpack.c.l.b16 %v614
        %v723 = vunpack.c.l.b16 %v615
        %v724 = vunpack.c.l.b16 %v616
        %v725 = vunpack.c.l.b16 %v617
        %v726 = vunpack.c.l.b16 %v618
        %v727 = vunpack.c.l.b16 %v619
        %v728 = vpack.c.b16 %v719, %v718
        %v729 = vpack.c.b16 %v721, %v720
        %v730 = vpack.c.b16 %v723, %v722
        %v731 = vpack.c.b16 %v725, %v724
        %v732 = vpack.c.b16 %v727, %v726
        %vm737 = vcmask 613376
        %v739 = vsel %vm737, %v695, 0
        %v742 = vsel %vm737, %v696, 0
        %v745 = vsel %vm737, %v697, 0
        %v748 = vsel %vm737, %v698, 0
        %v751 = vsel %vm737, %v699, 0
        %v754 = vsel %vm737, %v700, 0
        %v757 = vsel %vm737, %v701, 0
        %v760 = vsel %vm737, %v702, 0
        %v763 = vsel %vm737, %v703, 0
        %v766 = vsel %vm737, %v704, 0
        %v769 = vsel %vm737, %v705, 0
        %v772 = vsel %vm737, %v706, 0
        %v775 = vsel %vm737, %v707, 0
        %vm777 = vcmask 1044480
        %vm778 = vcmask 1045504
        %v779 = vsel %vm777, 4294967295, 65535
        %v780 = vsel %vm778, %v779, 0
        %v782 = vand.u32 %v732, %v780
        %784 = vmatprep.subr.bf16.mxu0 0
        %785 = vmatpush1.bf16.msra.mxu0 %v728
        %786 = vmatprep.subr.bf16.mxu0 0
        %787 = vmatpush1.bf16.msra.mxu0 %v729
        %788 = vmatprep.subr.bf16.mxu0 0
        %789 = vmatpush1.bf16.msra.mxu0 %v730
        %790 = vmatprep.subr.bf16.mxu0 0
        %791 = vmatpush1.bf16.msra.mxu0 %v731
        %792 = vmatprep.subr.bf16.mxu0 0
        %793 = vmatpush1.bf16.msra.mxu0 %v782
        %794 = vmatprep.subr.bf16.mxu0 0
        %795 = vmatpush1.bf16.msra.mxu0 0
        %796 = vmatprep.subr.bf16.mxu0 0
        %797 = vmatpush1.bf16.msra.mxu0 0
        %798 = vmatprep.subr.bf16.mxu0 0
        %799 = vmatpush1.bf16.msra.mxu0 0
        %800 = vmatprep.subr.bf16.mxu0 0
        %801 = vmatpush1.bf16.msra.mxu0 0
        %802 = vmatprep.subr.bf16.mxu0 0
        %803 = vmatpush1.bf16.msra.mxu0 0
        %804 = vmatprep.subr.bf16.mxu0 0
        %805 = vmatpush1.bf16.msra.mxu0 0
        %806 = vmatprep.subr.bf16.mxu0 0
        %807 = vmatpush1.bf16.msra.mxu0 0
        %808 = vmatprep.subr.bf16.mxu0 0
        %809 = vmatpush1.bf16.msra.mxu0 0
        %810 = vmatprep.subr.bf16.mxu0 0
        %811 = vmatpush1.bf16.msra.mxu0 0
        %812 = vmatprep.subr.bf16.mxu0 0
        %813 = vmatpush1.bf16.msra.mxu0 0
        %814 = vmatprep.subr.bf16.mxu0 0
        %815 = vmatpush1.bf16.msra.mxu0 0
        %816 = vmatprep.mubr.bf16.mxu0 0
        %817 = vmatmul.mubr.bf16.gmra.mrb[0].mxu0 %v739
        %v818 = vpop.f32.mrb[0].mxu0
        %v819 = vadd.f32 0.0, %v818
        %v820 = vpop.f32.mrb[0].mxu0
        %v821 = vpop.f32.mrb[0].mxu0
        %v822 = vadd.f32 0.0, %v821
        %v823 = vpop.f32.mrb[0].mxu0
        %824 = vmatprep.mubr.bf16.mxu0 0
        %825 = vmatmul.mubr.bf16.gmra.mrb[0].mxu0 %v742
        %v826 = vpop.f32.mrb[0].mxu0
        %v827 = vadd.f32 0.0, %v826
        %v828 = vpop.f32.mrb[0].mxu0
        %v829 = vpop.f32.mrb[0].mxu0
        %v830 = vadd.f32 0.0, %v829
        %v831 = vpop.f32.mrb[0].mxu0
        %832 = vmatprep.mubr.bf16.mxu0 0
        %833 = vmatmul.mubr.bf16.gmra.mrb[0].mxu0 %v745
        %v834 = vpop.f32.mrb[0].mxu0
        %v835 = vadd.f32 0.0, %v834
        %v836 = vpop.f32.mrb[0].mxu0
        %v837 = vpop.f32.mrb[0].mxu0
        %v838 = vadd.f32 0.0, %v837
        %v839 = vpop.f32.mrb[0].mxu0
        %840 = vmatprep.mubr.bf16.mxu0 0
        %841 = vmatmul.mubr.bf16.gmra.mrb[0].mxu0 %v748
        %v842 = vpop.f32.mrb[0].mxu0
        %v843 = vadd.f32 0.0, %v842
        %v844 = vpop.f32.mrb[0].mxu0
        %v845 = vpop.f32.mrb[0].mxu0
        %v846 = vadd.f32 0.0, %v845
        %v847 = vpop.f32.mrb[0].mxu0
        %848 = vmatprep.mubr.bf16.mxu0 0
        %849 = vmatmul.mubr.bf16.gmra.mrb[0].mxu0 %v751
        %v850 = vpop.f32.mrb[0].mxu0
        %v851 = vadd.f32 0.0, %v850
        %v852 = vpop.f32.mrb[0].mxu0
        %v853 = vpop.f32.mrb[0].mxu0
        %v854 = vadd.f32 0.0, %v853
        %v855 = vpop.f32.mrb[0].mxu0
        %856 = vmatprep.mubr.bf16.mxu0 0
        %857 = vmatmul.mubr.bf16.gmra.mrb[0].mxu0 %v754
        %v858 = vpop.f32.mrb[0].mxu0
        %v859 = vadd.f32 0.0, %v858
        %v860 = vpop.f32.mrb[0].mxu0
        %v861 = vpop.f32.mrb[0].mxu0
        %v862 = vadd.f32 0.0, %v861
        %v863 = vpop.f32.mrb[0].mxu0
        %864 = vmatprep.mubr.bf16.mxu0 0
        %865 = vmatmul.mubr.bf16.gmra.mrb[0].mxu0 %v757
        %v866 = vpop.f32.mrb[0].mxu0
        %v867 = vadd.f32 0.0, %v866
        %v868 = vpop.f32.mrb[0].mxu0
        %v869 = vpop.f32.mrb[0].mxu0
        %v870 = vadd.f32 0.0, %v869
        %v871 = vpop.f32.mrb[0].mxu0
        %872 = vmatprep.mubr.bf16.mxu0 0
        %873 = vmatmul.mubr.bf16.gmra.mrb[0].mxu0 %v760
        %v874 = vpop.f32.mrb[0].mxu0
        %v875 = vadd.f32 0.0, %v874
        %v876 = vpop.f32.mrb[0].mxu0
        %v877 = vpop.f32.mrb[0].mxu0
        %v878 = vadd.f32 0.0, %v877
        %v879 = vpop.f32.mrb[0].mxu0
        %880 = vmatprep.mubr.bf16.mxu0 0
        %881 = vmatmul.mubr.bf16.gmra.mrb[0].mxu0 %v763
        %v882 = vpop.f32.mrb[0].mxu0
        %v883 = vadd.f32 0.0, %v882
        %v884 = vpop.f32.mrb[0].mxu0
        %v885 = vpop.f32.mrb[0].mxu0
        %v886 = vadd.f32 0.0, %v885
        %v887 = vpop.f32.mrb[0].mxu0
        %888 = vmatprep.mubr.bf16.mxu0 0
        %889 = vmatmul.mubr.bf16.gmra.mrb[0].mxu0 %v766
        %v890 = vpop.f32.mrb[0].mxu0
        %v891 = vadd.f32 0.0, %v890
        %v892 = vpop.f32.mrb[0].mxu0
        %v893 = vpop.f32.mrb[0].mxu0
        %v894 = vadd.f32 0.0, %v893
        %v895 = vpop.f32.mrb[0].mxu0
        %896 = vmatprep.mubr.bf16.mxu0 0
        %897 = vmatmul.mubr.bf16.gmra.mrb[0].mxu0 %v769
        %v898 = vpop.f32.mrb[0].mxu0
        %v899 = vadd.f32 0.0, %v898
        %v900 = vpop.f32.mrb[0].mxu0
        %v901 = vpop.f32.mrb[0].mxu0
        %v902 = vadd.f32 0.0, %v901
        %v903 = vpop.f32.mrb[0].mxu0
        %904 = vmatprep.mubr.bf16.mxu0 0
        %905 = vmatmul.mubr.bf16.gmra.mrb[0].mxu0 %v772
        %v906 = vpop.f32.mrb[0].mxu0
        %v907 = vadd.f32 0.0, %v906
        %v908 = vpop.f32.mrb[0].mxu0
        %v909 = vpop.f32.mrb[0].mxu0
        %v910 = vadd.f32 0.0, %v909
        %v911 = vpop.f32.mrb[0].mxu0
        %912 = vmatprep.mubr.bf16.mxu0 0
        %913 = vmatmul.mubr.bf16.gmra.mrb[0].mxu0 %v775
        %v914 = vpop.f32.mrb[0].mxu0
        %v915 = vadd.f32 0.0, %v914
        %v916 = vpop.f32.mrb[0].mxu0
        %v917 = vpop.f32.mrb[0].mxu0
        %v918 = vpop.f32.mrb[0].mxu0
        %919 = vdwg.mxu0
        %s920 = scalar_lea.vmem %s583, 100 [#allocation2]
        %v921 = vld [vmem:[%s920] sm:$0xf]
        %v922 = vld [vmem:[%s920 + $0x4] sm:$0xf]
        %v923 = vld [vmem:[%s920 + $0x8] sm:$0xf]
        %v924 = vld [vmem:[%s920 + $0xc] sm:$0xf]
        %v925 = vld [vmem:[%s920 + $0x10] sm:$0xf]
        %v926 = vld [vmem:[%s920 + $0x14] sm:$0xf]
        %v927 = vld [vmem:[%s920 + $0x18] sm:$0xf]
        %v928 = vld [vmem:[%s920 + $0x1c] sm:$0xf]
        %v929 = vld [vmem:[%s920 + $0x20] sm:$0xf]
        %v930 = vld [vmem:[%s920 + $0x24] sm:$0xf]
        %v931 = vld [vmem:[%s920 + $0x28] sm:$0xf]
        %v932 = vld [vmem:[%s920 + $0x2c] sm:$0xf]
        %v933 = vld [vmem:[%s920 + $0x30] sm:$0xf]
        %v934 = vld [vmem:[%s920 + $0x34] sm:$0xf]
        %v935 = vld [vmem:[%s920 + $0x38] sm:$0xf]
        %v936 = vld [vmem:[%s920 + $0x3c] sm:$0xf]
        %v937 = vld [vmem:[%s920 + $0x40] sm:$0xf]
        %v938 = vld [vmem:[%s920 + $0x44] sm:$0xf]
        %v939 = vld [vmem:[%s920 + $0x48] sm:$0xf]
        %v940 = vld [vmem:[%s920 + $0x4c] sm:$0xf]
        %v941 = vld [vmem:[%s920 + $0x50] sm:$0xf]
        %v942 = vld [vmem:[%s920 + $0x54] sm:$0xf]
        %v943 = vld [vmem:[%s920 + $0x58] sm:$0xf]
        %v944 = vld [vmem:[%s920 + $0x5c] sm:$0xf]
        %v945 = vld [vmem:[%s920 + $0x60] sm:$0x3]
        %v971 = vunpack.c.l.b16 %v921
        %v972 = vunpack.c.l.b16 %v922
        %v973 = vunpack.c.l.b16 %v923
        %v974 = vunpack.c.l.b16 %v924
        %v975 = vunpack.c.l.b16 %v925
        %v976 = vunpack.c.l.b16 %v926
        %v977 = vunpack.c.l.b16 %v927
        %v978 = vunpack.c.l.b16 %v928
        %v979 = vunpack.c.l.b16 %v929
        %v980 = vunpack.c.l.b16 %v930
        %v981 = vunpack.c.l.b16 %v931
        %v982 = vunpack.c.l.b16 %v932
        %v983 = vunpack.c.l.b16 %v933
        %v984 = vunpack.c.l.b16 %v934
        %v985 = vunpack.c.l.b16 %v935
        %v986 = vunpack.c.l.b16 %v936
        %v987 = vunpack.c.l.b16 %v937
        %v988 = vunpack.c.l.b16 %v938
        %v989 = vunpack.c.l.b16 %v939
        %v990 = vunpack.c.l.b16 %v940
        %v991 = vunpack.c.l.b16 %v941
        %v992 = vunpack.c.l.b16 %v942
        %v993 = vunpack.c.l.b16 %v943
        %v994 = vunpack.c.l.b16 %v944
        %v995 = vunpack.c.l.b16 %v945
        %v996 = vpack.c.b16 %v972, %v971
        %v997 = vpack.c.b16 %v974, %v973
        %v998 = vpack.c.b16 %v976, %v975
        %v999 = vpack.c.b16 %v978, %v977
        %v1000 = vpack.c.b16 %v980, %v979
        %v1001 = vpack.c.b16 %v982, %v981
        %v1002 = vpack.c.b16 %v984, %v983
        %v1003 = vpack.c.b16 %v986, %v985
        %v1004 = vpack.c.b16 %v988, %v987
        %v1005 = vpack.c.b16 %v990, %v989
        %v1006 = vpack.c.b16 %v992, %v991
        %v1007 = vpack.c.b16 %v994, %v993
        %v1008 = vpack.c.b16 %v995, %v995
        %v1010 = vsel %vm737, %v996, 0
        %v1013 = vsel %vm737, %v997, 0
        %v1016 = vsel %vm737, %v998, 0
        %v1019 = vsel %vm737, %v999, 0
        %v1022 = vsel %vm737, %v1000, 0
        %v1025 = vsel %vm737, %v1001, 0
        %v1028 = vsel %vm737, %v1002, 0
        %v1031 = vsel %vm737, %v1003, 0
        %v1034 = vsel %vm737, %v1004, 0
        %v1037 = vsel %vm737, %v1005, 0
        %v1040 = vsel %vm737, %v1006, 0
        %v1043 = vsel %vm737, %v1007, 0
        %v1046 = vsel %vm737, %v1008, 0
        %1048 = vmatprep.subr.bf16.mxu0 0
        %1049 = vmatpush1.bf16.msra.mxu0 %v728
        %1050 = vmatprep.subr.bf16.mxu0 0
        %1051 = vmatpush1.bf16.msra.mxu0 %v729
        %1052 = vmatprep.subr.bf16.mxu0 0
        %1053 = vmatpush1.bf16.msra.mxu0 %v730
        %1054 = vmatprep.subr.bf16.mxu0 0
        %1055 = vmatpush1.bf16.msra.mxu0 %v731
        %1056 = vmatprep.subr.bf16.mxu0 0
        %1057 = vmatpush1.bf16.msra.mxu0 %v782
        %1058 = vmatprep.subr.bf16.mxu0 0
        %1059 = vmatpush1.bf16.msra.mxu0 0
        %1060 = vmatprep.subr.bf16.mxu0 0
        %1061 = vmatpush1.bf16.msra.mxu0 0
        %1062 = vmatprep.subr.bf16.mxu0 0
        %1063 = vmatpush1.bf16.msra.mxu0 0
        %1064 = vmatprep.subr.bf16.mxu0 0
        %1065 = vmatpush1.bf16.msra.mxu0 0
        %1066 = vmatprep.subr.bf16.mxu0 0
        %1067 = vmatpush1.bf16.msra.mxu0 0
        %1068 = vmatprep.subr.bf16.mxu0 0
        %1069 = vmatpush1.bf16.msra.mxu0 0
        %1070 = vmatprep.subr.bf16.mxu0 0
        %1071 = vmatpush1.bf16.msra.mxu0 0
        %1072 = vmatprep.subr.bf16.mxu0 0
        %1073 = vmatpush1.bf16.msra.mxu0 0
        %1074 = vmatprep.subr.bf16.mxu0 0
        %1075 = vmatpush1.bf16.msra.mxu0 0
        %1076 = vmatprep.subr.bf16.mxu0 0
        %1077 = vmatpush1.bf16.msra.mxu0 0
        %1078 = vmatprep.subr.bf16.mxu0 0
        %1079 = vmatpush1.bf16.msra.mxu0 0
        %1080 = vmatprep.mubr.bf16.mxu0 0
        %1081 = vmatmul.mubr.bf16.gmra.mrb[0].mxu0 %v1010
        %v1082 = vpop.f32.mrb[0].mxu0
        %v1083 = vadd.f32 0.0, %v1082
        %v1084 = vpop.f32.mrb[0].mxu0
        %v1085 = vpop.f32.mrb[0].mxu0
        %v1086 = vadd.f32 0.0, %v1085
        %v1087 = vpop.f32.mrb[0].mxu0
        %1088 = vmatprep.mubr.bf16.mxu0 0
        %1089 = vmatmul.mubr.bf16.gmra.mrb[0].mxu0 %v1013
        %v1090 = vpop.f32.mrb[0].mxu0
        %v1091 = vadd.f32 0.0, %v1090
        %v1092 = vpop.f32.mrb[0].mxu0
        %v1093 = vpop.f32.mrb[0].mxu0
        %v1094 = vadd.f32 0.0, %v1093
        %v1095 = vpop.f32.mrb[0].mxu0
        %1096 = vmatprep.mubr.bf16.mxu0 0
        %1097 = vmatmul.mubr.bf16.gmra.mrb[0].mxu0 %v1016
        %v1098 = vpop.f32.mrb[0].mxu0
        %v1099 = vadd.f32 0.0, %v1098
        %v1100 = vpop.f32.mrb[0].mxu0
        %v1101 = vpop.f32.mrb[0].mxu0
        %v1102 = vadd.f32 0.0, %v1101
        %v1103 = vpop.f32.mrb[0].mxu0
        %1104 = vmatprep.mubr.bf16.mxu0 0
        %1105 = vmatmul.mubr.bf16.gmra.mrb[0].mxu0 %v1019
        %v1106 = vpop.f32.mrb[0].mxu0
        %v1107 = vadd.f32 0.0, %v1106
        %v1108 = vpop.f32.mrb[0].mxu0
        %v1109 = vpop.f32.mrb[0].mxu0
        %v1110 = vadd.f32 0.0, %v1109
        %v1111 = vpop.f32.mrb[0].mxu0
        %1112 = vmatprep.mubr.bf16.mxu0 0
        %1113 = vmatmul.mubr.bf16.gmra.mrb[0].mxu0 %v1022
        %v1114 = vpop.f32.mrb[0].mxu0
        %v1115 = vadd.f32 0.0, %v1114
        %v1116 = vpop.f32.mrb[0].mxu0
        %v1117 = vpop.f32.mrb[0].mxu0
        %v1118 = vadd.f32 0.0, %v1117
        %v1119 = vpop.f32.mrb[0].mxu0
        %1120 = vmatprep.mubr.bf16.mxu0 0
        %1121 = vmatmul.mubr.bf16.gmra.mrb[0].mxu0 %v1025
        %v1122 = vpop.f32.mrb[0].mxu0
        %v1123 = vadd.f32 0.0, %v1122
        %v1124 = vpop.f32.mrb[0].mxu0
        %v1125 = vpop.f32.mrb[0].mxu0
        %v1126 = vadd.f32 0.0, %v1125
        %v1127 = vpop.f32.mrb[0].mxu0
        %1128 = vmatprep.mubr.bf16.mxu0 0
        %1129 = vmatmul.mubr.bf16.gmra.mrb[0].mxu0 %v1028
        %v1130 = vpop.f32.mrb[0].mxu0
        %v1131 = vadd.f32 0.0, %v1130
        %v1132 = vpop.f32.mrb[0].mxu0
        %v1133 = vpop.f32.mrb[0].mxu0
        %v1134 = vadd.f32 0.0, %v1133
        %v1135 = vpop.f32.mrb[0].mxu0
        %1136 = vmatprep.mubr.bf16.mxu0 0
        %1137 = vmatmul.mubr.bf16.gmra.mrb[0].mxu0 %v1031
        %v1138 = vpop.f32.mrb[0].mxu0
        %v1139 = vadd.f32 0.0, %v1138
        %v1140 = vpop.f32.mrb[0].mxu0
        %v1141 = vpop.f32.mrb[0].mxu0
        %v1142 = vadd.f32 0.0, %v1141
        %v1143 = vpop.f32.mrb[0].mxu0
        %1144 = vmatprep.mubr.bf16.mxu0 0
        %1145 = vmatmul.mubr.bf16.gmra.mrb[0].mxu0 %v1034
        %v1146 = vpop.f32.mrb[0].mxu0
        %v1147 = vadd.f32 0.0, %v1146
        %v1148 = vpop.f32.mrb[0].mxu0
        %v1149 = vpop.f32.mrb[0].mxu0
        %v1150 = vadd.f32 0.0, %v1149
        %v1151 = vpop.f32.mrb[0].mxu0
        %1152 = vmatprep.mubr.bf16.mxu0 0
        %1153 = vmatmul.mubr.bf16.gmra.mrb[0].mxu0 %v1037
        %v1154 = vpop.f32.mrb[0].mxu0
        %v1155 = vadd.f32 0.0, %v1154
        %v1156 = vpop.f32.mrb[0].mxu0
        %v1157 = vpop.f32.mrb[0].mxu0
        %v1158 = vadd.f32 0.0, %v1157
        %v1159 = vpop.f32.mrb[0].mxu0
        %1160 = vmatprep.mubr.bf16.mxu0 0
        %1161 = vmatmul.mubr.bf16.gmra.mrb[0].mxu0 %v1040
        %v1162 = vpop.f32.mrb[0].mxu0
        %v1163 = vadd.f32 0.0, %v1162
        %v1164 = vpop.f32.mrb[0].mxu0
        %v1165 = vpop.f32.mrb[0].mxu0
        %v1166 = vadd.f32 0.0, %v1165
        %v1167 = vpop.f32.mrb[0].mxu0
        %1168 = vmatprep.mubr.bf16.mxu0 0
        %1169 = vmatmul.mubr.bf16.gmra.mrb[0].mxu0 %v1043
        %v1170 = vpop.f32.mrb[0].mxu0
        %v1171 = vadd.f32 0.0, %v1170
        %v1172 = vpop.f32.mrb[0].mxu0
        %v1173 = vpop.f32.mrb[0].mxu0
        %v1174 = vadd.f32 0.0, %v1173
        %v1175 = vpop.f32.mrb[0].mxu0
        %1176 = vmatprep.mubr.bf16.mxu0 0
        %1177 = vmatmul.mubr.bf16.gmra.mrb[0].mxu0 %v1046
        %v1178 = vpop.f32.mrb[0].mxu0
        %v1179 = vadd.f32 0.0, %v1178
        %v1180 = vpop.f32.mrb[0].mxu0
        %v1181 = vpop.f32.mrb[0].mxu0
        %v1182 = vpop.f32.mrb[0].mxu0
        %1183 = vdwg.mxu0
        %v1184 = vmax.f32 %v819, %v1083
        %v1185 = vmax.f32 %v822, %v1086
        %v1186 = vmax.f32 %v827, %v1091
        %v1187 = vmax.f32 %v830, %v1094
        %v1188 = vmax.f32 %v835, %v1099
        %v1189 = vmax.f32 %v838, %v1102
        %v1190 = vmax.f32 %v843, %v1107
        %v1191 = vmax.f32 %v846, %v1110
        %v1192 = vmax.f32 %v851, %v1115
        %v1193 = vmax.f32 %v854, %v1118
        %v1194 = vmax.f32 %v859, %v1123
        %v1195 = vmax.f32 %v862, %v1126
        %v1196 = vmax.f32 %v867, %v1131
        %v1197 = vmax.f32 %v870, %v1134
        %v1198 = vmax.f32 %v875, %v1139
        %v1199 = vmax.f32 %v878, %v1142
        %v1200 = vmax.f32 %v883, %v1147
        %v1201 = vmax.f32 %v886, %v1150
        %v1202 = vmax.f32 %v891, %v1155
        %v1203 = vmax.f32 %v894, %v1158
        %v1204 = vmax.f32 %v899, %v1163
        %v1205 = vmax.f32 %v902, %v1166
        %v1206 = vmax.f32 %v907, %v1171
        %v1207 = vmax.f32 %v910, %v1174
        %v1208 = vmax.f32 %v915, %v1179
        %s1209 = scalar_lea.vmem %s583, 200 [#allocation2]
        %v1210 = vld [vmem:[%s1209] sm:$0xf]
        %v1211 = vld [vmem:[%s1209 + $0x4] sm:$0xf]
        %v1212 = vld [vmem:[%s1209 + $0x8] sm:$0xf]
        %v1213 = vld [vmem:[%s1209 + $0xc] sm:$0xf]
        %v1214 = vld [vmem:[%s1209 + $0x10] sm:$0xf]
        %v1215 = vld [vmem:[%s1209 + $0x14] sm:$0xf]
        %v1216 = vld [vmem:[%s1209 + $0x18] sm:$0xf]
        %v1217 = vld [vmem:[%s1209 + $0x1c] sm:$0xf]
        %v1218 = vld [vmem:[%s1209 + $0x20] sm:$0xf]
        %v1219 = vld [vmem:[%s1209 + $0x24] sm:$0xf]
        %v1220 = vld [vmem:[%s1209 + $0x28] sm:$0xf]
        %v1221 = vld [vmem:[%s1209 + $0x2c] sm:$0xf]
        %v1222 = vld [vmem:[%s1209 + $0x30] sm:$0xf]
        %v1223 = vld [vmem:[%s1209 + $0x34] sm:$0xf]
        %v1224 = vld [vmem:[%s1209 + $0x38] sm:$0xf]
        %v1225 = vld [vmem:[%s1209 + $0x3c] sm:$0xf]
        %v1226 = vld [vmem:[%s1209 + $0x40] sm:$0xf]
        %v1227 = vld [vmem:[%s1209 + $0x44] sm:$0xf]
        %v1228 = vld [vmem:[%s1209 + $0x48] sm:$0xf]
        %v1229 = vld [vmem:[%s1209 + $0x4c] sm:$0xf]
        %v1230 = vld [vmem:[%s1209 + $0x50] sm:$0xf]
        %v1231 = vld [vmem:[%s1209 + $0x54] sm:$0xf]
        %v1232 = vld [vmem:[%s1209 + $0x58] sm:$0xf]
        %v1233 = vld [vmem:[%s1209 + $0x5c] sm:$0xf]
        %v1234 = vld [vmem:[%s1209 + $0x60] sm:$0x3]
        %v1260 = vunpack.c.l.b16 %v1210
        %v1261 = vunpack.c.l.b16 %v1211
        %v1262 = vunpack.c.l.b16 %v1212
        %v1263 = vunpack.c.l.b16 %v1213
        %v1264 = vunpack.c.l.b16 %v1214
        %v1265 = vunpack.c.l.b16 %v1215
        %v1266 = vunpack.c.l.b16 %v1216
        %v1267 = vunpack.c.l.b16 %v1217
        %v1268 = vunpack.c.l.b16 %v1218
        %v1269 = vunpack.c.l.b16 %v1219
        %v1270 = vunpack.c.l.b16 %v1220
        %v1271 = vunpack.c.l.b16 %v1221
        %v1272 = vunpack.c.l.b16 %v1222
        %v1273 = vunpack.c.l.b16 %v1223
        %v1274 = vunpack.c.l.b16 %v1224
        %v1275 = vunpack.c.l.b16 %v1225
        %v1276 = vunpack.c.l.b16 %v1226
        %v1277 = vunpack.c.l.b16 %v1227
        %v1278 = vunpack.c.l.b16 %v1228
        %v1279 = vunpack.c.l.b16 %v1229
        %v1280 = vunpack.c.l.b16 %v1230
        %v1281 = vunpack.c.l.b16 %v1231
        %v1282 = vunpack.c.l.b16 %v1232
        %v1283 = vunpack.c.l.b16 %v1233
        %v1284 = vunpack.c.l.b16 %v1234
        %v1285 = vpack.c.b16 %v1261, %v1260
        %v1286 = vpack.c.b16 %v1263, %v1262
        %v1287 = vpack.c.b16 %v1265, %v1264
        %v1288 = vpack.c.b16 %v1267, %v1266
        %v1289 = vpack.c.b16 %v1269, %v1268
        %v1290 = vpack.c.b16 %v1271, %v1270
        %v1291 = vpack.c.b16 %v1273, %v1272
        %v1292 = vpack.c.b16 %v1275, %v1274
        %v1293 = vpack.c.b16 %v1277, %v1276
        %v1294 = vpack.c.b16 %v1279, %v1278
        %v1295 = vpack.c.b16 %v1281, %v1280
        %v1296 = vpack.c.b16 %v1283, %v1282
        %v1297 = vpack.c.b16 %v1284, %v1284
        %v1299 = vsel %vm737, %v1285, 0
        %v1302 = vsel %vm737, %v1286, 0
        %v1305 = vsel %vm737, %v1287, 0
        %v1308 = vsel %vm737, %v1288, 0
        %v1311 = vsel %vm737, %v1289, 0
        %v1314 = vsel %vm737, %v1290, 0
        %v1317 = vsel %vm737, %v1291, 0
        %v1320 = vsel %vm737, %v1292, 0
        %v1323 = vsel %vm737, %v1293, 0
        %v1326 = vsel %vm737, %v1294, 0
        %v1329 = vsel %vm737, %v1295, 0
        %v1332 = vsel %vm737, %v1296, 0
        %v1335 = vsel %vm737, %v1297, 0
        %1337 = vmatprep.subr.bf16.mxu0 0
        %1338 = vmatpush1.bf16.msra.mxu0 %v728
        %1339 = vmatprep.subr.bf16.mxu0 0
        %1340 = vmatpush1.bf16.msra.mxu0 %v729
        %1341 = vmatprep.subr.bf16.mxu0 0
        %1342 = vmatpush1.bf16.msra.mxu0 %v730
        %1343 = vmatprep.subr.bf16.mxu0 0
        %1344 = vmatpush1.bf16.msra.mxu0 %v731
        %1345 = vmatprep.subr.bf16.mxu0 0
        %1346 = vmatpush1.bf16.msra.mxu0 %v782
        %1347 = vmatprep.subr.bf16.mxu0 0
        %1348 = vmatpush1.bf16.msra.mxu0 0
        %1349 = vmatprep.subr.bf16.mxu0 0
        %1350 = vmatpush1.bf16.msra.mxu0 0
        %1351 = vmatprep.subr.bf16.mxu0 0
        %1352 = vmatpush1.bf16.msra.mxu0 0
        %1353 = vmatprep.subr.bf16.mxu0 0
        %1354 = vmatpush1.bf16.msra.mxu0 0
        %1355 = vmatprep.subr.bf16.mxu0 0
        %1356 = vmatpush1.bf16.msra.mxu0 0
        %1357 = vmatprep.subr.bf16.mxu0 0
        %1358 = vmatpush1.bf16.msra.mxu0 0
        %1359 = vmatprep.subr.bf16.mxu0 0
        %1360 = vmatpush1.bf16.msra.mxu0 0
        %1361 = vmatprep.subr.bf16.mxu0 0
        %1362 = vmatpush1.bf16.msra.mxu0 0
        %1363 = vmatprep.subr.bf16.mxu0 0
        %1364 = vmatpush1.bf16.msra.mxu0 0
        %1365 = vmatprep.subr.bf16.mxu0 0
        %1366 = vmatpush1.bf16.msra.mxu0 0
        %1367 = vmatprep.subr.bf16.mxu0 0
        %1368 = vmatpush1.bf16.msra.mxu0 0
        %1369 = vmatprep.mubr.bf16.mxu0 0
        %1370 = vmatmul.mubr.bf16.gmra.mrb[0].mxu0 %v1299
        %v1371 = vpop.f32.mrb[0].mxu0
        %v1372 = vadd.f32 0.0, %v1371
        %v1373 = vpop.f32.mrb[0].mxu0
        %v1374 = vpop.f32.mrb[0].mxu0
        %v1375 = vadd.f32 0.0, %v1374
        %v1376 = vpop.f32.mrb[0].mxu0
        %1377 = vmatprep.mubr.bf16.mxu0 0
        %1378 = vmatmul.mubr.bf16.gmra.mrb[0].mxu0 %v1302
        %v1379 = vpop.f32.mrb[0].mxu0
        %v1380 = vadd.f32 0.0, %v1379
        %v1381 = vpop.f32.mrb[0].mxu0
        %v1382 = vpop.f32.mrb[0].mxu0
        %v1383 = vadd.f32 0.0, %v1382
        %v1384 = vpop.f32.mrb[0].mxu0
        %1385 = vmatprep.mubr.bf16.mxu0 0
        %1386 = vmatmul.mubr.bf16.gmra.mrb[0].mxu0 %v1305
        %v1387 = vpop.f32.mrb[0].mxu0
        %v1388 = vadd.f32 0.0, %v1387
        %v1389 = vpop.f32.mrb[0].mxu0
        %v1390 = vpop.f32.mrb[0].mxu0
        %v1391 = vadd.f32 0.0, %v1390
        %v1392 = vpop.f32.mrb[0].mxu0
        %1393 = vmatprep.mubr.bf16.mxu0 0
        %1394 = vmatmul.mubr.bf16.gmra.mrb[0].mxu0 %v1308
        %v1395 = vpop.f32.mrb[0].mxu0
        %v1396 = vadd.f32 0.0, %v1395
        %v1397 = vpop.f32.mrb[0].mxu0
        %v1398 = vpop.f32.mrb[0].mxu0
        %v1399 = vadd.f32 0.0, %v1398
        %v1400 = vpop.f32.mrb[0].mxu0
        %1401 = vmatprep.mubr.bf16.mxu0 0
        %1402 = vmatmul.mubr.bf16.gmra.mrb[0].mxu0 %v1311
        %v1403 = vpop.f32.mrb[0].mxu0
        %v1404 = vadd.f32 0.0, %v1403
        %v1405 = vpop.f32.mrb[0].mxu0
        %v1406 = vpop.f32.mrb[0].mxu0
        %v1407 = vadd.f32 0.0, %v1406
        %v1408 = vpop.f32.mrb[0].mxu0
        %1409 = vmatprep.mubr.bf16.mxu0 0
        %1410 = vmatmul.mubr.bf16.gmra.mrb[0].mxu0 %v1314
        %v1411 = vpop.f32.mrb[0].mxu0
        %v1412 = vadd.f32 0.0, %v1411
        %v1413 = vpop.f32.mrb[0].mxu0
        %v1414 = vpop.f32.mrb[0].mxu0
        %v1415 = vadd.f32 0.0, %v1414
        %v1416 = vpop.f32.mrb[0].mxu0
        %1417 = vmatprep.mubr.bf16.mxu0 0
        %1418 = vmatmul.mubr.bf16.gmra.mrb[0].mxu0 %v1317
        %v1419 = vpop.f32.mrb[0].mxu0
        %v1420 = vadd.f32 0.0, %v1419
        %v1421 = vpop.f32.mrb[0].mxu0
        %v1422 = vpop.f32.mrb[0].mxu0
        %v1423 = vadd.f32 0.0, %v1422
        %v1424 = vpop.f32.mrb[0].mxu0
        %1425 = vmatprep.mubr.bf16.mxu0 0
        %1426 = vmatmul.mubr.bf16.gmra.mrb[0].mxu0 %v1320
        %v1427 = vpop.f32.mrb[0].mxu0
        %v1428 = vadd.f32 0.0, %v1427
        %v1429 = vpop.f32.mrb[0].mxu0
        %v1430 = vpop.f32.mrb[0].mxu0
        %v1431 = vadd.f32 0.0, %v1430
        %v1432 = vpop.f32.mrb[0].mxu0
        %1433 = vmatprep.mubr.bf16.mxu0 0
        %1434 = vmatmul.mubr.bf16.gmra.mrb[0].mxu0 %v1323
        %v1435 = vpop.f32.mrb[0].mxu0
        %v1436 = vadd.f32 0.0, %v1435
        %v1437 = vpop.f32.mrb[0].mxu0
        %v1438 = vpop.f32.mrb[0].mxu0
        %v1439 = vadd.f32 0.0, %v1438
        %v1440 = vpop.f32.mrb[0].mxu0
        %1441 = vmatprep.mubr.bf16.mxu0 0
        %1442 = vmatmul.mubr.bf16.gmra.mrb[0].mxu0 %v1326
        %v1443 = vpop.f32.mrb[0].mxu0
        %v1444 = vadd.f32 0.0, %v1443
        %v1445 = vpop.f32.mrb[0].mxu0
        %v1446 = vpop.f32.mrb[0].mxu0
        %v1447 = vadd.f32 0.0, %v1446
        %v1448 = vpop.f32.mrb[0].mxu0
        %1449 = vmatprep.mubr.bf16.mxu0 0
        %1450 = vmatmul.mubr.bf16.gmra.mrb[0].mxu0 %v1329
        %v1451 = vpop.f32.mrb[0].mxu0
        %v1452 = vadd.f32 0.0, %v1451
        %v1453 = vpop.f32.mrb[0].mxu0
        %v1454 = vpop.f32.mrb[0].mxu0
        %v1455 = vadd.f32 0.0, %v1454
        %v1456 = vpop.f32.mrb[0].mxu0
        %1457 = vmatprep.mubr.bf16.mxu0 0
        %1458 = vmatmul.mubr.bf16.gmra.mrb[0].mxu0 %v1332
        %v1459 = vpop.f32.mrb[0].mxu0
        %v1460 = vadd.f32 0.0, %v1459
        %v1461 = vpop.f32.mrb[0].mxu0
        %v1462 = vpop.f32.mrb[0].mxu0
        %v1463 = vadd.f32 0.0, %v1462
        %v1464 = vpop.f32.mrb[0].mxu0
        %1465 = vmatprep.mubr.bf16.mxu0 0
        %1466 = vmatmul.mubr.bf16.gmra.mrb[0].mxu0 %v1335
        %v1467 = vpop.f32.mrb[0].mxu0
        %v1468 = vadd.f32 0.0, %v1467
        %v1469 = vpop.f32.mrb[0].mxu0
        %v1470 = vpop.f32.mrb[0].mxu0
        %v1471 = vpop.f32.mrb[0].mxu0
        %1472 = vdwg.mxu0
        %v1473 = vmax.f32 %v1184, %v1372
        %v1474 = vmax.f32 %v1185, %v1375
        %v1475 = vmax.f32 %v1186, %v1380
        %v1476 = vmax.f32 %v1187, %v1383
        %v1477 = vmax.f32 %v1188, %v1388
        %v1478 = vmax.f32 %v1189, %v1391
        %v1479 = vmax.f32 %v1190, %v1396
        %v1480 = vmax.f32 %v1191, %v1399
        %v1481 = vmax.f32 %v1192, %v1404
        %v1482 = vmax.f32 %v1193, %v1407
        %v1483 = vmax.f32 %v1194, %v1412
        %v1484 = vmax.f32 %v1195, %v1415
        %v1485 = vmax.f32 %v1196, %v1420
        %v1486 = vmax.f32 %v1197, %v1423
        %v1487 = vmax.f32 %v1198, %v1428
        %v1488 = vmax.f32 %v1199, %v1431
        %v1489 = vmax.f32 %v1200, %v1436
        %v1490 = vmax.f32 %v1201, %v1439
        %v1491 = vmax.f32 %v1202, %v1444
        %v1492 = vmax.f32 %v1203, %v1447
        %v1493 = vmax.f32 %v1204, %v1452
        %v1494 = vmax.f32 %v1205, %v1455
        %v1495 = vmax.f32 %v1206, %v1460
        %v1496 = vmax.f32 %v1207, %v1463
        %v1497 = vmax.f32 %v1208, %v1468
        %s1498 = scalar_lea.vmem %s583, 300 [#allocation2]
        %v1499 = vld [vmem:[%s1498] sm:$0xf]
        %v1500 = vld [vmem:[%s1498 + $0x4] sm:$0xf]
        %v1501 = vld [vmem:[%s1498 + $0x8] sm:$0xf]
        %v1502 = vld [vmem:[%s1498 + $0xc] sm:$0xf]
        %v1503 = vld [vmem:[%s1498 + $0x10] sm:$0xf]
        %v1504 = vld [vmem:[%s1498 + $0x14] sm:$0xf]
        %v1505 = vld [vmem:[%s1498 + $0x18] sm:$0xf]
        %v1506 = vld [vmem:[%s1498 + $0x1c] sm:$0xf]
        %v1507 = vld [vmem:[%s1498 + $0x20] sm:$0xf]
        %v1508 = vld [vmem:[%s1498 + $0x24] sm:$0xf]
        %v1509 = vld [vmem:[%s1498 + $0x28] sm:$0xf]
        %v1510 = vld [vmem:[%s1498 + $0x2c] sm:$0xf]
        %v1511 = vld [vmem:[%s1498 + $0x30] sm:$0xf]
        %v1512 = vld [vmem:[%s1498 + $0x34] sm:$0xf]
        %v1513 = vld [vmem:[%s1498 + $0x38] sm:$0xf]
        %v1514 = vld [vmem:[%s1498 + $0x3c] sm:$0xf]
        %v1515 = vld [vmem:[%s1498 + $0x40] sm:$0xf]
        %v1516 = vld [vmem:[%s1498 + $0x44] sm:$0xf]
        %v1517 = vld [vmem:[%s1498 + $0x48] sm:$0xf]
        %v1518 = vld [vmem:[%s1498 + $0x4c] sm:$0xf]
        %v1519 = vld [vmem:[%s1498 + $0x50] sm:$0xf]
        %v1520 = vld [vmem:[%s1498 + $0x54] sm:$0xf]
        %v1521 = vld [vmem:[%s1498 + $0x58] sm:$0xf]
        %v1522 = vld [vmem:[%s1498 + $0x5c] sm:$0xf]
        %v1523 = vld [vmem:[%s1498 + $0x60] sm:$0x3]
        %v1549 = vunpack.c.l.b16 %v1499
        %v1550 = vunpack.c.l.b16 %v1500
        %v1551 = vunpack.c.l.b16 %v1501
        %v1552 = vunpack.c.l.b16 %v1502
        %v1553 = vunpack.c.l.b16 %v1503
        %v1554 = vunpack.c.l.b16 %v1504
        %v1555 = vunpack.c.l.b16 %v1505
        %v1556 = vunpack.c.l.b16 %v1506
        %v1557 = vunpack.c.l.b16 %v1507
        %v1558 = vunpack.c.l.b16 %v1508
        %v1559 = vunpack.c.l.b16 %v1509
        %v1560 = vunpack.c.l.b16 %v1510
        %v1561 = vunpack.c.l.b16 %v1511
        %v1562 = vunpack.c.l.b16 %v1512
        %v1563 = vunpack.c.l.b16 %v1513
        %v1564 = vunpack.c.l.b16 %v1514
        %v1565 = vunpack.c.l.b16 %v1515
        %v1566 = vunpack.c.l.b16 %v1516
        %v1567 = vunpack.c.l.b16 %v1517
        %v1568 = vunpack.c.l.b16 %v1518
        %v1569 = vunpack.c.l.b16 %v1519
        %v1570 = vunpack.c.l.b16 %v1520
        %v1571 = vunpack.c.l.b16 %v1521
        %v1572 = vunpack.c.l.b16 %v1522
        %v1573 = vunpack.c.l.b16 %v1523
        %v1574 = vpack.c.b16 %v1550, %v1549
        %v1575 = vpack.c.b16 %v1552, %v1551
        %v1576 = vpack.c.b16 %v1554, %v1553
        %v1577 = vpack.c.b16 %v1556, %v1555
        %v1578 = vpack.c.b16 %v1558, %v1557
        %v1579 = vpack.c.b16 %v1560, %v1559
        %v1580 = vpack.c.b16 %v1562, %v1561
        %v1581 = vpack.c.b16 %v1564, %v1563
        %v1582 = vpack.c.b16 %v1566, %v1565
        %v1583 = vpack.c.b16 %v1568, %v1567
        %v1584 = vpack.c.b16 %v1570, %v1569
        %v1585 = vpack.c.b16 %v1572, %v1571
        %v1586 = vpack.c.b16 %v1573, %v1573
        %v1588 = vsel %vm737, %v1574, 0
        %v1591 = vsel %vm737, %v1575, 0
        %v1594 = vsel %vm737, %v1576, 0
        %v1597 = vsel %vm737, %v1577, 0
        %v1600 = vsel %vm737, %v1578, 0
        %v1603 = vsel %vm737, %v1579, 0
        %v1606 = vsel %vm737, %v1580, 0
        %v1609 = vsel %vm737, %v1581, 0
        %v1612 = vsel %vm737, %v1582, 0
        %v1615 = vsel %vm737, %v1583, 0
        %v1618 = vsel %vm737, %v1584, 0
        %v1621 = vsel %vm737, %v1585, 0
        %v1624 = vsel %vm737, %v1586, 0
        %1626 = vmatprep.subr.bf16.mxu0 0
        %1627 = vmatpush1.bf16.msra.mxu0 %v728
        %1628 = vmatprep.subr.bf16.mxu0 0
        %1629 = vmatpush1.bf16.msra.mxu0 %v729
        %1630 = vmatprep.subr.bf16.mxu0 0
        %1631 = vmatpush1.bf16.msra.mxu0 %v730
        %1632 = vmatprep.subr.bf16.mxu0 0
        %1633 = vmatpush1.bf16.msra.mxu0 %v731
        %1634 = vmatprep.subr.bf16.mxu0 0
        %1635 = vmatpush1.bf16.msra.mxu0 %v782
        %1636 = vmatprep.subr.bf16.mxu0 0
        %1637 = vmatpush1.bf16.msra.mxu0 0
        %1638 = vmatprep.subr.bf16.mxu0 0
        %1639 = vmatpush1.bf16.msra.mxu0 0
        %1640 = vmatprep.subr.bf16.mxu0 0
        %1641 = vmatpush1.bf16.msra.mxu0 0
        %1642 = vmatprep.subr.bf16.mxu0 0
        %1643 = vmatpush1.bf16.msra.mxu0 0
        %1644 = vmatprep.subr.bf16.mxu0 0
        %1645 = vmatpush1.bf16.msra.mxu0 0
        %1646 = vmatprep.subr.bf16.mxu0 0
        %1647 = vmatpush1.bf16.msra.mxu0 0
        %1648 = vmatprep.subr.bf16.mxu0 0
        %1649 = vmatpush1.bf16.msra.mxu0 0
        %1650 = vmatprep.subr.bf16.mxu0 0
        %1651 = vmatpush1.bf16.msra.mxu0 0
        %1652 = vmatprep.subr.bf16.mxu0 0
        %1653 = vmatpush1.bf16.msra.mxu0 0
        %1654 = vmatprep.subr.bf16.mxu0 0
        %1655 = vmatpush1.bf16.msra.mxu0 0
        %1656 = vmatprep.subr.bf16.mxu0 0
        %1657 = vmatpush1.bf16.msra.mxu0 0
        %1658 = vmatprep.mubr.bf16.mxu0 0
        %1659 = vmatmul.mubr.bf16.gmra.mrb[0].mxu0 %v1588
        %v1660 = vpop.f32.mrb[0].mxu0
        %v1661 = vadd.f32 0.0, %v1660
        %v1662 = vpop.f32.mrb[0].mxu0
        %v1663 = vpop.f32.mrb[0].mxu0
        %v1664 = vadd.f32 0.0, %v1663
        %v1665 = vpop.f32.mrb[0].mxu0
        %1666 = vmatprep.mubr.bf16.mxu0 0
        %1667 = vmatmul.mubr.bf16.gmra.mrb[0].mxu0 %v1591
        %v1668 = vpop.f32.mrb[0].mxu0
        %v1669 = vadd.f32 0.0, %v1668
        %v1670 = vpop.f32.mrb[0].mxu0
        %v1671 = vpop.f32.mrb[0].mxu0
        %v1672 = vadd.f32 0.0, %v1671
        %v1673 = vpop.f32.mrb[0].mxu0
        %1674 = vmatprep.mubr.bf16.mxu0 0
        %1675 = vmatmul.mubr.bf16.gmra.mrb[0].mxu0 %v1594
        %v1676 = vpop.f32.mrb[0].mxu0
        %v1677 = vadd.f32 0.0, %v1676
        %v1678 = vpop.f32.mrb[0].mxu0
        %v1679 = vpop.f32.mrb[0].mxu0
        %v1680 = vadd.f32 0.0, %v1679
        %v1681 = vpop.f32.mrb[0].mxu0
        %1682 = vmatprep.mubr.bf16.mxu0 0
        %1683 = vmatmul.mubr.bf16.gmra.mrb[0].mxu0 %v1597
        %v1684 = vpop.f32.mrb[0].mxu0
        %v1685 = vadd.f32 0.0, %v1684
        %v1686 = vpop.f32.mrb[0].mxu0
        %v1687 = vpop.f32.mrb[0].mxu0
        %v1688 = vadd.f32 0.0, %v1687
        %v1689 = vpop.f32.mrb[0].mxu0
        %1690 = vmatprep.mubr.bf16.mxu0 0
        %1691 = vmatmul.mubr.bf16.gmra.mrb[0].mxu0 %v1600
        %v1692 = vpop.f32.mrb[0].mxu0
        %v1693 = vadd.f32 0.0, %v1692
        %v1694 = vpop.f32.mrb[0].mxu0
        %v1695 = vpop.f32.mrb[0].mxu0
        %v1696 = vadd.f32 0.0, %v1695
        %v1697 = vpop.f32.mrb[0].mxu0
        %1698 = vmatprep.mubr.bf16.mxu0 0
        %1699 = vmatmul.mubr.bf16.gmra.mrb[0].mxu0 %v1603
        %v1700 = vpop.f32.mrb[0].mxu0
        %v1701 = vadd.f32 0.0, %v1700
        %v1702 = vpop.f32.mrb[0].mxu0
        %v1703 = vpop.f32.mrb[0].mxu0
        %v1704 = vadd.f32 0.0, %v1703
        %v1705 = vpop.f32.mrb[0].mxu0
        %1706 = vmatprep.mubr.bf16.mxu0 0
        %1707 = vmatmul.mubr.bf16.gmra.mrb[0].mxu0 %v1606
        %v1708 = vpop.f32.mrb[0].mxu0
        %v1709 = vadd.f32 0.0, %v1708
        %v1710 = vpop.f32.mrb[0].mxu0
        %v1711 = vpop.f32.mrb[0].mxu0
        %v1712 = vadd.f32 0.0, %v1711
        %v1713 = vpop.f32.mrb[0].mxu0
        %1714 = vmatprep.mubr.bf16.mxu0 0
        %1715 = vmatmul.mubr.bf16.gmra.mrb[0].mxu0 %v1609
        %v1716 = vpop.f32.mrb[0].mxu0
        %v1717 = vadd.f32 0.0, %v1716
        %v1718 = vpop.f32.mrb[0].mxu0
        %v1719 = vpop.f32.mrb[0].mxu0
        %v1720 = vadd.f32 0.0, %v1719
        %v1721 = vpop.f32.mrb[0].mxu0
        %1722 = vmatprep.mubr.bf16.mxu0 0
        %1723 = vmatmul.mubr.bf16.gmra.mrb[0].mxu0 %v1612
        %v1724 = vpop.f32.mrb[0].mxu0
        %v1725 = vadd.f32 0.0, %v1724
        %v1726 = vpop.f32.mrb[0].mxu0
        %v1727 = vpop.f32.mrb[0].mxu0
        %v1728 = vadd.f32 0.0, %v1727
        %v1729 = vpop.f32.mrb[0].mxu0
        %1730 = vmatprep.mubr.bf16.mxu0 0
        %1731 = vmatmul.mubr.bf16.gmra.mrb[0].mxu0 %v1615
        %v1732 = vpop.f32.mrb[0].mxu0
        %v1733 = vadd.f32 0.0, %v1732
        %v1734 = vpop.f32.mrb[0].mxu0
        %v1735 = vpop.f32.mrb[0].mxu0
        %v1736 = vadd.f32 0.0, %v1735
        %v1737 = vpop.f32.mrb[0].mxu0
        %1738 = vmatprep.mubr.bf16.mxu0 0
        %1739 = vmatmul.mubr.bf16.gmra.mrb[0].mxu0 %v1618
        %v1740 = vpop.f32.mrb[0].mxu0
        %v1741 = vadd.f32 0.0, %v1740
        %v1742 = vpop.f32.mrb[0].mxu0
        %v1743 = vpop.f32.mrb[0].mxu0
        %v1744 = vadd.f32 0.0, %v1743
        %v1745 = vpop.f32.mrb[0].mxu0
        %1746 = vmatprep.mubr.bf16.mxu0 0
        %1747 = vmatmul.mubr.bf16.gmra.mrb[0].mxu0 %v1621
        %v1748 = vpop.f32.mrb[0].mxu0
        %v1749 = vadd.f32 0.0, %v1748
        %v1750 = vpop.f32.mrb[0].mxu0
        %v1751 = vpop.f32.mrb[0].mxu0
        %v1752 = vadd.f32 0.0, %v1751
        %v1753 = vpop.f32.mrb[0].mxu0
        %1754 = vmatprep.mubr.bf16.mxu0 0
        %1755 = vmatmul.mubr.bf16.gmra.mrb[0].mxu0 %v1624
        %v1756 = vpop.f32.mrb[0].mxu0
        %v1757 = vadd.f32 0.0, %v1756
        %v1758 = vpop.f32.mrb[0].mxu0
        %v1759 = vpop.f32.mrb[0].mxu0
        %v1760 = vpop.f32.mrb[0].mxu0
        %1761 = vdwg.mxu0
        %v1762 = vmax.f32 %v1473, %v1661
        %v1763 = vmax.f32 %v1474, %v1664
        %v1764 = vmax.f32 %v1475, %v1669
        %v1765 = vmax.f32 %v1476, %v1672
        %v1766 = vmax.f32 %v1477, %v1677
        %v1767 = vmax.f32 %v1478, %v1680
        %v1768 = vmax.f32 %v1479, %v1685
        %v1769 = vmax.f32 %v1480, %v1688
        %v1770 = vmax.f32 %v1481, %v1693
        %v1771 = vmax.f32 %v1482, %v1696
        %v1772 = vmax.f32 %v1483, %v1701
        %v1773 = vmax.f32 %v1484, %v1704
        %v1774 = vmax.f32 %v1485, %v1709
        %v1775 = vmax.f32 %v1486, %v1712
        %v1776 = vmax.f32 %v1487, %v1717
        %v1777 = vmax.f32 %v1488, %v1720
        %v1778 = vmax.f32 %v1489, %v1725
        %v1779 = vmax.f32 %v1490, %v1728
        %v1780 = vmax.f32 %v1491, %v1733
        %v1781 = vmax.f32 %v1492, %v1736
        %v1782 = vmax.f32 %v1493, %v1741
        %v1783 = vmax.f32 %v1494, %v1744
        %v1784 = vmax.f32 %v1495, %v1749
        %v1785 = vmax.f32 %v1496, %v1752
        %v1786 = vmax.f32 %v1497, %v1757
        %v1787 = vld [vmem:[%s2] sm:$0x1]
        %v1789 = vlaneseq
        %v1790 = vshrl.u32 %v1789, 7
        %v1791 = vsub.s32 0, %v1790
        %v1792 = vrot.slane %v1787, %v1791
        %v1794 = vadd.f32 %v1762, %v1792
        %v1795 = vadd.f32 %v1763, %v1792
        %v1796 = vadd.f32 %v1764, %v1792
        %v1797 = vadd.f32 %v1765, %v1792
        %v1798 = vadd.f32 %v1766, %v1792
        %v1799 = vadd.f32 %v1767, %v1792
        %v1800 = vadd.f32 %v1768, %v1792
        %v1801 = vadd.f32 %v1769, %v1792
        %v1802 = vadd.f32 %v1770, %v1792
        %v1803 = vadd.f32 %v1771, %v1792
        %v1804 = vadd.f32 %v1772, %v1792
        %v1805 = vadd.f32 %v1773, %v1792
        %v1806 = vadd.f32 %v1774, %v1792
        %v1807 = vadd.f32 %v1775, %v1792
        %v1808 = vadd.f32 %v1776, %v1792
        %v1809 = vadd.f32 %v1777, %v1792
        %v1810 = vadd.f32 %v1778, %v1792
        %v1811 = vadd.f32 %v1779, %v1792
        %v1812 = vadd.f32 %v1780, %v1792
        %v1813 = vadd.f32 %v1781, %v1792
        %v1814 = vadd.f32 %v1782, %v1792
        %v1815 = vadd.f32 %v1783, %v1792
        %v1816 = vadd.f32 %v1784, %v1792
        %v1817 = vadd.f32 %v1785, %v1792
        %v1818 = vadd.f32 %v1786, %v1792
        %v1819 = vmax.f32 %v1794, 0.0
        %v1820 = vmax.f32 %v1795, 0.0
        %v1821 = vmax.f32 %v1796, 0.0
        %v1822 = vmax.f32 %v1797, 0.0
        %v1823 = vmax.f32 %v1798, 0.0
        %v1824 = vmax.f32 %v1799, 0.0
        %v1825 = vmax.f32 %v1800, 0.0
        %v1826 = vmax.f32 %v1801, 0.0
        %v1827 = vmax.f32 %v1802, 0.0
        %v1828 = vmax.f32 %v1803, 0.0
        %v1829 = vmax.f32 %v1804, 0.0
        %v1830 = vmax.f32 %v1805, 0.0
        %v1831 = vmax.f32 %v1806, 0.0
        %v1832 = vmax.f32 %v1807, 0.0
        %v1833 = vmax.f32 %v1808, 0.0
        %v1834 = vmax.f32 %v1809, 0.0
        %v1835 = vmax.f32 %v1810, 0.0
        %v1836 = vmax.f32 %v1811, 0.0
        %v1837 = vmax.f32 %v1812, 0.0
        %v1838 = vmax.f32 %v1813, 0.0
        %v1839 = vmax.f32 %v1814, 0.0
        %v1840 = vmax.f32 %v1815, 0.0
        %v1841 = vmax.f32 %v1816, 0.0
        %v1842 = vmax.f32 %v1817, 0.0
        %v1843 = vmax.f32 %v1818, 0.0
        %v1844 = vpack.c.bf16 %v1820, %v1819
        %v1845 = vpack.c.bf16 %v1822, %v1821
        %v1846 = vpack.c.bf16 %v1824, %v1823
        %v1847 = vpack.c.bf16 %v1826, %v1825
        %v1848 = vpack.c.bf16 %v1828, %v1827
        %v1849 = vpack.c.bf16 %v1830, %v1829
        %v1850 = vpack.c.bf16 %v1832, %v1831
        %v1851 = vpack.c.bf16 %v1834, %v1833
        %v1852 = vpack.c.bf16 %v1836, %v1835
        %v1853 = vpack.c.bf16 %v1838, %v1837
        %v1854 = vpack.c.bf16 %v1840, %v1839
        %v1855 = vpack.c.bf16 %v1842, %v1841
        %v1856 = vpack.c.bf16 %v1843, %v1843
        %v1870 = vunpack.c.l.b16 %v1844
        %v1871 = vunpack.c.h.b16 %v1844
        %v1872 = vunpack.c.l.b16 %v1845
        %v1873 = vunpack.c.h.b16 %v1845
        %v1874 = vunpack.c.l.b16 %v1846
        %v1875 = vunpack.c.h.b16 %v1846
        %v1876 = vunpack.c.l.b16 %v1847
        %v1877 = vunpack.c.h.b16 %v1847
        %v1878 = vunpack.c.l.b16 %v1848
        %v1879 = vunpack.c.h.b16 %v1848
        %v1880 = vunpack.c.l.b16 %v1849
        %v1881 = vunpack.c.h.b16 %v1849
        %v1882 = vunpack.c.l.b16 %v1850
        %v1883 = vunpack.c.h.b16 %v1850
        %v1884 = vunpack.c.l.b16 %v1851
        %v1885 = vunpack.c.h.b16 %v1851
        %v1886 = vunpack.c.l.b16 %v1852
        %v1887 = vunpack.c.h.b16 %v1852
        %v1888 = vunpack.c.l.b16 %v1853
        %v1889 = vunpack.c.h.b16 %v1853
        %v1890 = vunpack.c.l.b16 %v1854
        %v1891 = vunpack.c.h.b16 %v1854
        %v1892 = vunpack.c.l.b16 %v1855
        %v1893 = vunpack.c.h.b16 %v1855
        %v1894 = vunpack.c.l.b16 %v1856
        %v1895 = vpack.c.b16 %v1870, %v1870
        %v1896 = vpack.c.b16 %v1871, %v1871
        %v1897 = vpack.c.b16 %v1872, %v1872
        %v1898 = vpack.c.b16 %v1873, %v1873
        %v1899 = vpack.c.b16 %v1874, %v1874
        %v1900 = vpack.c.b16 %v1875, %v1875
        %v1901 = vpack.c.b16 %v1876, %v1876
        %v1902 = vpack.c.b16 %v1877, %v1877
        %v1903 = vpack.c.b16 %v1878, %v1878
        %v1904 = vpack.c.b16 %v1879, %v1879
        %v1905 = vpack.c.b16 %v1880, %v1880
        %v1906 = vpack.c.b16 %v1881, %v1881
        %v1907 = vpack.c.b16 %v1882, %v1882
        %v1908 = vpack.c.b16 %v1883, %v1883
        %v1909 = vpack.c.b16 %v1884, %v1884
        %v1910 = vpack.c.b16 %v1885, %v1885
        %v1911 = vpack.c.b16 %v1886, %v1886
        %v1912 = vpack.c.b16 %v1887, %v1887
        %v1913 = vpack.c.b16 %v1888, %v1888
        %v1914 = vpack.c.b16 %v1889, %v1889
        %v1915 = vpack.c.b16 %v1890, %v1890
        %v1916 = vpack.c.b16 %v1891, %v1891
        %v1917 = vpack.c.b16 %v1892, %v1892
        %v1918 = vpack.c.b16 %v1893, %v1893
        %v1919 = vpack.c.b16 %v1894, %v1894
        %vm1945 = vcmask 44032
        %1946 = vst.msk [vmem:[%s608] sm:$0xf] %vm1945, %v1895
        %1947 = vst.msk [vmem:[%s608 + $0x4] sm:$0xf] %vm1945, %v1896
        %1948 = vst.msk [vmem:[%s608 + $0x8] sm:$0xf] %vm1945, %v1897
        %1949 = vst.msk [vmem:[%s608 + $0xc] sm:$0xf] %vm1945, %v1898
        %1950 = vst.msk [vmem:[%s608 + $0x10] sm:$0xf] %vm1945, %v1899
        %1951 = vst.msk [vmem:[%s608 + $0x14] sm:$0xf] %vm1945, %v1900
        %1952 = vst.msk [vmem:[%s608 + $0x18] sm:$0xf] %vm1945, %v1901
        %1953 = vst.msk [vmem:[%s608 + $0x1c] sm:$0xf] %vm1945, %v1902
        %1954 = vst.msk [vmem:[%s608 + $0x20] sm:$0xf] %vm1945, %v1903
        %1955 = vst.msk [vmem:[%s608 + $0x24] sm:$0xf] %vm1945, %v1904
        %1956 = vst.msk [vmem:[%s608 + $0x28] sm:$0xf] %vm1945, %v1905
        %1957 = vst.msk [vmem:[%s608 + $0x2c] sm:$0xf] %vm1945, %v1906
        %1958 = vst.msk [vmem:[%s608 + $0x30] sm:$0xf] %vm1945, %v1907
        %1959 = vst.msk [vmem:[%s608 + $0x34] sm:$0xf] %vm1945, %v1908
        %1960 = vst.msk [vmem:[%s608 + $0x38] sm:$0xf] %vm1945, %v1909
        %1961 = vst.msk [vmem:[%s608 + $0x3c] sm:$0xf] %vm1945, %v1910
        %1962 = vst.msk [vmem:[%s608 + $0x40] sm:$0xf] %vm1945, %v1911
        %1963 = vst.msk [vmem:[%s608 + $0x44] sm:$0xf] %vm1945, %v1912
        %1964 = vst.msk [vmem:[%s608 + $0x48] sm:$0xf] %vm1945, %v1913
        %1965 = vst.msk [vmem:[%s608 + $0x4c] sm:$0xf] %vm1945, %v1914
        %1966 = vst.msk [vmem:[%s608 + $0x50] sm:$0xf] %vm1945, %v1915
        %1967 = vst.msk [vmem:[%s608 + $0x54] sm:$0xf] %vm1945, %v1916
        %1968 = vst.msk [vmem:[%s608 + $0x58] sm:$0xf] %vm1945, %v1917
        %1969 = vst.msk [vmem:[%s608 + $0x5c] sm:$0xf] %vm1945, %v1918
        %vm1970 = vcmask 41984
        %1971 = vst.msk [vmem:[%s608 + $0x60] sm:$0x3] %vm1970, %v1919
        %p1972 = scmp.lt.s32.totalorder %s14, 1
        %s1973 = scalar_select %p1972, %s14, 1
        %s1974 = smul.addr %s1973, 25
        %s1975 = smul.addr %s1974, 4
        %s1976 = scalar_lea.vmem %s3, %s1975
        // Predicated region
        $region74: #{cnn_forward.3} parent=68 // pred_check
          %p1977 = pneg %p100
        $region75: #{cnn_forward.3} parent=68 // pred_check_branch
          %1979 = sbr.rel (%p1977) target = $region77
        $region76: #{cnn_forward.3} parent=68 // pred_region
          _
        $region77: #{cnn_forward.3} parent=68 // pred_fallthru
          _
      $region69: #{cnn_forward.3} parent=5 // pred_fallthru
        _
      %p1980 = scmp.le.s32.totalorder 2, %s9
      // Predicated region
      $region78: #{cnn_forward.3} parent=5 // pred_check
        %p1981 = pneg %p1980
      $region79: #{cnn_forward.3} parent=5 // pred_check_branch
        %1983 = sbr.rel (%p1981) target = $region81
      $region80: #{cnn_forward.3} parent=5 // pred_region
        %s1984 = ssub.s32 %s9, 2
        // Predicated region
        $region82: #{cnn_forward.3} parent=80 // pred_check
          %p1985 = pneg %p106
        $region83: #{cnn_forward.3} parent=80 // pred_check_branch
          %1987 = sbr.rel (%p1985) target = $region85
        $region84: #{cnn_forward.3} parent=80 // pred_region
          %p1988 = scmp.lt.s32.totalorder %s15, 1
          %s1989 = scalar_select %p1988, %s15, 1
          %s1990 = smul.addr %s1989, 25
          %s1991 = smul.addr %s1990, 4
          %s1992 = scalar_lea.vmem %s3, %s1991
        $region85: #{cnn_forward.3} parent=80 // pred_fallthru
          _
      $region81: #{cnn_forward.3} parent=5 // pred_fallthru
        _
    $region6: #{cnn_forward.3} parent=1 // loop_footer
      %s13 = sadd.s32 1, %s9
    $region7: #{cnn_forward.3} parent=1 // loop_footer_branch
      %8 = sbr.rel target = $region3
    $region8: #{cnn_forward.3} parent=1 // loop_exit
      _

// kernel: cnn_forward.4
$region0: #{cnn_forward.4}
  #allocation0 [shape = 'u32[]', space=smem, size = 0x4, offset = 0x4, fixed_abs, tag = 'smem constant byte address 0x4 - core index']
  #allocation1 [shape = 'u32[144,128]{1,0:T(1,128)}', space=vmem, size = 0x12000, scoped, tag = 'internal scratch']
  %s0 = inlined_call_operand.vmem [shape: bf16[4,2,25,150], index: 0, kind: input, shape index: {}]
  %s1 = inlined_call_operand.vmem [shape: bf16[150,16], index: 1, kind: input, shape index: {}]
  %s2 = inlined_call_operand.vmem [shape: f32[1,16], index: 2, kind: input, shape index: {}]
  %s3 = inlined_call_operand.vmem [shape: bf16[2,25,16], index: 3, kind: output, shape index: {}]
  %s4 = sld [smem:[#allocation0]]
  $region83: #{cnn_forward.4} parent=0
    _
  %s6 = ssub.s32 1, %s4
  %s7 = scalar_select 0, %s6, %s4
  $region1: #{cnn_forward.4} parent=0
    #allocation2 [shape = 'u8[131072]{0}', space=vmem, size = 0x20000, scoped, tag = 'input window, operand 0']
    loop: start=0, step=1, limit=4
    $region2: #{cnn_forward.4} parent=1 // loop_pre_header
      _
    $region3: #{cnn_forward.4} parent=1 // loop_header
      %s9 = sphi 0, %s13
      %p10 = scmp.ge.s32.totalorder %s9, 4
      %s19 = sphi 0, %s21
      %s22 = sphi 0, %s19
      %s23 = sphi 0, %s22
      %s39 = sphi 0, %s23
      %s43 = sphi 0, %s43
      %s45 = sphi 0, %s43
      %s46 = sphi 0, %s45
      %s60 = sphi 0, %s46
      %s64 = sphi 0, %s64
      %s66 = sphi 0, %s64
      %s67 = sphi 0, %s66
      %s81 = sphi 0, %s67
      %s87 = sphi 0, %s89
      %s90 = sphi 0, %s87
      %s91 = sphi 0, %s90
      %s107 = sphi 0, %s91
    $region4: #{cnn_forward.4} parent=1 // loop_header_branch
      %12 = sbr.rel (%p10) target = $region8
    $region5: #{cnn_forward.4} parent=1 // loop_body
      %s14 = ssub.s32 %s9, 1
      %s15 = ssub.s32 %s9, 2
      %s16 = sadd.s32 %s9, 1
      %s17 = ssub.s32 %s9, %s16
      %p18 = scmp.eq.s32.totalorder %s17, 0
      %s20 = sadd.s32 %s19, 1
      %s21 = scalar_select %p18, %s19, %s20
      %p24 = pneg %p18
      %p25 = scmp.eq.s32.totalorder %s9, 1
      %p26 = por %p24, %p25
      %p27 = scmp.ne.s32.totalorder %s19, %s22
      %p28 = scmp.eq.s32.totalorder %s9, 0
      %p29 = por %p27, %p28
      %p30 = scmp.ne.s32.totalorder %s19, %s22
      %p31 = scmp.eq.s32.totalorder %s14, 1
      %p32 = por %p30, %p31
      %p33 = scmp.ne.s32.totalorder %s22, %s23
      %p34 = scmp.eq.s32.totalorder %s14, 0
      %p35 = por %p33, %p34
      %p36 = scmp.ne.s32.totalorder %s22, %s23
      %p37 = scmp.eq.s32.totalorder %s15, 1
      %p38 = por %p36, %p37
      %p40 = scmp.ne.s32.totalorder %s23, %s39
      %p41 = scmp.eq.s32.totalorder %s15, 0
      %p42 = por %p40, %p41
      %s44 = sadd.s32 %s43, 1
      %p47 = scmp.eq.s32.totalorder %s9, 1
      %p48 = scmp.ne.s32.totalorder %s43, %s45
      %p49 = scmp.eq.s32.totalorder %s9, 0
      %p50 = por %p48, %p49
      %p51 = scmp.ne.s32.totalorder %s43, %s45
      %p52 = scmp.eq.s32.totalorder %s14, 1
      %p53 = por %p51, %p52
      %p54 = scmp.ne.s32.totalorder %s45, %s46
      %p55 = scmp.eq.s32.totalorder %s14, 0
      %p56 = por %p54, %p55
      %p57 = scmp.ne.s32.totalorder %s45, %s46
      %p58 = scmp.eq.s32.totalorder %s15, 1
      %p59 = por %p57, %p58
      %p61 = scmp.ne.s32.totalorder %s46, %s60
      %p62 = scmp.eq.s32.totalorder %s15, 0
      %p63 = por %p61, %p62
      %s65 = sadd.s32 %s64, 1
      %p68 = scmp.eq.s32.totalorder %s9, 1
      %p69 = scmp.ne.s32.totalorder %s64, %s66
      %p70 = scmp.eq.s32.totalorder %s9, 0
      %p71 = por %p69, %p70
      %p72 = scmp.ne.s32.totalorder %s64, %s66
      %p73 = scmp.eq.s32.totalorder %s14, 1
      %p74 = por %p72, %p73
      %p75 = scmp.ne.s32.totalorder %s66, %s67
      %p76 = scmp.eq.s32.totalorder %s14, 0
      %p77 = por %p75, %p76
      %p78 = scmp.ne.s32.totalorder %s66, %s67
      %p79 = scmp.eq.s32.totalorder %s15, 1
      %p80 = por %p78, %p79
      %p82 = scmp.ne.s32.totalorder %s67, %s81
      %p83 = scmp.eq.s32.totalorder %s15, 0
      %p84 = por %p82, %p83
      %s85 = ssub.s32 %s9, %s16
      %p86 = scmp.eq.s32.totalorder %s85, 0
      %s88 = sadd.s32 %s87, 1
      %s89 = scalar_select %p86, %s87, %s88
      %p92 = pneg %p86
      %p93 = scmp.eq.s32.totalorder %s9, 1
      %p94 = por %p92, %p93
      %p95 = scmp.ne.s32.totalorder %s87, %s90
      %p96 = scmp.eq.s32.totalorder %s9, 0
      %p97 = por %p95, %p96
      %p98 = scmp.ne.s32.totalorder %s87, %s90
      %p99 = scmp.eq.s32.totalorder %s14, 1
      %p100 = por %p98, %p99
      %p101 = scmp.ne.s32.totalorder %s90, %s91
      %p102 = scmp.eq.s32.totalorder %s14, 0
      %p103 = por %p101, %p102
      %p104 = scmp.ne.s32.totalorder %s90, %s91
      %p105 = scmp.eq.s32.totalorder %s15, 1
      %p106 = por %p104, %p105
      %p108 = scmp.ne.s32.totalorder %s91, %s107
      %p109 = scmp.eq.s32.totalorder %s15, 0
      %p110 = por %p108, %p109
      %p111 = scmp.le.s32.totalorder 1, %s9
      %p112 = scmp.lt.s32.totalorder %s9, 3
      %p113 = pnand %p111, %p112
      %p114 = pneg %p113
      // Predicated region
      $region9: #{cnn_forward.4} parent=5 // pred_check
        _
      $region10: #{cnn_forward.4} parent=5 // pred_check_branch
        %116 = sbr.rel (%p113) target = $region12
      $region11: #{cnn_forward.4} parent=5 // pred_region
        %s117 = ssub.s32 %s9, 1
        // Predicated region
        $region13: #{cnn_forward.4} parent=11 // pred_check
          %p118 = pneg %p56
        $region14: #{cnn_forward.4} parent=11 // pred_check_branch
          %120 = sbr.rel (%p118) target = $region16
        $region15: #{cnn_forward.4} parent=11 // pred_region
          _
        $region16: #{cnn_forward.4} parent=11 // pred_fallthru
          _
        // Predicated region
        $region17: #{cnn_forward.4} parent=11 // pred_check
          %p121 = pneg %p77
        $region18: #{cnn_forward.4} parent=11 // pred_check_branch
          %123 = sbr.rel (%p121) target = $region20
        $region19: #{cnn_forward.4} parent=11 // pred_region
          _
        $region20: #{cnn_forward.4} parent=11 // pred_fallthru
          _
      $region12: #{cnn_forward.4} parent=5 // pred_fallthru
        _
      %p124 = scmp.lt.s32.totalorder %s9, 2
      // Predicated region
      $region21: #{cnn_forward.4} parent=5 // pred_check
        %p125 = pneg %p124
      $region22: #{cnn_forward.4} parent=5 // pred_check_branch
        %127 = sbr.rel (%p125) target = $region24
      $region23: #{cnn_forward.4} parent=5 // pred_region
        // Predicated region
        $region25: #{cnn_forward.4} parent=23 // pred_check
          %p128 = pneg %p29
        $region26: #{cnn_forward.4} parent=23 // pred_check_branch
          %130 = sbr.rel (%p128) target = $region28
        $region27: #{cnn_forward.4} parent=23 // pred_region
          %s131 = sand.u32 %s19, 1
          %s132 = sand.u32 %s19, 1
          %s133 = smul.addr %s132, 128
          %s134 = scalar_lea.vmem [#allocation2], %s133
          %s135 = smul.addr %s9, 8
          %s136 = smul.addr %s135, 4
          %s137 = scalar_lea.vmem %s0, %s136
          // Predicated region
          $region29: #{cnn_forward.4} parent=27 // pred_check
            _
          $region30: #{cnn_forward.4} parent=27 // pred_check_branch
            %139 = sbr.rel (0) target = $region32
          $region31: #{cnn_forward.4} parent=27 // pred_region
            // Predicated region
            $region33: #{cnn_forward.4} parent=31 // pred_check
              _
            $region34: #{cnn_forward.4} parent=31 // pred_check_branch
              %141 = sbr.rel (0) target = $region36
            $region35: #{cnn_forward.4} parent=31 // pred_region
              // Predicated region
              $region48: #{cnn_forward.4} parent=35 // pred_check
                _
              $region49: #{cnn_forward.4} parent=35 // pred_check_branch
                %186 = sbr.rel (0) target = $region51
              $region50: #{cnn_forward.4} parent=35 // pred_region
                loop: start=0, step=1, limit=1
                $region52: #{cnn_forward.4} parent=50 // loop_pre_header
                  _
                $region53: #{cnn_forward.4} parent=50 // loop_header
                  %s188 = sphi 0, %s192
                  %p189 = scmp.ge.s32.totalorder %s188, 1
                  %s193 = sphi %s137, %s137
                  %s194 = sphi %s134, %s134
                $region54: #{cnn_forward.4} parent=50 // loop_header_branch
                  %191 = sbr.rel (%p189) target = $region58
                $region55: #{cnn_forward.4} parent=50 // loop_body
                  %v195 = vld [vmem:[%s193] sm:$0xff]
                  %196 = vst [vmem:[%s194] sm:$0xff] %v195
                  %v197 = vld [vmem:[%s193 + $0x8] sm:$0xff]
                  %198 = vst [vmem:[%s194 + $0x8] sm:$0xff] %v197
                  %v199 = vld [vmem:[%s193 + $0x10] sm:$0xff]
                  %200 = vst [vmem:[%s194 + $0x10] sm:$0xff] %v199
                  %v201 = vld [vmem:[%s193 + $0x18] sm:$0xff]
                  %202 = vst [vmem:[%s194 + $0x18] sm:$0xff] %v201
                  %v203 = vld [vmem:[%s193 + $0x40] sm:$0xff]
                  %204 = vst [vmem:[%s194 + $0x20] sm:$0xff] %v203
                  %v205 = vld [vmem:[%s193 + $0x48] sm:$0xff]
                  %206 = vst [vmem:[%s194 + $0x28] sm:$0xff] %v205
                  %v207 = vld [vmem:[%s193 + $0x50] sm:$0xff]
                  %208 = vst [vmem:[%s194 + $0x30] sm:$0xff] %v207
                  %v209 = vld [vmem:[%s193 + $0x58] sm:$0xff]
                  %210 = vst [vmem:[%s194 + $0x38] sm:$0xff] %v209
                  %v211 = vld [vmem:[%s193 + $0x80] sm:$0xff]
                  %212 = vst [vmem:[%s194 + $0x40] sm:$0xff] %v211
                  %v213 = vld [vmem:[%s193 + $0x88] sm:$0xff]
                  %214 = vst [vmem:[%s194 + $0x48] sm:$0xff] %v213
                  %v215 = vld [vmem:[%s193 + $0x90] sm:$0xff]
                  %216 = vst [vmem:[%s194 + $0x50] sm:$0xff] %v215
                  %v217 = vld [vmem:[%s193 + $0x98] sm:$0xff]
                  %218 = vst [vmem:[%s194 + $0x58] sm:$0xff] %v217
                  %v219 = vld [vmem:[%s193 + $0xc0] sm:$0xff]
                  %220 = vst [vmem:[%s194 + $0x60] sm:$0xff] %v219
                  %v221 = vld [vmem:[%s193 + $0xc8] sm:$0xff]
                  %222 = vst [vmem:[%s194 + $0x68] sm:$0xff] %v221
                  %v223 = vld [vmem:[%s193 + $0xd0] sm:$0xff]
                  %224 = vst [vmem:[%s194 + $0x70] sm:$0xff] %v223
                  %v225 = vld [vmem:[%s193 + $0xd8] sm:$0xff]
                  %226 = vst [vmem:[%s194 + $0x78] sm:$0xff] %v225
                $region56: #{cnn_forward.4} parent=50 // loop_footer
                  %s192 = sadd.s32 1, %s188
                $region57: #{cnn_forward.4} parent=50 // loop_footer_branch
                  %187 = sbr.rel target = $region53
                $region58: #{cnn_forward.4} parent=50 // loop_exit
                  _
              $region51: #{cnn_forward.4} parent=35 // pred_fallthru
                _
              // Predicated region
              $region59: #{cnn_forward.4} parent=35 // pred_check
                _
              $region60: #{cnn_forward.4} parent=35 // pred_check_branch
                %228 = sbr.rel target = $region62
              $region61: #{cnn_forward.4} parent=35 // pred_region
                _
              $region62: #{cnn_forward.4} parent=35 // pred_fallthru
                _
            $region36: #{cnn_forward.4} parent=31 // pred_fallthru
              _
            // Predicated region
            $region37: #{cnn_forward.4} parent=31 // pred_check
              _
            $region38: #{cnn_forward.4} parent=31 // pred_check_branch
              %143 = sbr.rel target = $region40
            $region39: #{cnn_forward.4} parent=31 // pred_region
              loop: start=0, step=1, limit=1
              $region41: #{cnn_forward.4} parent=39 // loop_pre_header
                _
              $region42: #{cnn_forward.4} parent=39 // loop_header
                %s146 = sphi 0, %s150
                %p147 = scmp.ge.s32.totalorder %s146, 1
                %s151 = sphi %s137, %s137
                %s152 = sphi %s134, %s134
              $region43: #{cnn_forward.4} parent=39 // loop_header_branch
                %149 = sbr.rel (%p147) target = $region47
              $region44: #{cnn_forward.4} parent=39 // loop_body
                %v153 = vld [vmem:[%s151] sm:$0xff]
                %154 = vst [vmem:[%s152] sm:$0xff] %v153
                %v155 = vld [vmem:[%s151 + $0x8] sm:$0xff]
                %156 = vst [vmem:[%s152 + $0x8] sm:$0xff] %v155
                %v157 = vld [vmem:[%s151 + $0x10] sm:$0xff]
                %158 = vst [vmem:[%s152 + $0x10] sm:$0xff] %v157
                %v159 = vld [vmem:[%s151 + $0x18] sm:$0xff]
                %160 = vst [vmem:[%s152 + $0x18] sm:$0xff] %v159
                %v161 = vld [vmem:[%s151 + $0x40] sm:$0xff]
                %162 = vst [vmem:[%s152 + $0x20] sm:$0xff] %v161
                %v163 = vld [vmem:[%s151 + $0x48] sm:$0xff]
                %164 = vst [vmem:[%s152 + $0x28] sm:$0xff] %v163
                %v165 = vld [vmem:[%s151 + $0x50] sm:$0xff]
                %166 = vst [vmem:[%s152 + $0x30] sm:$0xff] %v165
                %v167 = vld [vmem:[%s151 + $0x58] sm:$0xff]
                %168 = vst [vmem:[%s152 + $0x38] sm:$0xff] %v167
                %v169 = vld [vmem:[%s151 + $0x80] sm:$0xff]
                %170 = vst [vmem:[%s152 + $0x40] sm:$0xff] %v169
                %v171 = vld [vmem:[%s151 + $0x88] sm:$0xff]
                %172 = vst [vmem:[%s152 + $0x48] sm:$0xff] %v171
                %v173 = vld [vmem:[%s151 + $0x90] sm:$0xff]
                %174 = vst [vmem:[%s152 + $0x50] sm:$0xff] %v173
                %v175 = vld [vmem:[%s151 + $0x98] sm:$0xff]
                %176 = vst [vmem:[%s152 + $0x58] sm:$0xff] %v175
                %v177 = vld [vmem:[%s151 + $0xc0] sm:$0xff]
                %178 = vst [vmem:[%s152 + $0x60] sm:$0xff] %v177
                %v179 = vld [vmem:[%s151 + $0xc8] sm:$0xff]
                %180 = vst [vmem:[%s152 + $0x68] sm:$0xff] %v179
                %v181 = vld [vmem:[%s151 + $0xd0] sm:$0xff]
                %182 = vst [vmem:[%s152 + $0x70] sm:$0xff] %v181
                %v183 = vld [vmem:[%s151 + $0xd8] sm:$0xff]
                %184 = vst [vmem:[%s152 + $0x78] sm:$0xff] %v183
              $region45: #{cnn_forward.4} parent=39 // loop_footer
                %s150 = sadd.s32 1, %s146
              $region46: #{cnn_forward.4} parent=39 // loop_footer_branch
                %145 = sbr.rel target = $region42
              $region47: #{cnn_forward.4} parent=39 // loop_exit
                _
            $region40: #{cnn_forward.4} parent=31 // pred_fallthru
              _
          $region32: #{cnn_forward.4} parent=27 // pred_fallthru
            _
          %229 = vnop
        $region28: #{cnn_forward.4} parent=23 // pred_fallthru
          _
      $region24: #{cnn_forward.4} parent=5 // pred_fallthru
        _
      %p230 = scmp.le.s32.totalorder 1, %s9
      %p231 = scmp.lt.s32.totalorder %s9, 3
      %p232 = pnand %p230, %p231
      %p233 = pneg %p232
      // Predicated region
      $region63: #{cnn_forward.4} parent=5 // pred_check
        _
      $region64: #{cnn_forward.4} parent=5 // pred_check_branch
        %235 = sbr.rel (%p232) target = $region66
      $region65: #{cnn_forward.4} parent=5 // pred_region
        %s236 = ssub.s32 %s9, 1
        %s237 = sand.u32 %s22, 1
        %s238 = sand.u32 %s22, 1
        %s239 = smul.addr %s238, 128
        %s240 = scalar_lea.vmem [#allocation2], %s239
        // Predicated region
        $region67: #{cnn_forward.4} parent=65 // pred_check
          %p241 = pneg %p35
        $region68: #{cnn_forward.4} parent=65 // pred_check_branch
          %243 = sbr.rel (%p241) target = $region70
        $region69: #{cnn_forward.4} parent=65 // pred_region
          _
        $region70: #{cnn_forward.4} parent=65 // pred_fallthru
          _
        %s244 = sand.u32 %s22, 1
        %s245 = sand.u32 %s22, 1
        %s246 = smul.addr %s245, 128
        %s247 = scalar_lea.vmem [#allocation2], %s246
        %p248 = pneg %p35
        %p249 = pneg %p32
        %p250 = pneg %p56
        %p251 = pneg %p53
        %p252 = pneg %p77
        %p253 = pneg %p74
        %p254 = pneg %p103
        %p255 = pneg %p100
        %p256 = scmp.lt.s32.totalorder %s14, 1
        %s257 = scalar_select %p256, %s14, 1
        %s258 = smul.addr %s257, 4
        %s259 = smul.addr %s258, 4
        %s260 = scalar_lea.vmem %s3, %s259
        %p261 = scmp.lt.s32.totalorder %s14, 1
        %s262 = scalar_select %p261, %s14, 1
        %s263 = smul.addr %s262, 4
        %s264 = smul.addr %s263, 4
        %s265 = scalar_lea.vmem %s3, %s264
        %v267 = vld [vmem:[%s1] sm:$0xf]
        %v268 = vld [vmem:[%s1 + $0x4] sm:$0xf]
        %v269 = vld [vmem:[%s1 + $0x8] sm:$0xf]
        %v270 = vld [vmem:[%s1 + $0xc] sm:$0xf]
        %v271 = vld [vmem:[%s1 + $0x10] sm:$0xf]
        %v272 = vld [vmem:[%s1 + $0x14] sm:$0xf]
        %v273 = vld [vmem:[%s1 + $0x18] sm:$0xf]
        %v274 = vld [vmem:[%s1 + $0x1c] sm:$0xf]
        %v275 = vld [vmem:[%s1 + $0x20] sm:$0xf]
        %v276 = vld [vmem:[%s1 + $0x24] sm:$0xf]
        %v277 = vld [vmem:[%s1 + $0x28] sm:$0xf]
        %v278 = vld [vmem:[%s1 + $0x2c] sm:$0xf]
        %v279 = vld [vmem:[%s1 + $0x30] sm:$0xf]
        %v280 = vld [vmem:[%s1 + $0x34] sm:$0xf]
        %v281 = vld [vmem:[%s1 + $0x38] sm:$0xf]
        %v282 = vld [vmem:[%s1 + $0x3c] sm:$0xf]
        %v283 = vld [vmem:[%s1 + $0x40] sm:$0xf]
        %v284 = vld [vmem:[%s1 + $0x44] sm:$0xf]
        %v285 = vld [vmem:[%s1 + $0x48] sm:$0x7]
        %v286 = vld [vmem:[%s240] sm:$0xff]
        %v287 = vld [vmem:[%s240 + $0x8] sm:$0xff]
        %v288 = vld [vmem:[%s240 + $0x10] sm:$0xff]
        %v289 = vld [vmem:[%s240 + $0x18] sm:$0x11]
        %v294 = vunpack.c.l.b16 %v286
        %v295 = vunpack.c.h.b16 %v286
        %v296 = vunpack.c.l.b16 %v287
        %v297 = vunpack.c.h.b16 %v287
        %v298 = vunpack.c.l.b16 %v288
        %v299 = vunpack.c.h.b16 %v288
        %v300 = vunpack.c.l.b16 %v289
        %v301 = vunpack.c.h.b16 %v289
        %v302 = vpack.c.b16 %v296, %v294
        %v303 = vpack.c.b16 %v297, %v295
        %v304 = vpack.c.b16 %v300, %v298
        %v305 = vpack.c.b16 %v301, %v299
        %v327 = vunpack.c.l.b16 %v267
        %v328 = vunpack.c.l.b16 %v268
        %v329 = vunpack.c.l.b16 %v269
        %v330 = vunpack.c.l.b16 %v270
        %v331 = vunpack.c.l.b16 %v271
        %v332 = vunpack.c.l.b16 %v272
        %v333 = vunpack.c.l.b16 %v273
        %v334 = vunpack.c.l.b16 %v274
        %v335 = vunpack.c.l.b16 %v275
        %v336 = vunpack.c.l.b16 %v276
        %v337 = vunpack.c.l.b16 %v277
        %v338 = vunpack.c.l.b16 %v278
        %v339 = vunpack.c.l.b16 %v279
        %v340 = vunpack.c.l.b16 %v280
        %v341 = vunpack.c.l.b16 %v281
        %v342 = vunpack.c.l.b16 %v282
        %v343 = vunpack.c.l.b16 %v283
        %v344 = vunpack.c.l.b16 %v284
        %v345 = vunpack.c.l.b16 %v285
        %v346 = vpack.c.b16 %v328, %v327
        %v347 = vpack.c.b16 %v330, %v329
        %v348 = vpack.c.b16 %v332, %v331
        %v349 = vpack.c.b16 %v334, %v333
        %v350 = vpack.c.b16 %v336, %v335
        %v351 = vpack.c.b16 %v338, %v337
        %v352 = vpack.c.b16 %v340, %v339
        %v353 = vpack.c.b16 %v342, %v341
        %v354 = vpack.c.b16 %v344, %v343
        %v355 = vpack.c.b16 %v345, %v345
        %vm365 = vcmask 179200
        %v367 = vsel %vm365, %v303, 0
        %v370 = vsel %vm365, %v305, 0
        %vm372 = vcmask 1042432
        %v374 = vsel %vm372, %v355, 0
        %376 = vmatprep.subr.bf16.mxu0 0
        %377 = vmatpush1.bf16.msra.mxu0 %v346
        %378 = vmatprep.subr.bf16.mxu0 0
        %379 = vmatpush1.bf16.msra.mxu0 %v347
        %380 = vmatprep.subr.bf16.mxu0 0
        %381 = vmatpush1.bf16.msra.mxu0 %v348
        %382 = vmatprep.subr.bf16.mxu0 0
        %383 = vmatpush1.bf16.msra.mxu0 %v349
        %384 = vmatprep.subr.bf16.mxu0 0
        %385 = vmatpush1.bf16.msra.mxu0 %v350
        %386 = vmatprep.subr.bf16.mxu0 0
        %387 = vmatpush1.bf16.msra.mxu0 %v351
        %388 = vmatprep.subr.bf16.mxu0 0
        %389 = vmatpush1.bf16.msra.mxu0 %v352
        %390 = vmatprep.subr.bf16.mxu0 0
        %391 = vmatpush1.bf16.msra.mxu0 %v353
        %392 = vmatprep.subr.bf16.mxu0 0
        %393 = vmatpush1.bf16.msra.mxu0 %v354
        %394 = vmatprep.subr.bf16.mxu0 0
        %395 = vmatpush1.bf16.msra.mxu0 %v374
        %396 = vmatprep.subr.bf16.mxu0 0
        %397 = vmatpush1.bf16.msra.mxu0 0
        %398 = vmatprep.subr.bf16.mxu0 0
        %399 = vmatpush1.bf16.msra.mxu0 0
        %400 = vmatprep.subr.bf16.mxu0 0
        %401 = vmatpush1.bf16.msra.mxu0 0
        %402 = vmatprep.subr.bf16.mxu0 0
        %403 = vmatpush1.bf16.msra.mxu0 0
        %404 = vmatprep.subr.bf16.mxu0 0
        %405 = vmatpush1.bf16.msra.mxu0 0
        %406 = vmatprep.subr.bf16.mxu0 0
        %407 = vmatpush1.bf16.msra.mxu0 0
        %408 = vmatprep.mubr.bf16.mxu0 %v367
        %409 = vmatmul.mubr.bf16.gmra.mrb[0].mxu0 %v302
        %v410 = vpop.f32.mrb[0].mxu0
        %v411 = vadd.f32 0.0, %v410
        %v412 = vpop.f32.mrb[0].mxu0
        %v413 = vpop.f32.mrb[0].mxu0
        %v414 = vadd.f32 0.0, %v413
        %v415 = vpop.f32.mrb[0].mxu0
        %416 = vmatprep.mubr.bf16.mxu0 %v370
        %417 = vmatmul.mubr.bf16.gmra.mrb[0].mxu0 %v304
        %v418 = vpop.f32.mrb[0].mxu0
        %v419 = vadd.f32 0.0, %v418
        %v420 = vpop.f32.mrb[0].mxu0
        %v421 = vpop.f32.mrb[0].mxu0
        %v422 = vadd.f32 0.0, %v421
        %v423 = vpop.f32.mrb[0].mxu0
        %424 = vdwg.mxu0
        %s425 = scalar_lea.vmem %s240, 32 [#allocation2]
        %v426 = vld [vmem:[%s425] sm:$0xff]
        %v427 = vld [vmem:[%s425 + $0x8] sm:$0xff]
        %v428 = vld [vmem:[%s425 + $0x10] sm:$0xff]
        %v429 = vld [vmem:[%s425 + $0x18] sm:$0x11]
        %v434 = vunpack.c.l.b16 %v426
        %v435 = vunpack.c.h.b16 %v426
        %v436 = vunpack.c.l.b16 %v427
        %v437 = vunpack.c.h.b16 %v427
        %v438 = vunpack.c.l.b16 %v428
        %v439 = vunpack.c.h.b16 %v428
        %v440 = vunpack.c.l.b16 %v429
        %v441 = vunpack.c.h.b16 %v429
        %v442 = vpack.c.b16 %v436, %v434
        %v443 = vpack.c.b16 %v437, %v435
        %v444 = vpack.c.b16 %v440, %v438
        %v445 = vpack.c.b16 %v441, %v439
        %v449 = vsel %vm365, %v443, 0
        %v452 = vsel %vm365, %v445, 0
        %454 = vmatprep.subr.bf16.mxu0 0
        %455 = vmatpush1.bf16.msra.mxu0 %v346
        %456 = vmatprep.subr.bf16.mxu0 0
        %457 = vmatpush1.bf16.msra.mxu0 %v347
        %458 = vmatprep.subr.bf16.mxu0 0
        %459 = vmatpush1.bf16.msra.mxu0 %v348
        %460 = vmatprep.subr.bf16.mxu0 0
        %461 = vmatpush1.bf16.msra.mxu0 %v349
        %462 = vmatprep.subr.bf16.mxu0 0
        %463 = vmatpush1.bf16.msra.mxu0 %v350
        %464 = vmatprep.subr.bf16.mxu0 0
        %465 = vmatpush1.bf16.msra.mxu0 %v351
        %466 = vmatprep.subr.bf16.mxu0 0
        %467 = vmatpush1.bf16.msra.mxu0 %v352
        %468 = vmatprep.subr.bf16.mxu0 0
        %469 = vmatpush1.bf16.msra.mxu0 %v353
        %470 = vmatprep.subr.bf16.mxu0 0
        %471 = vmatpush1.bf16.msra.mxu0 %v354
        %472 = vmatprep.subr.bf16.mxu0 0
        %473 = vmatpush1.bf16.msra.mxu0 %v374
        %474 = vmatprep.subr.bf16.mxu0 0
        %475 = vmatpush1.bf16.msra.mxu0 0
        %476 = vmatprep.subr.bf16.mxu0 0
        %477 = vmatpush1.bf16.msra.mxu0 0
        %478 = vmatprep.subr.bf16.mxu0 0
        %479 = vmatpush1.bf16.msra.mxu0 0
        %480 = vmatprep.subr.bf16.mxu0 0
        %481 = vmatpush1.bf16.msra.mxu0 0
        %482 = vmatprep.subr.bf16.mxu0 0
        %483 = vmatpush1.bf16.msra.mxu0 0
        %484 = vmatprep.subr.bf16.mxu0 0
        %485 = vmatpush1.bf16.msra.mxu0 0
        %486 = vmatprep.mubr.bf16.mxu0 %v449
        %487 = vmatmul.mubr.bf16.gmra.mrb[0].mxu0 %v442
        %v488 = vpop.f32.mrb[0].mxu0
        %v489 = vadd.f32 0.0, %v488
        %v490 = vpop.f32.mrb[0].mxu0
        %v491 = vpop.f32.mrb[0].mxu0
        %v492 = vadd.f32 0.0, %v491
        %v493 = vpop.f32.mrb[0].mxu0
        %494 = vmatprep.mubr.bf16.mxu0 %v452
        %495 = vmatmul.mubr.bf16.gmra.mrb[0].mxu0 %v444
        %v496 = vpop.f32.mrb[0].mxu0
        %v497 = vadd.f32 0.0, %v496
        %v498 = vpop.f32.mrb[0].mxu0
        %v499 = vpop.f32.mrb[0].mxu0
        %v500 = vadd.f32 0.0, %v499
        %v501 = vpop.f32.mrb[0].mxu0
        %502 = vdwg.mxu0
        %v503 = vmax.f32 %v411, %v489
        %v504 = vmax.f32 %v414, %v492
        %v505 = vmax.f32 %v419, %v497
        %v506 = vmax.f32 %v422, %v500
        %s507 = scalar_lea.vmem %s240, 64 [#allocation2]
        %v508 = vld [vmem:[%s507] sm:$0xff]
        %v509 = vld [vmem:[%s507 + $0x8] sm:$0xff]
        %v510 = vld [vmem:[%s507 + $0x10] sm:$0xff]
        %v511 = vld [vmem:[%s507 + $0x18] sm:$0x11]
        %v516 = vunpack.c.l.b16 %v508
        %v517 = vunpack.c.h.b16 %v508
        %v518 = vunpack.c.l.b16 %v509
        %v519 = vunpack.c.h.b16 %v509
        %v520 = vunpack.c.l.b16 %v510
        %v521 = vunpack.c.h.b16 %v510
        %v522 = vunpack.c.l.b16 %v511
        %v523 = vunpack.c.h.b16 %v511
        %v524 = vpack.c.b16 %v518, %v516
        %v525 = vpack.c.b16 %v519, %v517
        %v526 = vpack.c.b16 %v522, %v520
        %v527 = vpack.c.b16 %v523, %v521
        %v531 = vsel %vm365, %v525, 0
        %v534 = vsel %vm365, %v527, 0
        %536 = vmatprep.subr.bf16.mxu0 0
        %537 = vmatpush1.bf16.msra.mxu0 %v346
        %538 = vmatprep.subr.bf16.mxu0 0
        %539 = vmatpush1.bf16.msra.mxu0 %v347
        %540 = vmatprep.subr.bf16.mxu0 0
        %541 = vmatpush1.bf16.msra.mxu0 %v348
        %542 = vmatprep.subr.bf16.mxu0 0
        %543 = vmatpush1.bf16.msra.mxu0 %v349
        %544 = vmatprep.subr.bf16.mxu0 0
        %545 = vmatpush1.bf16.msra.mxu0 %v350
        %546 = vmatprep.subr.bf16.mxu0 0
        %547 = vmatpush1.bf16.msra.mxu0 %v351
        %548 = vmatprep.subr.bf16.mxu0 0
        %549 = vmatpush1.bf16.msra.mxu0 %v352
        %550 = vmatprep.subr.bf16.mxu0 0
        %551 = vmatpush1.bf16.msra.mxu0 %v353
        %552 = vmatprep.subr.bf16.mxu0 0
        %553 = vmatpush1.bf16.msra.mxu0 %v354
        %554 = vmatprep.subr.bf16.mxu0 0
        %555 = vmatpush1.bf16.msra.mxu0 %v374
        %556 = vmatprep.subr.bf16.mxu0 0
        %557 = vmatpush1.bf16.msra.mxu0 0
        %558 = vmatprep.subr.bf16.mxu0 0
        %559 = vmatpush1.bf16.msra.mxu0 0
        %560 = vmatprep.subr.bf16.mxu0 0
        %561 = vmatpush1.bf16.msra.mxu0 0
        %562 = vmatprep.subr.bf16.mxu0 0
        %563 = vmatpush1.bf16.msra.mxu0 0
        %564 = vmatprep.subr.bf16.mxu0 0
        %565 = vmatpush1.bf16.msra.mxu0 0
        %566 = vmatprep.subr.bf16.mxu0 0
        %567 = vmatpush1.bf16.msra.mxu0 0
        %568 = vmatprep.mubr.bf16.mxu0 %v531
        %569 = vmatmul.mubr.bf16.gmra.mrb[0].mxu0 %v524
        %v570 = vpop.f32.mrb[0].mxu0
        %v571 = vadd.f32 0.0, %v570
        %v572 = vpop.f32.mrb[0].mxu0
        %v573 = vpop.f32.mrb[0].mxu0
        %v574 = vadd.f32 0.0, %v573
        %v575 = vpop.f32.mrb[0].mxu0
        %576 = vmatprep.mubr.bf16.mxu0 %v534
        %577 = vmatmul.mubr.bf16.gmra.mrb[0].mxu0 %v526
        %v578 = vpop.f32.mrb[0].mxu0
        %v579 = vadd.f32 0.0, %v578
        %v580 = vpop.f32.mrb[0].mxu0
        %v581 = vpop.f32.mrb[0].mxu0
        %v582 = vadd.f32 0.0, %v581
        %v583 = vpop.f32.mrb[0].mxu0
        %584 = vdwg.mxu0
        %v585 = vmax.f32 %v503, %v571
        %v586 = vmax.f32 %v504, %v574
        %v587 = vmax.f32 %v505, %v579
        %v588 = vmax.f32 %v506, %v582
        %s589 = scalar_lea.vmem %s240, 96 [#allocation2]
        %v590 = vld [vmem:[%s589] sm:$0xff]
        %v591 = vld [vmem:[%s589 + $0x8] sm:$0xff]
        %v592 = vld [vmem:[%s589 + $0x10] sm:$0xff]
        %v593 = vld [vmem:[%s589 + $0x18] sm:$0x11]
        %v598 = vunpack.c.l.b16 %v590
        %v599 = vunpack.c.h.b16 %v590
        %v600 = vunpack.c.l.b16 %v591
        %v601 = vunpack.c.h.b16 %v591
        %v602 = vunpack.c.l.b16 %v592
        %v603 = vunpack.c.h.b16 %v592
        %v604 = vunpack.c.l.b16 %v593
        %v605 = vunpack.c.h.b16 %v593
        %v606 = vpack.c.b16 %v600, %v598
        %v607 = vpack.c.b16 %v601, %v599
        %v608 = vpack.c.b16 %v604, %v602
        %v609 = vpack.c.b16 %v605, %v603
        %v613 = vsel %vm365, %v607, 0
        %v616 = vsel %vm365, %v609, 0
        %618 = vmatprep.subr.bf16.mxu0 0
        %619 = vmatpush1.bf16.msra.mxu0 %v346
        %620 = vmatprep.subr.bf16.mxu0 0
        %621 = vmatpush1.bf16.msra.mxu0 %v347
        %622 = vmatprep.subr.bf16.mxu0 0
        %623 = vmatpush1.bf16.msra.mxu0 %v348
        %624 = vmatprep.subr.bf16.mxu0 0
        %625 = vmatpush1.bf16.msra.mxu0 %v349
        %626 = vmatprep.subr.bf16.mxu0 0
        %627 = vmatpush1.bf16.msra.mxu0 %v350
        %628 = vmatprep.subr.bf16.mxu0 0
        %629 = vmatpush1.bf16.msra.mxu0 %v351
        %630 = vmatprep.subr.bf16.mxu0 0
        %631 = vmatpush1.bf16.msra.mxu0 %v352
        %632 = vmatprep.subr.bf16.mxu0 0
        %633 = vmatpush1.bf16.msra.mxu0 %v353
        %634 = vmatprep.subr.bf16.mxu0 0
        %635 = vmatpush1.bf16.msra.mxu0 %v354
        %636 = vmatprep.subr.bf16.mxu0 0
        %637 = vmatpush1.bf16.msra.mxu0 %v374
        %638 = vmatprep.subr.bf16.mxu0 0
        %639 = vmatpush1.bf16.msra.mxu0 0
        %640 = vmatprep.subr.bf16.mxu0 0
        %641 = vmatpush1.bf16.msra.mxu0 0
        %642 = vmatprep.subr.bf16.mxu0 0
        %643 = vmatpush1.bf16.msra.mxu0 0
        %644 = vmatprep.subr.bf16.mxu0 0
        %645 = vmatpush1.bf16.msra.mxu0 0
        %646 = vmatprep.subr.bf16.mxu0 0
        %647 = vmatpush1.bf16.msra.mxu0 0
        %648 = vmatprep.subr.bf16.mxu0 0
        %649 = vmatpush1.bf16.msra.mxu0 0
        %650 = vmatprep.mubr.bf16.mxu0 %v613
        %651 = vmatmul.mubr.bf16.gmra.mrb[0].mxu0 %v606
        %v652 = vpop.f32.mrb[0].mxu0
        %v653 = vadd.f32 0.0, %v652
        %v654 = vpop.f32.mrb[0].mxu0
        %v655 = vpop.f32.mrb[0].mxu0
        %v656 = vadd.f32 0.0, %v655
        %v657 = vpop.f32.mrb[0].mxu0
        %658 = vmatprep.mubr.bf16.mxu0 %v616
        %659 = vmatmul.mubr.bf16.gmra.mrb[0].mxu0 %v608
        %v660 = vpop.f32.mrb[0].mxu0
        %v661 = vadd.f32 0.0, %v660
        %v662 = vpop.f32.mrb[0].mxu0
        %v663 = vpop.f32.mrb[0].mxu0
        %v664 = vadd.f32 0.0, %v663
        %v665 = vpop.f32.mrb[0].mxu0
        %666 = vdwg.mxu0
        %v667 = vmax.f32 %v585, %v653
        %v668 = vmax.f32 %v586, %v656
        %v669 = vmax.f32 %v587, %v661
        %v670 = vmax.f32 %v588, %v664
        %v671 = vld [vmem:[%s2] sm:$0x1]
        %v673 = vlaneseq
        %v674 = vshrl.u32 %v673, 7
        %v675 = vsub.s32 0, %v674
        %v676 = vrot.slane %v671, %v675
        %v678 = vadd.f32 %v667, %v676
        %v679 = vadd.f32 %v668, %v676
        %v680 = vadd.f32 %v669, %v676
        %v681 = vadd.f32 %v670, %v676
        %v682 = vmax.f32 %v678, 0.0
        %v683 = vmax.f32 %v679, 0.0
        %v684 = vmax.f32 %v680, 0.0
        %v685 = vmax.f32 %v681, 0.0
        %v686 = vpack.c.bf16 %v683, %v682
        %v687 = vpack.c.bf16 %v685, %v684
        %v690 = vunpack.c.l.b16 %v686
        %v691 = vunpack.c.h.b16 %v686
        %v692 = vunpack.c.l.b16 %v687
        %v693 = vunpack.c.h.b16 %v687
        %v694 = vpack.c.b16 %v690, %v690
        %v695 = vpack.c.b16 %v691, %v691
        %v696 = vpack.c.b16 %v692, %v692
        %v697 = vpack.c.b16 %v693, %v693
        %vm702 = vcmask 125952
        %703 = vst.msk [vmem:[%s265] sm:$0xf] %vm702, %v694
        %704 = vst.msk [vmem:[%s265 + $0x4] sm:$0xf] %vm702, %v695
        %705 = vst.msk [vmem:[%s265 + $0x8] sm:$0xf] %vm702, %v696
        %vm706 = vcmask 122880
        %vm707 = vsmask.f32 256
        %vm708 = vmand %vm706, %vm707
        %v709 = vld [vmem:[%s265 + $0xc] sm:$0x1]
        %v710 = vsel %vm708, %v697, %v709
        %711 = vst [vmem:[%s265 + $0xc] sm:$0x1] %v710
        %p712 = scmp.lt.s32.totalorder %s14, 1
        %s713 = scalar_select %p712, %s14, 1
        %s714 = smul.addr %s713, 4
        %s715 = smul.addr %s714, 4
        %s716 = scalar_lea.vmem %s3, %s715
        // Predicated region
        $region71: #{cnn_forward.4} parent=65 // pred_check
          %p717 = pneg %p100
        $region72: #{cnn_forward.4} parent=65 // pred_check_branch
          %719 = sbr.rel (%p717) target = $region74
        $region73: #{cnn_forward.4} parent=65 // pred_region
          _
        $region74: #{cnn_forward.4} parent=65 // pred_fallthru
          _
      $region66: #{cnn_forward.4} parent=5 // pred_fallthru
        _
      %p720 = scmp.le.s32.totalorder 2, %s9
      // Predicated region
      $region75: #{cnn_forward.4} parent=5 // pred_check
        %p721 = pneg %p720
      $region76: #{cnn_forward.4} parent=5 // pred_check_branch
        %723 = sbr.rel (%p721) target = $region78
      $region77: #{cnn_forward.4} parent=5 // pred_region
        %s724 = ssub.s32 %s9, 2
        // Predicated region
        $region79: #{cnn_forward.4} parent=77 // pred_check
          %p725 = pneg %p106
        $region80: #{cnn_forward.4} parent=77 // pred_check_branch
          %727 = sbr.rel (%p725) target = $region82
        $region81: #{cnn_forward.4} parent=77 // pred_region
          %p728 = scmp.lt.s32.totalorder %s15, 1
          %s729 = scalar_select %p728, %s15, 1
          %s730 = smul.addr %s729, 4
          %s731 = smul.addr %s730, 4
          %s732 = scalar_lea.vmem %s3, %s731
        $region82: #{cnn_forward.4} parent=77 // pred_fallthru
          _
      $region78: #{cnn_forward.4} parent=5 // pred_fallthru
        _
    $region6: #{cnn_forward.4} parent=1 // loop_footer
      %s13 = sadd.s32 1, %s9
    $region7: #{cnn_forward.4} parent=1 // loop_footer_branch
      %8 = sbr.rel target = $region3
    $region8: #{cnn_forward.4} parent=1 // loop_exit
      _

// kernel: cnn_forward.5
$region0: #{cnn_forward.5}
  #allocation0 [shape = 'u32[]', space=smem, size = 0x4, offset = 0x4, fixed_abs, tag = 'smem constant byte address 0x4 - core index']
  #allocation1 [shape = 'u32[144,128]{1,0:T(1,128)}', space=vmem, size = 0x12000, scoped, tag = 'internal scratch']
  %s0 = inlined_call_operand.vmem [shape: bf16[2,400], index: 0, kind: input, shape index: {}]
  %s1 = inlined_call_operand.vmem [shape: bf16[400,128], index: 1, kind: input, shape index: {}]
  %s2 = inlined_call_operand.vmem [shape: f32[1,128], index: 2, kind: input, shape index: {}]
  %s3 = inlined_call_operand.vmem [shape: bf16[128,128], index: 3, kind: input, shape index: {}]
  %s4 = inlined_call_operand.vmem [shape: f32[1,128], index: 4, kind: input, shape index: {}]
  %s5 = inlined_call_operand.vmem [shape: bf16[128,10], index: 5, kind: input, shape index: {}]
  %s6 = inlined_call_operand.vmem [shape: f32[1,10], index: 6, kind: input, shape index: {}]
  %s7 = inlined_call_operand.hbm [shape: f32[2,10], index: 7, kind: output, shape index: {}]
  %s8 = sld [smem:[#allocation0]]
  $region38: #{cnn_forward.5} parent=0
    _
  %s10 = ssub.s32 1, %s8
  %s11 = scalar_select 0, %s10, %s8
  $region1: #{cnn_forward.5} parent=0
    #allocation2 [shape = 'u8[1024]{0}', space=vmem, size = 0x400, scoped, tag = 'output window, operand 0, single buffered']
    #allocation3 [shape = 's32[1]{0}', space=sflag, size = 0x4, scoped, tag = 'scoped memory for cnn_forward.5']
    %12 = vsyncpa [#allocation3], 0
    // Predicated region
    $region2: #{cnn_forward.5} parent=1 // pred_check
      _
    $region3: #{cnn_forward.5} parent=1 // pred_check_branch
      %14 = sbr.rel (0) target = $region5
    $region4: #{cnn_forward.5} parent=1 // pred_region
      _
    $region5: #{cnn_forward.5} parent=1 // pred_fallthru
      _
    // Predicated region
    $region6: #{cnn_forward.5} parent=1 // pred_check
      _
    $region7: #{cnn_forward.5} parent=1 // pred_check_branch
      %16 = sbr.rel (0) target = $region9
    $region8: #{cnn_forward.5} parent=1 // pred_region
      _
    $region9: #{cnn_forward.5} parent=1 // pred_fallthru
      _
    // Predicated region
    $region10: #{cnn_forward.5} parent=1 // pred_check
      _
    $region11: #{cnn_forward.5} parent=1 // pred_check_branch
      %18 = sbr.rel (0) target = $region13
    $region12: #{cnn_forward.5} parent=1 // pred_region
      _
    $region13: #{cnn_forward.5} parent=1 // pred_fallthru
      _
    // Predicated region
    $region14: #{cnn_forward.5} parent=1 // pred_check
      _
    $region15: #{cnn_forward.5} parent=1 // pred_check_branch
      %20 = sbr.rel (0) target = $region17
    $region16: #{cnn_forward.5} parent=1 // pred_region
      _
    $region17: #{cnn_forward.5} parent=1 // pred_fallthru
      _
    // Predicated region
    $region18: #{cnn_forward.5} parent=1 // pred_check
      _
    $region19: #{cnn_forward.5} parent=1 // pred_check_branch
      %22 = sbr.rel (0) target = $region21
    $region20: #{cnn_forward.5} parent=1 // pred_region
      _
    $region21: #{cnn_forward.5} parent=1 // pred_fallthru
      _
    // Predicated region
    $region22: #{cnn_forward.5} parent=1 // pred_check
      _
    $region23: #{cnn_forward.5} parent=1 // pred_check_branch
      %24 = sbr.rel (0) target = $region25
    $region24: #{cnn_forward.5} parent=1 // pred_region
      _
    $region25: #{cnn_forward.5} parent=1 // pred_fallthru
      _
    // Predicated region
    $region26: #{cnn_forward.5} parent=1 // pred_check
      _
    $region27: #{cnn_forward.5} parent=1 // pred_check_branch
      %26 = sbr.rel (0) target = $region29
    $region28: #{cnn_forward.5} parent=1 // pred_region
      _
    $region29: #{cnn_forward.5} parent=1 // pred_fallthru
      _
    %v28 = vld [vmem:[%s0] sm:$0xf]
    %v29 = vld [vmem:[%s1] sm:$0xf]
    %v30 = vld [vmem:[%s1 + $0x4] sm:$0xf]
    %v31 = vld [vmem:[%s1 + $0x8] sm:$0xf]
    %v32 = vld [vmem:[%s1 + $0xc] sm:$0xf]
    %v33 = vld [vmem:[%s1 + $0x10] sm:$0xf]
    %v34 = vld [vmem:[%s1 + $0x14] sm:$0xf]
    %v35 = vld [vmem:[%s1 + $0x18] sm:$0xf]
    %v36 = vld [vmem:[%s1 + $0x1c] sm:$0xf]
    %v37 = vld [vmem:[%s1 + $0x20] sm:$0xf]
    %v38 = vld [vmem:[%s1 + $0x24] sm:$0xf]
    %v39 = vld [vmem:[%s1 + $0x28] sm:$0xf]
    %v40 = vld [vmem:[%s1 + $0x2c] sm:$0xf]
    %v41 = vld [vmem:[%s1 + $0x30] sm:$0xf]
    %v42 = vld [vmem:[%s1 + $0x34] sm:$0xf]
    %v43 = vld [vmem:[%s1 + $0x38] sm:$0xf]
    %v44 = vld [vmem:[%s1 + $0x3c] sm:$0xf]
    %v45 = vld [vmem:[%s1 + $0x40] sm:$0xf]
    %v46 = vld [vmem:[%s1 + $0x44] sm:$0xf]
    %v47 = vld [vmem:[%s1 + $0x48] sm:$0xf]
    %v48 = vld [vmem:[%s1 + $0x4c] sm:$0xf]
    %v49 = vld [vmem:[%s1 + $0x50] sm:$0xf]
    %v50 = vld [vmem:[%s1 + $0x54] sm:$0xf]
    %v51 = vld [vmem:[%s1 + $0x58] sm:$0xf]
    %v52 = vld [vmem:[%s1 + $0x5c] sm:$0xf]
    %v53 = vld [vmem:[%s1 + $0x60] sm:$0xf]
    %v54 = vld [vmem:[%s1 + $0x64] sm:$0xf]
    %v55 = vld [vmem:[%s1 + $0x68] sm:$0xf]
    %v56 = vld [vmem:[%s1 + $0x6c] sm:$0xf]
    %v57 = vld [vmem:[%s1 + $0x70] sm:$0xf]
    %v58 = vld [vmem:[%s1 + $0x74] sm:$0xf]
    %v59 = vld [vmem:[%s1 + $0x78] sm:$0xf]
    %v60 = vld [vmem:[%s1 + $0x7c] sm:$0xf]
    %v61 = vld [vmem:[%s1 + $0x80] sm:$0xf]
    %v62 = vld [vmem:[%s1 + $0x84] sm:$0xf]
    %v63 = vld [vmem:[%s1 + $0x88] sm:$0xf]
    %v64 = vld [vmem:[%s1 + $0x8c] sm:$0xf]
    %v65 = vld [vmem:[%s1 + $0x90] sm:$0xf]
    %v66 = vld [vmem:[%s1 + $0x94] sm:$0xf]
    %v67 = vld [vmem:[%s1 + $0x98] sm:$0xf]
    %v68 = vld [vmem:[%s1 + $0x9c] sm:$0xf]
    %v69 = vld [vmem:[%s1 + $0xa0] sm:$0xf]
    %v70 = vld [vmem:[%s1 + $0xa4] sm:$0xf]
    %v71 = vld [vmem:[%s1 + $0xa8] sm:$0xf]
    %v72 = vld [vmem:[%s1 + $0xac] sm:$0xf]
    %v73 = vld [vmem:[%s1 + $0xb0] sm:$0xf]
    %v74 = vld [vmem:[%s1 + $0xb4] sm:$0xf]
    %v75 = vld [vmem:[%s1 + $0xb8] sm:$0xf]
    %v76 = vld [vmem:[%s1 + $0xbc] sm:$0xf]
    %v77 = vld [vmem:[%s1 + $0xc0] sm:$0xf]
    %v78 = vld [vmem:[%s1 + $0xc4] sm:$0xf]
    %v79 = vld [vmem:[%s2] sm:$0x1]
    %v81 = vlaneseq
    %v82 = vshrl.u32 %v81, 7
    %v83 = vsub.s32 0, %v82
    %v84 = vrot.slane %v79, %v83
    %v88 = vunpack.c.l.s4 1966171168
    %v89 = vunpack.c.0.s8 %v88
    %v90 = vlaneseq
    %v91 = vshrl.u32 %v90, 7
    %v92 = vsub.s32 %v89, %v91
    %v93 = vrot.slane %v28, %v92
    %v94 = vcombine.high %v93, %v93
    %v96 = vunpack.c.l.s4 1966171168
    %v97 = vunpack.c.0.s8 %v96
    %v98 = vlaneseq
    %v99 = vshrl.u32 %v98, 7
    %v100 = vsub.s32 %v97, %v99
    %v101 = vrot.slane %v93, %v100
    %v103 = vunpack.c.l.s4 1966171168
    %v104 = vunpack.c.0.s8 %v103
    %v105 = vlaneseq
    %v106 = vshrl.u32 %v105, 7
    %v107 = vsub.s32 %v104, %v106
    %v108 = vrot.slane %v94, %v107
    %v109 = vcombine.high %v101, %v101
    %v110 = vcombine.high %v108, %v108
    %v164 = vunpack.c.l.b16 %v29
    %v165 = vunpack.c.l.b16 %v30
    %v166 = vunpack.c.l.b16 %v31
    %v167 = vunpack.c.l.b16 %v32
    %v168 = vunpack.c.l.b16 %v33
    %v169 = vunpack.c.l.b16 %v34
    %v170 = vunpack.c.l.b16 %v35
    %v171 = vunpack.c.l.b16 %v36
    %v172 = vunpack.c.l.b16 %v37
    %v173 = vunpack.c.l.b16 %v38
    %v174 = vunpack.c.l.b16 %v39
    %v175 = vunpack.c.l.b16 %v40
    %v176 = vunpack.c.l.b16 %v41
    %v177 = vunpack.c.l.b16 %v42
    %v178 = vunpack.c.l.b16 %v43
    %v179 = vunpack.c.l.b16 %v44
    %v180 = vunpack.c.l.b16 %v45
    %v181 = vunpack.c.l.b16 %v46
    %v182 = vunpack.c.l.b16 %v47
    %v183 = vunpack.c.l.b16 %v48
    %v184 = vunpack.c.l.b16 %v49
    %v185 = vunpack.c.l.b16 %v50
    %v186 = vunpack.c.l.b16 %v51
    %v187 = vunpack.c.l.b16 %v52
    %v188 = vunpack.c.l.b16 %v53
    %v189 = vunpack.c.l.b16 %v54
    %v190 = vunpack.c.l.b16 %v55
    %v191 = vunpack.c.l.b16 %v56
    %v192 = vunpack.c.l.b16 %v57
    %v193 = vunpack.c.l.b16 %v58
    %v194 = vunpack.c.l.b16 %v59
    %v195 = vunpack.c.l.b16 %v60
    %v196 = vunpack.c.l.b16 %v61
    %v197 = vunpack.c.l.b16 %v62
    %v198 = vunpack.c.l.b16 %v63
    %v199 = vunpack.c.l.b16 %v64
    %v200 = vunpack.c.l.b16 %v65
    %v201 = vunpack.c.l.b16 %v66
    %v202 = vunpack.c.l.b16 %v67
    %v203 = vunpack.c.l.b16 %v68
    %v204 = vunpack.c.l.b16 %v69
    %v205 = vunpack.c.l.b16 %v70
    %v206 = vunpack.c.l.b16 %v71
    %v207 = vunpack.c.l.b16 %v72
    %v208 = vunpack.c.l.b16 %v73
    %v209 = vunpack.c.l.b16 %v74
    %v210 = vunpack.c.l.b16 %v75
    %v211 = vunpack.c.l.b16 %v76
    %v212 = vunpack.c.l.b16 %v77
    %v213 = vunpack.c.l.b16 %v78
    %v214 = vpack.c.b16 %v165, %v164
    %v215 = vpack.c.b16 %v167, %v166
    %v216 = vpack.c.b16 %v169, %v168
    %v217 = vpack.c.b16 %v171, %v170
    %v218 = vpack.c.b16 %v173, %v172
    %v219 = vpack.c.b16 %v175, %v174
    %v220 = vpack.c.b16 %v177, %v176
    %v221 = vpack.c.b16 %v179, %v178
    %v222 = vpack.c.b16 %v181, %v180
    %v223 = vpack.c.b16 %v183, %v182
    %v224 = vpack.c.b16 %v185, %v184
    %v225 = vpack.c.b16 %v187, %v186
    %v226 = vpack.c.b16 %v189, %v188
    %v227 = vpack.c.b16 %v191, %v190
    %v228 = vpack.c.b16 %v193, %v192
    %v229 = vpack.c.b16 %v195, %v194
    %v230 = vpack.c.b16 %v197, %v196
    %v231 = vpack.c.b16 %v199, %v198
    %v232 = vpack.c.b16 %v201, %v200
    %v233 = vpack.c.b16 %v203, %v202
    %v234 = vpack.c.b16 %v205, %v204
    %v235 = vpack.c.b16 %v207, %v206
    %v236 = vpack.c.b16 %v209, %v208
    %v237 = vpack.c.b16 %v211, %v210
    %v238 = vpack.c.b16 %v213, %v212
    %vm264 = vcmask 130048
    %v266 = vsel %vm264, %v110, 0
    %268 = vmatprep.subr.bf16.mxu0 0
    %269 = vmatpush1.bf16.msra.mxu0 %v214
    %270 = vmatprep.subr.bf16.mxu0 0
    %271 = vmatpush1.bf16.msra.mxu0 %v215
    %272 = vmatprep.subr.bf16.mxu0 0
    %273 = vmatpush1.bf16.msra.mxu0 %v216
    %274 = vmatprep.subr.bf16.mxu0 0
    %275 = vmatpush1.bf16.msra.mxu0 %v217
    %276 = vmatprep.subr.bf16.mxu0 0
    %277 = vmatpush1.bf16.msra.mxu0 %v218
    %278 = vmatprep.subr.bf16.mxu0 0
    %279 = vmatpush1.bf16.msra.mxu0 %v219
    %280 = vmatprep.subr.bf16.mxu0 0
    %281 = vmatpush1.bf16.msra.mxu0 %v220
    %282 = vmatprep.subr.bf16.mxu0 0
    %283 = vmatpush1.bf16.msra.mxu0 %v221
    %284 = vmatprep.subr.bf16.mxu0 0
    %285 = vmatpush1.bf16.msra.mxu0 %v222
    %286 = vmatprep.subr.bf16.mxu0 0
    %287 = vmatpush1.bf16.msra.mxu0 %v223
    %288 = vmatprep.subr.bf16.mxu0 0
    %289 = vmatpush1.bf16.msra.mxu0 %v224
    %290 = vmatprep.subr.bf16.mxu0 0
    %291 = vmatpush1.bf16.msra.mxu0 %v225
    %292 = vmatprep.subr.bf16.mxu0 0
    %293 = vmatpush1.bf16.msra.mxu0 %v226
    %294 = vmatprep.subr.bf16.mxu0 0
    %295 = vmatpush1.bf16.msra.mxu0 %v227
    %296 = vmatprep.subr.bf16.mxu0 0
    %297 = vmatpush1.bf16.msra.mxu0 %v228
    %298 = vmatprep.subr.bf16.mxu0 0
    %299 = vmatpush1.bf16.msra.mxu0 %v229
    %300 = vmatprep.mubr.bf16.mxu0 %v108
    %301 = vmatmul.mubr.bf16.gmra.mrb[0].mxu0 %v101
    %v302 = vpop.f32.mrb[0].mxu0
    %v303 = vadd.f32 %v84, %v302
    %v304 = vpop.f32.mrb[0].mxu0
    %v305 = vpop.f32.mrb[0].mxu0
    %v306 = vpop.f32.mrb[0].mxu0
    %307 = vdwg.mxu0
    %308 = vmatprep.subr.bf16.mxu0 0
    %309 = vmatpush1.bf16.msra.mxu0 %v230
    %310 = vmatprep.subr.bf16.mxu0 0
    %311 = vmatpush1.bf16.msra.mxu0 %v231
    %312 = vmatprep.subr.bf16.mxu0 0
    %313 = vmatpush1.bf16.msra.mxu0 %v232
    %314 = vmatprep.subr.bf16.mxu0 0
    %315 = vmatpush1.bf16.msra.mxu0 %v233
    %316 = vmatprep.subr.bf16.mxu0 0
    %317 = vmatpush1.bf16.msra.mxu0 %v234
    %318 = vmatprep.subr.bf16.mxu0 0
    %319 = vmatpush1.bf16.msra.mxu0 %v235
    %320 = vmatprep.subr.bf16.mxu0 0
    %321 = vmatpush1.bf16.msra.mxu0 %v236
    %322 = vmatprep.subr.bf16.mxu0 0
    %323 = vmatpush1.bf16.msra.mxu0 %v237
    %324 = vmatprep.subr.bf16.mxu0 0
    %325 = vmatpush1.bf16.msra.mxu0 %v238
    %326 = vmatprep.subr.bf16.mxu0 0
    %327 = vmatpush1.bf16.msra.mxu0 0
    %328 = vmatprep.subr.bf16.mxu0 0
    %329 = vmatpush1.bf16.msra.mxu0 0
    %330 = vmatprep.subr.bf16.mxu0 0
    %331 = vmatpush1.bf16.msra.mxu0 0
    %332 = vmatprep.subr.bf16.mxu0 0
    %333 = vmatpush1.bf16.msra.mxu0 0
    %334 = vmatprep.subr.bf16.mxu0 0
    %335 = vmatpush1.bf16.msra.mxu0 0
    %336 = vmatprep.subr.bf16.mxu0 0
    %337 = vmatpush1.bf16.msra.mxu0 0
    %338 = vmatprep.subr.bf16.mxu0 0
    %339 = vmatpush1.bf16.msra.mxu0 0
    %340 = vmatprep.mubr.bf16.mxu0 %v266
    %341 = vmatmul.mubr.bf16.gmra.mrb[0].mxu0 %v109
    %v342 = vpop.f32.mrb[0].mxu0
    %v343 = vadd.f32 %v303, %v342
    %v344 = vpop.f32.mrb[0].mxu0
    %v345 = vpop.f32.mrb[0].mxu0
    %v346 = vpop.f32.mrb[0].mxu0
    %347 = vdwg.mxu0
    %v348 = vmax.f32 %v343, 0.0
    %v349 = vpack.c.bf16 %v348, %v348
    %v350 = vld [vmem:[%s3] sm:$0xf]
    %v351 = vld [vmem:[%s3 + $0x4] sm:$0xf]
    %v352 = vld [vmem:[%s3 + $0x8] sm:$0xf]
    %v353 = vld [vmem:[%s3 + $0xc] sm:$0xf]
    %v354 = vld [vmem:[%s3 + $0x10] sm:$0xf]
    %v355 = vld [vmem:[%s3 + $0x14] sm:$0xf]
    %v356 = vld [vmem:[%s3 + $0x18] sm:$0xf]
    %v357 = vld [vmem:[%s3 + $0x1c] sm:$0xf]
    %v358 = vld [vmem:[%s3 + $0x20] sm:$0xf]
    %v359 = vld [vmem:[%s3 + $0x24] sm:$0xf]
    %v360 = vld [vmem:[%s3 + $0x28] sm:$0xf]
    %v361 = vld [vmem:[%s3 + $0x2c] sm:$0xf]
    %v362 = vld [vmem:[%s3 + $0x30] sm:$0xf]
    %v363 = vld [vmem:[%s3 + $0x34] sm:$0xf]
    %v364 = vld [vmem:[%s3 + $0x38] sm:$0xf]
    %v365 = vld [vmem:[%s3 + $0x3c] sm:$0xf]
    %v366 = vld [vmem:[%s4] sm:$0x1]
    %v368 = vlaneseq
    %v369 = vshrl.u32 %v368, 7
    %v370 = vsub.s32 0, %v369
    %v371 = vrot.slane %v366, %v370
    %v389 = vunpack.c.l.b16 %v350
    %v390 = vunpack.c.l.b16 %v351
    %v391 = vunpack.c.l.b16 %v352
    %v392 = vunpack.c.l.b16 %v353
    %v393 = vunpack.c.l.b16 %v354
    %v394 = vunpack.c.l.b16 %v355
    %v395 = vunpack.c.l.b16 %v356
    %v396 = vunpack.c.l.b16 %v357
    %v397 = vunpack.c.l.b16 %v358
    %v398 = vunpack.c.l.b16 %v359
    %v399 = vunpack.c.l.b16 %v360
    %v400 = vunpack.c.l.b16 %v361
    %v401 = vunpack.c.l.b16 %v362
    %v402 = vunpack.c.l.b16 %v363
    %v403 = vunpack.c.l.b16 %v364
    %v404 = vunpack.c.l.b16 %v365
    %v405 = vpack.c.b16 %v390, %v389
    %v406 = vpack.c.b16 %v392, %v391
    %v407 = vpack.c.b16 %v394, %v393
    %v408 = vpack.c.b16 %v396, %v395
    %v409 = vpack.c.b16 %v398, %v397
    %v410 = vpack.c.b16 %v400, %v399
    %v411 = vpack.c.b16 %v402, %v401
    %v412 = vpack.c.b16 %v404, %v403
    %421 = vmatprep.subr.bf16.mxu0 0
    %422 = vmatpush1.bf16.msra.mxu0 %v405
    %423 = vmatprep.subr.bf16.mxu0 0
    %424 = vmatpush1.bf16.msra.mxu0 %v406
    %425 = vmatprep.subr.bf16.mxu0 0
    %426 = vmatpush1.bf16.msra.mxu0 %v407
    %427 = vmatprep.subr.bf16.mxu0 0
    %428 = vmatpush1.bf16.msra.mxu0 %v408
    %429 = vmatprep.subr.bf16.mxu0 0
    %430 = vmatpush1.bf16.msra.mxu0 %v409
    %431 = vmatprep.subr.bf16.mxu0 0
    %432 = vmatpush1.bf16.msra.mxu0 %v410
    %433 = vmatprep.subr.bf16.mxu0 0
    %434 = vmatpush1.bf16.msra.mxu0 %v411
    %435 = vmatprep.subr.bf16.mxu0 0
    %436 = vmatpush1.bf16.msra.mxu0 %v412
    %437 = vmatprep.subr.bf16.mxu0 0
    %438 = vmatpush1.bf16.msra.mxu0 0
    %439 = vmatprep.subr.bf16.mxu0 0
    %440 = vmatpush1.bf16.msra.mxu0 0
    %441 = vmatprep.subr.bf16.mxu0 0
    %442 = vmatpush1.bf16.msra.mxu0 0
    %443 = vmatprep.subr.bf16.mxu0 0
    %444 = vmatpush1.bf16.msra.mxu0 0
    %445 = vmatprep.subr.bf16.mxu0 0
    %446 = vmatpush1.bf16.msra.mxu0 0
    %447 = vmatprep.subr.bf16.mxu0 0
    %448 = vmatpush1.bf16.msra.mxu0 0
    %449 = vmatprep.subr.bf16.mxu0 0
    %450 = vmatpush1.bf16.msra.mxu0 0
    %451 = vmatprep.subr.bf16.mxu0 0
    %452 = vmatpush1.bf16.msra.mxu0 0
    %453 = vmatprep.mubr.bf16.mxu0 0
    %454 = vmatmul.mubr.bf16.gmra.mrb[0].mxu0 %v349
    %v455 = vpop.f32.mrb[0].mxu0
    %v456 = vadd.f32 %v371, %v455
    %v457 = vpop.f32.mrb[0].mxu0
    %v458 = vpop.f32.mrb[0].mxu0
    %v459 = vpop.f32.mrb[0].mxu0
    %460 = vdwg.mxu0
    %v461 = vmax.f32 %v456, 0.0
    %v462 = vpack.c.bf16 %v461, %v461
    %v463 = vld [vmem:[%s5] sm:$0xf]
    %v464 = vld [vmem:[%s5 + $0x4] sm:$0xf]
    %v465 = vld [vmem:[%s5 + $0x8] sm:$0xf]
    %v466 = vld [vmem:[%s5 + $0xc] sm:$0xf]
    %v467 = vld [vmem:[%s5 + $0x10] sm:$0xf]
    %v468 = vld [vmem:[%s5 + $0x14] sm:$0xf]
    %v469 = vld [vmem:[%s5 + $0x18] sm:$0xf]
    %v470 = vld [vmem:[%s5 + $0x1c] sm:$0xf]
    %v471 = vld [vmem:[%s5 + $0x20] sm:$0xf]
    %v472 = vld [vmem:[%s5 + $0x24] sm:$0xf]
    %v473 = vld [vmem:[%s5 + $0x28] sm:$0xf]
    %v474 = vld [vmem:[%s5 + $0x2c] sm:$0xf]
    %v475 = vld [vmem:[%s5 + $0x30] sm:$0xf]
    %v476 = vld [vmem:[%s5 + $0x34] sm:$0xf]
    %v477 = vld [vmem:[%s5 + $0x38] sm:$0xf]
    %v478 = vld [vmem:[%s5 + $0x3c] sm:$0xf]
    %v479 = vld [vmem:[%s6] sm:$0x1]
    %v481 = vlaneseq
    %v482 = vshrl.u32 %v481, 7
    %v483 = vsub.s32 0, %v482
    %v484 = vrot.slane %v479, %v483
    %v502 = vunpack.c.l.b16 %v463
    %v503 = vunpack.c.l.b16 %v464
    %v504 = vunpack.c.l.b16 %v465
    %v505 = vunpack.c.l.b16 %v466
    %v506 = vunpack.c.l.b16 %v467
    %v507 = vunpack.c.l.b16 %v468
    %v508 = vunpack.c.l.b16 %v469
    %v509 = vunpack.c.l.b16 %v470
    %v510 = vunpack.c.l.b16 %v471
    %v511 = vunpack.c.l.b16 %v472
    %v512 = vunpack.c.l.b16 %v473
    %v513 = vunpack.c.l.b16 %v474
    %v514 = vunpack.c.l.b16 %v475
    %v515 = vunpack.c.l.b16 %v476
    %v516 = vunpack.c.l.b16 %v477
    %v517 = vunpack.c.l.b16 %v478
    %v518 = vpack.c.b16 %v503, %v502
    %v519 = vpack.c.b16 %v505, %v504
    %v520 = vpack.c.b16 %v507, %v506
    %v521 = vpack.c.b16 %v509, %v508
    %v522 = vpack.c.b16 %v511, %v510
    %v523 = vpack.c.b16 %v513, %v512
    %v524 = vpack.c.b16 %v515, %v514
    %v525 = vpack.c.b16 %v517, %v516
    %534 = vmatprep.subr.bf16.mxu0 0
    %535 = vmatpush1.bf16.msra.mxu0 %v518
    %536 = vmatprep.subr.bf16.mxu0 0
    %537 = vmatpush1.bf16.msra.mxu0 %v519
    %538 = vmatprep.subr.bf16.mxu0 0
    %539 = vmatpush1.bf16.msra.mxu0 %v520
    %540 = vmatprep.subr.bf16.mxu0 0
    %541 = vmatpush1.bf16.msra.mxu0 %v521
    %542 = vmatprep.subr.bf16.mxu0 0
    %543 = vmatpush1.bf16.msra.mxu0 %v522
    %544 = vmatprep.subr.bf16.mxu0 0
    %545 = vmatpush1.bf16.msra.mxu0 %v523
    %546 = vmatprep.subr.bf16.mxu0 0
    %547 = vmatpush1.bf16.msra.mxu0 %v524
    %548 = vmatprep.subr.bf16.mxu0 0
    %549 = vmatpush1.bf16.msra.mxu0 %v525
    %550 = vmatprep.subr.bf16.mxu0 0
    %551 = vmatpush1.bf16.msra.mxu0 0
    %552 = vmatprep.subr.bf16.mxu0 0
    %553 = vmatpush1.bf16.msra.mxu0 0
    %554 = vmatprep.subr.bf16.mxu0 0
    %555 = vmatpush1.bf16.msra.mxu0 0
    %556 = vmatprep.subr.bf16.mxu0 0
    %557 = vmatpush1.bf16.msra.mxu0 0
    %558 = vmatprep.subr.bf16.mxu0 0
    %559 = vmatpush1.bf16.msra.mxu0 0
    %560 = vmatprep.subr.bf16.mxu0 0
    %561 = vmatpush1.bf16.msra.mxu0 0
    %562 = vmatprep.subr.bf16.mxu0 0
    %563 = vmatpush1.bf16.msra.mxu0 0
    %564 = vmatprep.subr.bf16.mxu0 0
    %565 = vmatpush1.bf16.msra.mxu0 0
    %566 = vmatprep.mubr.bf16.mxu0 0
    %567 = vmatmul.mubr.bf16.gmra.mrb[0].mxu0 %v462
    %v568 = vpop.f32.mrb[0].mxu0
    %v569 = vadd.f32 %v484, %v568
    %v570 = vpop.f32.mrb[0].mxu0
    %v571 = vpop.f32.mrb[0].mxu0
    %v572 = vpop.f32.mrb[0].mxu0
    %573 = vdwg.mxu0
    %vm574 = vcmask 74752
    %575 = vst.msk [vmem:[#allocation2] sm:$0x3] %vm574, %v569
    // Predicated region
    $region30: #{cnn_forward.5} parent=1 // pred_check
      _
    $region31: #{cnn_forward.5} parent=1 // pred_check_branch
      %577 = sbr.rel (0) target = $region33
    $region32: #{cnn_forward.5} parent=1 // pred_region
      %s579 = ssub.s32 32, 32
      %580 = vsyncadd [#allocation3], %s579
      %s582 = sshll.u32 [#allocation2], 4
      %s583 = int_to_ptr.vmem [resolvable:$true] %s582
      %585 = dma.vmem_to_hbm [thread:$0]  %s583, 32, %s7, [#allocation3]
    $region33: #{cnn_forward.5} parent=1 // pred_fallthru
      _
    // Predicated region
    $region34: #{cnn_forward.5} parent=1 // pred_check
      _
    $region35: #{cnn_forward.5} parent=1 // pred_check_branch
      %587 = sbr.rel (0) target = $region37
    $region36: #{cnn_forward.5} parent=1 // pred_region
      %588 = dma.done [#allocation3], 32
    $region37: #{cnn_forward.5} parent=1 // pred_fallthru
      _
    %589 = vsyncpa [#allocation3], 1

</llo_original>
